<compile_context>
chip_gen: v7x
topology: tpu7x:2x2x1
jax: 0.10.0
libtpu: 0.0.40
codegen_flags: <defaults>
</compile_context>

<pallas_src>
import jax
import jax.numpy as jnp
from jax.experimental import pallas as pl
from jax.experimental.pallas import tpu as pltpu

# ---- module constants (maxNumAtoms scaled down from 64 for the small demo) ----
CH_NUM = 4
FINGERPRINT_SIZE = 198
FP_PAD = 256               # fingerprint dim padded to 2*128 lanes (zeros)
MAX_NUM_ATOMS = 8          # scaled down from 64
BATCH = 2
K = 4                      # "k" constructor arg: spatial conv out-channels
C_SGEN_LAYERS = 2
N_TOTAL = BATCH * MAX_NUM_ATOMS   # == conv1d in_channels (batch*maxNumAtoms)

VMEM = pltpu.MemorySpace.VMEM


# --------------------------------------------------------------------------
# Fused forward kernel
# --------------------------------------------------------------------------
def _make_fused_kernel(k, n_layers):
    """Returns the fused kernel body for static (k, n_layers)."""

    def kernel(*refs):
        pos = 0

        def nxt():
            nonlocal pos
            r = refs[pos]
            pos += 1
            return r

        # ---- inputs (order must match c_sgen_forward) ----
        adj_ref = nxt()
        feat_ref = nxt()
        l1_wt_ref = nxt()
        l1_b_ref = nxt()
        layer_refs = [[nxt() for _ in range(7)] for _ in range(n_layers)]
        bn_scale_ref = nxt()
        bn_shift_ref = nxt()
        l2_wt_ref = nxt()
        l2_b_ref = nxt()
        seg_ref = nxt()
        fringer_ref = nxt()
        d1b_ref = nxt()
        d2b_ref = nxt()
        d3b_ref = nxt()
        pw_mol_ref = nxt()
        pw_fp_ref = nxt()
        pb_ref = nxt()
        d1w_hbm = nxt()          # bf16, memory_space=ANY (raw HBM refs)
        d2w_hbm = nxt()
        d3w_hbm = nxt()
        # ---- output ----
        o_ref = nxt()
        # ---- scratch ----
        outs_scr = nxt()         # (N, (4+n_layers)*ch_num) running feature slab
        d1w_vmem = nxt()
        d2w_vmem = nxt()
        d3w_vmem = nxt()
        dma_sem = nxt()

        f32 = jnp.float32
        bf16 = jnp.bfloat16

        # (1) start the fingerprint-DNN weight DMAs immediately; they overlap with
        #     the whole graph-convolution chain and are waited on in stages below.
        cp1 = pltpu.make_async_copy(d1w_hbm, d1w_vmem, dma_sem.at[0])
        cp2 = pltpu.make_async_copy(d2w_hbm, d2w_vmem, dma_sem.at[1])
        cp3 = pltpu.make_async_copy(d3w_hbm, d3w_vmem, dma_sem.at[2])
        cp1.start()
        cp2.start()
        cp3.start()

        adj = adj_ref[...]                                   # (N, N), symmetric
        bn_scale = bn_scale_ref[...]
        bn_shift = bn_shift_ref[...]

        # (2) simple_conv1: adj @ (Features @ W1^T + b1) -> first 4*ch_num columns
        h = jnp.dot(feat_ref[...], l1_wt_ref[...],
                    preferred_element_type=f32) + l1_b_ref[...]
        outs_scr[:, 0:4 * CH_NUM] = jnp.dot(adj, h, preferred_element_type=f32)

        # (3) C_SGEL layers (lane-major spatial conv)
        for l in range(n_layers):
            (shifts_ref, scales_ref, bsp_row_ref,
             w1big_ref, b1t_ref, w2stk_ref, b2_ref) = layer_refs[l]
            cin = (4 + l) * CH_NUM
            fea = outs_scr[:, 0:cin]                         # (N, Cin)

            # k-tiled (lane-major) copies of fea and of its +-1 channel shifts.
            # shifts_ref[t] is the (Cin, k*Cin) shift matrix tiled k times, so one
            # tiny dot yields the tiled+shifted slab directly.
            F1 = jnp.concatenate([fea] * k, axis=1)          # (N, k*Cin)
            F0 = jnp.dot(fea, shifts_ref[0], preferred_element_type=f32)
            F2 = jnp.dot(fea, shifts_ref[1], preferred_element_type=f32)

            # per-atom / per-output-channel scale slabs from the shared Conv1d:
            #   G[i, o*Cin+c] = sum_t Wsp[o,i,t] * fea[i, c+t-1]
            G = (scales_ref[0] * F0 + scales_ref[1] * F1 + scales_ref[2] * F2)

            # spatial graph conv for all k output channels with ONE adjacency dot
            sp_cat = jnp.dot(adj, G, preferred_element_type=f32) + bsp_row_ref[...]

            # planes layout [fea | spatial o=0..k-1] on the lane axis (matches w1big)
            p_cat = jnp.concatenate([fea, sp_cat], axis=1)   # (N, (1+k)*Cin)

            # conv1d_a (all taps & positions) as one banded block matmul + relu
            out1 = jax.nn.relu(
                jnp.dot(p_cat, w1big_ref[...], preferred_element_type=f32)
                + b1t_ref[...])                              # (N, L1*Cmid)
            # conv1d_b (single valid output position) as one stacked-tap matmul
            out2 = jax.nn.relu(
                jnp.dot(out1, w2stk_ref[...], preferred_element_type=f32)
                + b2_ref[...])                               # (N, ch_num)
            # BatchNorm1d (eval): x * scale + shift; write into the next lane block
            outs_scr[:, cin:cin + CH_NUM] = out2 * bn_scale + bn_shift

        # (4) simple_conv2 + per-molecule sum (sum_axis) as a segment matmul
        cfin = (4 + n_layers) * CH_NUM
        fea_all = outs_scr[:, 0:cfin]
        h2 = jnp.dot(fea_all, l2_wt_ref[...],
                     preferred_element_type=f32) + l2_b_ref[...]
        out_final = jnp.dot(adj, h2, preferred_element_type=f32)     # (N, ch_num)
        y_mol = jnp.dot(seg_ref[...], out_final, preferred_element_type=f32)

        # (5) fingerprint DNN (bf16 weights, f32 accumulation), staged DMA waits
        cp1.wait()
        hh = jax.nn.relu(jnp.dot(fringer_ref[...].astype(bf16), d1w_vmem[...],
                                 preferred_element_type=f32) + d1b_ref[...])
        cp2.wait()
        hh = jax.nn.relu(jnp.dot(hh.astype(bf16), d2w_vmem[...],
                                 preferred_element_type=f32) + d2b_ref[...])
        cp3.wait()
        fdnn = jnp.dot(hh.astype(bf16), d3w_vmem[...],
                       preferred_element_type=f32) + d3b_ref[...]

        # (6) predict_property on concat([y_mol, fdnn])
        o_ref[...] = (jnp.dot(y_mol, pw_mol_ref[...], preferred_element_type=f32)
                      + jnp.dot(fdnn, pw_fp_ref[...], preferred_element_type=f32)
                      + pb_ref[...])

    return kernel


def c_sgen_forward(features, normed_adj, fringer, seg, params, k, n_layers):
    """One fused pallas_call implementing the whole C_SGEN forward.

    NOTE: the kernel exploits normed_adj == normed_adj.T (true for the
    sym-normalized block-diagonal adjacency this model builds)."""
    kernel = _make_fused_kernel(k, n_layers)

    # zero-pad fingerprint to 256 lanes (unmasked DNN tiles; result unchanged)
    fringer_pad = jnp.pad(fringer, ((0, 0), (0, FP_PAD - fringer.shape[1])))

    vmem_args = [normed_adj, features, params['l1_wt'], params['l1_b']]
    for l in range(n_layers):
        c = params['csgel'][l]
        vmem_args += [c['shifts'], c['scales'], c['bsp_row'],
                      c['w1big'], c['b1t'], c['w2stk'], c['b2']]
    vmem_args += [params['bn_scale'], params['bn_shift'],
                  params['l2_wt'], params['l2_b'],
                  seg, fringer_pad,
                  params['d1_b'], params['d2_b'], params['d3_b'],
                  params['pw_mol'], params['pw_fp'], params['pb']]
    # DNN weights stay in HBM (pl.ANY) and are DMA'd manually inside the kernel.
    any_args = [params['d1_wt'], params['d2_wt'], params['d3_wt']]

    in_specs = ([pl.BlockSpec(memory_space=VMEM)] * len(vmem_args)
                + [pl.BlockSpec(memory_space=pl.ANY)] * len(any_args))

    n_total = normed_adj.shape[0]
    cfin = (4 + n_layers) * CH_NUM

    return pl.pallas_call(
        kernel,
        out_shape=jax.ShapeDtypeStruct((seg.shape[0], 1), jnp.float32),
        in_specs=in_specs,
        out_specs=pl.BlockSpec(memory_space=VMEM),
        scratch_shapes=[
            pltpu.VMEM((n_total, cfin), jnp.float32),        # running feature slab
            pltpu.VMEM(params['d1_wt'].shape, jnp.bfloat16),
            pltpu.VMEM(params['d2_wt'].shape, jnp.bfloat16),
            pltpu.VMEM(params['d3_wt'].shape, jnp.bfloat16),
            pltpu.SemaphoreType.DMA((3,)),
        ],
        # total footprint ~3 MiB; no grid/tiling needed on any TPU generation
        compiler_params=pltpu.CompilerParams(vmem_limit_bytes=32 * 1024 * 1024),
    )(*vmem_args, *any_args)


# --------------------------------------------------------------------------
# Parameter initialization (deterministic, torch-default-like uniform init).
# All per-forward transposes / repackings are done here, once.
# --------------------------------------------------------------------------
def _linear_init(key, out_f, in_f):
    k1, k2 = jax.random.split(key)
    bound = 1.0 / (in_f ** 0.5)
    w = jax.random.uniform(k1, (out_f, in_f), jnp.float32, -bound, bound)
    b = jax.random.uniform(k2, (out_f,), jnp.float32, -bound, bound)
    return w, b


def _conv1d_init(key, out_c, in_c, ksz):
    k1, k2 = jax.random.split(key)
    bound = 1.0 / ((in_c * ksz) ** 0.5)
    w = jax.random.uniform(k1, (out_c, in_c, ksz), jnp.float32, -bound, bound)
    b = jax.random.uniform(k2, (out_c,), jnp.float32, -bound, bound)
    return w, b


def init_params(key, k, n_layers):
    K1 = (k + 1) // 2 + 1
    K2 = k // 2 + 1
    L1 = (1 + k) - K1 + 1            # always == K2 (valid conv -> length 1 after conv_b)
    keys = jax.random.split(key, 7 + 2 * n_layers)
    it = iter(keys)

    p = {}
    raw = {}

    w, b = _linear_init(next(it), 4 * CH_NUM, 75)
    raw['l1_w'], raw['l1_b'] = w, b
    p['l1_wt'], p['l1_b'] = w.T, b.reshape(1, -1)

    w, b = _linear_init(next(it), CH_NUM, (4 + n_layers) * CH_NUM)
    raw['l2_w'], raw['l2_b'] = w, b
    p['l2_wt'], p['l2_b'] = w.T, b.reshape(1, -1)

    w, b = _linear_init(next(it), 1, CH_NUM + FINGERPRINT_SIZE)
    raw['pred_w'], raw['pred_b'] = w, b
    p['pw_mol'] = w[:, :CH_NUM].T                             # (ch_num, 1)
    p['pw_fp'] = jnp.pad(w[:, CH_NUM:].T,
                         ((0, FP_PAD - FINGERPRINT_SIZE), (0, 0)))   # (256, 1)
    p['pb'] = b.reshape(1, 1)

    # fingerprint DNN weights: pre-transposed, zero-padded 198->256, stored bf16
    w, b = _linear_init(next(it), 512, FINGERPRINT_SIZE)
    raw['d1_w'], raw['d1_b'] = w, b
    p['d1_wt'] = jnp.pad(w.T, ((0, FP_PAD - FINGERPRINT_SIZE), (0, 0))
                         ).astype(jnp.bfloat16)               # (256, 512)
    p['d1_b'] = b.reshape(1, -1)
    w, b = _linear_init(next(it), 1024, 512)
    raw['d2_w'], raw['d2_b'] = w, b
    p['d2_wt'] = w.T.astype(jnp.bfloat16)                     # (512, 1024)
    p['d2_b'] = b.reshape(1, -1)
    w, b = _linear_init(next(it), FINGERPRINT_SIZE, 1024)
    raw['d3_w'], raw['d3_b'] = w, b
    p['d3_wt'] = jnp.pad(w.T, ((0, 0), (0, FP_PAD - FINGERPRINT_SIZE))
                         ).astype(jnp.bfloat16)               # (1024, 256)
    p['d3_b'] = jnp.pad(b, (0, FP_PAD - FINGERPRINT_SIZE)).reshape(1, -1)

    # BatchNorm1d(ch_num), eval mode with default running stats.
    eps = 1e-5
    gamma = jnp.ones((CH_NUM,), jnp.float32)
    beta = jnp.zeros((CH_NUM,), jnp.float32)
    run_mean = jnp.zeros((CH_NUM,), jnp.float32)
    run_var = jnp.ones((CH_NUM,), jnp.float32)
    bn_scale = gamma / jnp.sqrt(run_var + eps)
    bn_shift = beta - run_mean * bn_scale
    raw['bn_scale'], raw['bn_shift'] = bn_scale, bn_shift
    p['bn_scale'] = bn_scale.reshape(1, -1)
    p['bn_shift'] = bn_shift.reshape(1, -1)

    # shared spatial graph conv: Conv1d(batch*maxNumAtoms, k, 3, padding=1)
    wsp, bsp = _conv1d_init(next(it), k, N_TOTAL, 3)          # (k, N, 3), (k,)
    raw['wsp'], raw['bsp'] = wsp, bsp

    raw['csgel'] = []
    p['csgel'] = []
    for l in range(n_layers):
        cin = (4 + l) * CH_NUM
        cmid = (5 + l) * CH_NUM // 2
        w1, b1 = _conv1d_init(next(it), cmid, cin, K1)
        w2, b2 = _conv1d_init(next(it), CH_NUM, cmid, K2)
        raw['csgel'].append(dict(w1=w1, b1=b1, w2=w2, b2=b2))

        # conv1d_a as one banded block matmul over the (1+k)-long plane axis:
        # W1_big[p*Cin + c, q*Cmid + m] = w1[m, c, p - q]  for 0 <= p-q < K1
        w1big = jnp.zeros(((1 + k) * cin, L1 * cmid), jnp.float32)
        for q in range(L1):
            for t in range(K1):
                w1big = w1big.at[(q + t) * cin:(q + t + 1) * cin,
                                 q * cmid:(q + 1) * cmid].set(w1[:, :, t].T)
        b1t = jnp.tile(b1, (L1,)).reshape(1, -1)
        # conv1d_b as one stacked-tap matmul (output length 1)
        w2stk = jnp.concatenate([w2[:, :, t].T for t in range(K2)], axis=0)

        # lane-tiled +-1 shift matrices: fea @ shifts[t] gives the k-tiled shifted
        # feature slab in one dot (zero at block boundaries).
        sh0 = jnp.eye(cin, k=1, dtype=jnp.float32)     # fea @ sh0 == fea[:, c-1]
        sh2 = jnp.eye(cin, k=-1, dtype=jnp.float32)    # fea @ sh2 == fea[:, c+1]
        shifts = jnp.stack([jnp.tile(sh0, (1, k)),
                            jnp.tile(sh2, (1, k))], axis=0)   # (2, cin, k*cin)

        # per-tap scale slabs with the k output channels on the LANE axis:
        #   scales[t][i, o*cin + c] = Wsp[o, i, t]
        scales = jnp.stack(
            [jnp.repeat(wsp[:, :, t], cin, axis=0).T for t in range(3)],
            axis=0)                                           # (3, N, k*cin)
        bsp_row = jnp.repeat(bsp, cin).reshape(1, -1)         # (1, k*cin)

        p['csgel'].append(dict(shifts=shifts, scales=scales, bsp_row=bsp_row,
                               w1big=w1big, b1t=b1t, w2stk=w2stk,
                               b2=b2.reshape(1, -1)))
    return p, raw


# --------------------------------------------------------------------------
# Pure-JAX reference (mirrors the PyTorch forward op-for-op).
# dnn_bf16=True mirrors the kernel's bf16 DNN weights (strict structural check);
# dnn_bf16=False is the full-f32 PyTorch-semantics reference (accuracy sign-off).
# --------------------------------------------------------------------------
def reference_forward(features, adj, fringer, seg, raw, k, n_layers, dnn_bf16):
    f32 = jnp.float32
    K1 = (k + 1) // 2 + 1
    K2 = k // 2 + 1
    L1 = (1 + k) - K1 + 1

    h = features @ raw['l1_w'].T + raw['l1_b']
    outs = adj @ h
    wsp, bsp = raw['wsp'], raw['bsp']
    for l in range(n_layers):
        fea = outs
        n, _ = fea.shape
        zero = jnp.zeros((n, 1), f32)
        fea_sh = [jnp.concatenate([zero, fea[:, :-1]], axis=1), fea,
                  jnp.concatenate([fea[:, 1:], zero], axis=1)]
        planes = [fea]
        for o in range(k):
            g = sum(wsp[o, :, t][:, None] * fea_sh[t] for t in range(3))
            planes.append(adj.T @ g + bsp[o])
        w1, b1 = raw['csgel'][l]['w1'], raw['csgel'][l]['b1']
        w2, b2 = raw['csgel'][l]['w2'], raw['csgel'][l]['b2']
        out1 = []
        for q in range(L1):
            acc = b1[None, :]
            for t in range(K1):
                acc = acc + planes[q + t] @ w1[:, :, t].T
            out1.append(jax.nn.relu(acc))
        acc2 = b2[None, :]
        for t in range(K2):
            acc2 = acc2 + out1[t] @ w2[:, :, t].T
        out2 = jax.nn.relu(acc2)
        cur = out2 * raw['bn_scale'][None, :] + raw['bn_shift'][None, :]
        outs = jnp.concatenate([outs, cur], axis=1)

    out_final = adj @ (outs @ raw['l2_w'].T + raw['l2_b'])
    y_mol = seg @ out_final

    if dnn_bf16:
        def mm(x, w):
            return jnp.dot(x.astype(jnp.bfloat16), w.T.astype(jnp.bfloat16),
                           preferred_element_type=f32)
    else:
        def mm(x, w):
            return jnp.dot(x, w.T, preferred_element_type=f32)

    hh = jax.nn.relu(mm(fringer, raw['d1_w']) + raw['d1_b'])
    hh = jax.nn.relu(mm(hh, raw['d2_w']) + raw['d2_b'])
    fdnn = mm(hh, raw['d3_w']) + raw['d3_b']

    y = jnp.concatenate([y_mol, fdnn], axis=1)
    return y @ raw['pred_w'].T + raw['pred_b'][None, :]


# --------------------------------------------------------------------------
if __name__ == "__main__":
    key = jax.random.PRNGKey(0)
    k_feat, k_adj, k_fp, k_par = jax.random.split(key, 4)

    # node features: BATCH molecules, each with MAX_NUM_ATOMS atoms of 75 features
    features = jax.random.normal(k_feat, (N_TOTAL, 75), jnp.float32)

    # per-molecule symmetric normalized adjacency, block-diagonal over the batch
    a = jax.random.uniform(k_adj, (BATCH, MAX_NUM_ATOMS, MAX_NUM_ATOMS), jnp.float32)
    a = 0.5 * (a + jnp.transpose(a, (0, 2, 1))) + jnp.eye(MAX_NUM_ATOMS)[None]
    d_inv_sqrt = 1.0 / jnp.sqrt(a.sum(axis=-1))
    a_norm = d_inv_sqrt[:, :, None] * a * d_inv_sqrt[:, None, :]
    normed_adj = jax.scipy.linalg.block_diag(*[a_norm[i] for i in range(BATCH)])

    # the kernel uses adj == adj.T for the spatial conv; verify it holds here
    assert bool(jnp.allclose(normed_adj, normed_adj.T, atol=1e-5))

    # molecular fingerprints
    fringer = jax.random.normal(k_fp, (BATCH, FINGERPRINT_SIZE), jnp.float32)

    # segment-sum matrix implementing sum_axis (each molecule has MAX_NUM_ATOMS atoms)
    seg = jnp.repeat(jnp.eye(BATCH, dtype=jnp.float32), MAX_NUM_ATOMS, axis=1)

    params, raw = init_params(k_par, K, C_SGEN_LAYERS)

    z = c_sgen_forward(features, normed_adj, fringer, seg, params, K, C_SGEN_LAYERS)
    z = jax.block_until_ready(z)
    assert z.shape == (BATCH, 1) and z.dtype == jnp.float32

    # strict structural check: reference mirroring the kernel's bf16 DNN weights
    z_bf = reference_forward(features, normed_adj, fringer, seg,
                             raw, K, C_SGEN_LAYERS, dnn_bf16=True)
    z_bf = jax.block_until_ready(z_bf)
    err_bf = float(jnp.max(jnp.abs(z - z_bf)))
    assert err_bf < 5e-2, f"kernel vs bf16-DNN reference mismatch: {err_bf}"

    # accuracy sign-off: full-f32 reference (true PyTorch semantics)
    z_f32 = reference_forward(features, normed_adj, fringer, seg,
                              raw, K, C_SGEN_LAYERS, dnn_bf16=False)
    z_f32 = jax.block_until_ready(z_f32)
    err_f32 = float(jnp.max(jnp.abs(z - z_f32)))
    assert err_f32 < 1e-1, f"kernel vs f32 reference mismatch: {err_f32}"

    print("KERNEL_OK")
</pallas_src>

<mosaic_0001>
module attributes {stable_mosaic.version = 11 : i64} {
  func.func @kernel(%arg0: memref<16x16xf32, #tpu.memory_space<vmem>>, %arg1: memref<16x75xf32, #tpu.memory_space<vmem>>, %arg2: memref<75x16xf32, #tpu.memory_space<vmem>>, %arg3: memref<1x16xf32, #tpu.memory_space<vmem>>, %arg4: memref<2x16x64xf32, #tpu.memory_space<vmem>>, %arg5: memref<3x16x64xf32, #tpu.memory_space<vmem>>, %arg6: memref<1x64xf32, #tpu.memory_space<vmem>>, %arg7: memref<80x30xf32, #tpu.memory_space<vmem>>, %arg8: memref<1x30xf32, #tpu.memory_space<vmem>>, %arg9: memref<30x4xf32, #tpu.memory_space<vmem>>, %arg10: memref<1x4xf32, #tpu.memory_space<vmem>>, %arg11: memref<2x20x80xf32, #tpu.memory_space<vmem>>, %arg12: memref<3x16x80xf32, #tpu.memory_space<vmem>>, %arg13: memref<1x80xf32, #tpu.memory_space<vmem>>, %arg14: memref<100x36xf32, #tpu.memory_space<vmem>>, %arg15: memref<1x36xf32, #tpu.memory_space<vmem>>, %arg16: memref<36x4xf32, #tpu.memory_space<vmem>>, %arg17: memref<1x4xf32, #tpu.memory_space<vmem>>, %arg18: memref<1x4xf32, #tpu.memory_space<vmem>>, %arg19: memref<1x4xf32, #tpu.memory_space<vmem>>, %arg20: memref<24x4xf32, #tpu.memory_space<vmem>>, %arg21: memref<1x4xf32, #tpu.memory_space<vmem>>, %arg22: memref<2x16xf32, #tpu.memory_space<vmem>>, %arg23: memref<2x256xf32, #tpu.memory_space<vmem>>, %arg24: memref<1x512xf32, #tpu.memory_space<vmem>>, %arg25: memref<1x1024xf32, #tpu.memory_space<vmem>>, %arg26: memref<1x256xf32, #tpu.memory_space<vmem>>, %arg27: memref<4x1xf32, #tpu.memory_space<vmem>>, %arg28: memref<256x1xf32, #tpu.memory_space<vmem>>, %arg29: memref<1x1xf32, #tpu.memory_space<vmem>>, %arg30: memref<256x512xbf16, #tpu.memory_space<any>>, %arg31: memref<512x1024xbf16, #tpu.memory_space<any>>, %arg32: memref<1024x256xbf16, #tpu.memory_space<any>>, %arg33: memref<2x1xf32, #tpu.memory_space<vmem>>, %arg34: memref<16x24xf32, #tpu.memory_space<vmem>>, %arg35: memref<256x512xbf16, #tpu.memory_space<vmem>>, %arg36: memref<512x1024xbf16, #tpu.memory_space<vmem>>, %arg37: memref<1024x256xbf16, #tpu.memory_space<vmem>>, %arg38: memref<3x!tpu.dma_semaphore, #tpu.memory_space<semaphore_mem>>) attributes {dimension_semantics = [], scalar_prefetch = 0 : i64, scratch_operands = 5 : i64, tpu.core_type = #tpu.core_type<tc>} {
    %c0_i32 = arith.constant 0 : i32
    %0 = tpu.memref_slice %arg38[%c0_i32] : memref<3x!tpu.dma_semaphore, #tpu.memory_space<semaphore_mem>> -> memref<1x!tpu.dma_semaphore, #tpu.memory_space<semaphore_mem>>
    %1 = tpu.memref_squeeze %0 : memref<1x!tpu.dma_semaphore, #tpu.memory_space<semaphore_mem>> -> memref<!tpu.dma_semaphore, #tpu.memory_space<semaphore_mem>>
    tpu.enqueue_dma source(%arg30 : memref<256x512xbf16, #tpu.memory_space<any>>) target(%arg35 : memref<256x512xbf16, #tpu.memory_space<vmem>>) target_semaphore(%1 : memref<!tpu.dma_semaphore, #tpu.memory_space<semaphore_mem>>)
    %c1_i32 = arith.constant 1 : i32
    %2 = tpu.memref_slice %arg38[%c1_i32] : memref<3x!tpu.dma_semaphore, #tpu.memory_space<semaphore_mem>> -> memref<1x!tpu.dma_semaphore, #tpu.memory_space<semaphore_mem>>
    %3 = tpu.memref_squeeze %2 : memref<1x!tpu.dma_semaphore, #tpu.memory_space<semaphore_mem>> -> memref<!tpu.dma_semaphore, #tpu.memory_space<semaphore_mem>>
    tpu.enqueue_dma source(%arg31 : memref<512x1024xbf16, #tpu.memory_space<any>>) target(%arg36 : memref<512x1024xbf16, #tpu.memory_space<vmem>>) target_semaphore(%3 : memref<!tpu.dma_semaphore, #tpu.memory_space<semaphore_mem>>)
    %c2_i32 = arith.constant 2 : i32
    %4 = tpu.memref_slice %arg38[%c2_i32] : memref<3x!tpu.dma_semaphore, #tpu.memory_space<semaphore_mem>> -> memref<1x!tpu.dma_semaphore, #tpu.memory_space<semaphore_mem>>
    %5 = tpu.memref_squeeze %4 : memref<1x!tpu.dma_semaphore, #tpu.memory_space<semaphore_mem>> -> memref<!tpu.dma_semaphore, #tpu.memory_space<semaphore_mem>>
    tpu.enqueue_dma source(%arg32 : memref<1024x256xbf16, #tpu.memory_space<any>>) target(%arg37 : memref<1024x256xbf16, #tpu.memory_space<vmem>>) target_semaphore(%5 : memref<!tpu.dma_semaphore, #tpu.memory_space<semaphore_mem>>)
    %c0 = arith.constant 0 : index
    %c0_0 = arith.constant 0 : index
    %6 = vector.load %arg0[%c0, %c0_0] : memref<16x16xf32, #tpu.memory_space<vmem>>, vector<16x16xf32>
    %c0_1 = arith.constant 0 : index
    %c0_2 = arith.constant 0 : index
    %7 = vector.load %arg18[%c0_1, %c0_2] : memref<1x4xf32, #tpu.memory_space<vmem>>, vector<1x4xf32>
    %c0_3 = arith.constant 0 : index
    %c0_4 = arith.constant 0 : index
    %8 = vector.load %arg19[%c0_3, %c0_4] : memref<1x4xf32, #tpu.memory_space<vmem>>, vector<1x4xf32>
    %c0_5 = arith.constant 0 : index
    %c0_6 = arith.constant 0 : index
    %9 = vector.load %arg1[%c0_5, %c0_6] : memref<16x75xf32, #tpu.memory_space<vmem>>, vector<16x75xf32>
    %c0_7 = arith.constant 0 : index
    %c0_8 = arith.constant 0 : index
    %10 = vector.load %arg2[%c0_7, %c0_8] : memref<75x16xf32, #tpu.memory_space<vmem>>, vector<75x16xf32>
    %cst = arith.constant dense<0.000000e+00> : vector<16x16xf32>
    %11 = tpu.matmul %9, %10, %cst {dimension_numbers = #tpu.dot_dimension_numbers<[1], [0], [0], [1], [0, 0, 1, 1], [], []>} : vector<16x75xf32>, vector<75x16xf32>, vector<16x16xf32> -> vector<16x16xf32>
    %c0_9 = arith.constant 0 : index
    %c0_10 = arith.constant 0 : index
    %12 = vector.load %arg3[%c0_9, %c0_10] : memref<1x16xf32, #tpu.memory_space<vmem>>, vector<1x16xf32>
    %13 = vector.broadcast %12 : vector<1x16xf32> to vector<16x16xf32>
    %14 = arith.addf %11, %13 : vector<16x16xf32>
    %cst_11 = arith.constant dense<0.000000e+00> : vector<16x16xf32>
    %15 = tpu.matmul %6, %14, %cst_11 {dimension_numbers = #tpu.dot_dimension_numbers<[1], [0], [0], [1], [0, 0, 1, 1], [], []>} : vector<16x16xf32>, vector<16x16xf32>, vector<16x16xf32> -> vector<16x16xf32>
    %c0_12 = arith.constant 0 : index
    %c0_13 = arith.constant 0 : index
    %16 = vector.load %arg34[%c0_12, %c0_13] : memref<16x24xf32, #tpu.memory_space<vmem>>, vector<16x16xf32>
    tpu.vector_store %arg34[%c0_12, %c0_13], %15 {strides = array<i32>} : memref<16x24xf32, #tpu.memory_space<vmem>>, vector<16x16xf32>,
    %c0_14 = arith.constant 0 : index
    %c0_15 = arith.constant 0 : index
    %17 = vector.load %arg34[%c0_14, %c0_15] : memref<16x24xf32, #tpu.memory_space<vmem>>, vector<16x16xf32>
    %18 = tpu.concatenate %17, %17, %17, %17 in 1 : vector<16x16xf32>, vector<16x16xf32>, vector<16x16xf32>, vector<16x16xf32> -> vector<16x64xf32>
    %c0_16 = arith.constant 0 : index
    %c0_17 = arith.constant 0 : index
    %c0_18 = arith.constant 0 : index
    %19 = vector.load %arg4[%c0_16, %c0_17, %c0_18] : memref<2x16x64xf32, #tpu.memory_space<vmem>>, vector<1x16x64xf32>
    %20 = vector.shape_cast %19 : vector<1x16x64xf32> to vector<16x64xf32>
    %cst_19 = arith.constant dense<0.000000e+00> : vector<16x64xf32>
    %21 = tpu.matmul %17, %20, %cst_19 {dimension_numbers = #tpu.dot_dimension_numbers<[1], [0], [0], [1], [0, 0, 1, 1], [], []>} : vector<16x16xf32>, vector<16x64xf32>, vector<16x64xf32> -> vector<16x64xf32>
    %c1 = arith.constant 1 : index
    %c0_20 = arith.constant 0 : index
    %c0_21 = arith.constant 0 : index
    %22 = vector.load %arg4[%c1, %c0_20, %c0_21] : memref<2x16x64xf32, #tpu.memory_space<vmem>>, vector<1x16x64xf32>
    %23 = vector.shape_cast %22 : vector<1x16x64xf32> to vector<16x64xf32>
    %cst_22 = arith.constant dense<0.000000e+00> : vector<16x64xf32>
    %24 = tpu.matmul %17, %23, %cst_22 {dimension_numbers = #tpu.dot_dimension_numbers<[1], [0], [0], [1], [0, 0, 1, 1], [], []>} : vector<16x16xf32>, vector<16x64xf32>, vector<16x64xf32> -> vector<16x64xf32>
    %c0_23 = arith.constant 0 : index
    %c0_24 = arith.constant 0 : index
    %c0_25 = arith.constant 0 : index
    %25 = vector.load %arg5[%c0_23, %c0_24, %c0_25] : memref<3x16x64xf32, #tpu.memory_space<vmem>>, vector<1x16x64xf32>
    %26 = vector.shape_cast %25 : vector<1x16x64xf32> to vector<16x64xf32>
    %27 = arith.mulf %26, %21 : vector<16x64xf32>
    %c1_26 = arith.constant 1 : index
    %c0_27 = arith.constant 0 : index
    %c0_28 = arith.constant 0 : index
    %28 = vector.load %arg5[%c1_26, %c0_27, %c0_28] : memref<3x16x64xf32, #tpu.memory_space<vmem>>, vector<1x16x64xf32>
    %29 = vector.shape_cast %28 : vector<1x16x64xf32> to vector<16x64xf32>
    %30 = arith.mulf %29, %18 : vector<16x64xf32>
    %31 = arith.addf %27, %30 : vector<16x64xf32>
    %c2 = arith.constant 2 : index
    %c0_29 = arith.constant 0 : index
    %c0_30 = arith.constant 0 : index
    %32 = vector.load %arg5[%c2, %c0_29, %c0_30] : memref<3x16x64xf32, #tpu.memory_space<vmem>>, vector<1x16x64xf32>
    %33 = vector.shape_cast %32 : vector<1x16x64xf32> to vector<16x64xf32>
    %34 = arith.mulf %33, %24 : vector<16x64xf32>
    %35 = arith.addf %31, %34 : vector<16x64xf32>
    %cst_31 = arith.constant dense<0.000000e+00> : vector<16x64xf32>
    %36 = tpu.matmul %6, %35, %cst_31 {dimension_numbers = #tpu.dot_dimension_numbers<[1], [0], [0], [1], [0, 0, 1, 1], [], []>} : vector<16x16xf32>, vector<16x64xf32>, vector<16x64xf32> -> vector<16x64xf32>
    %c0_32 = arith.constant 0 : index
    %c0_33 = arith.constant 0 : index
    %37 = vector.load %arg6[%c0_32, %c0_33] : memref<1x64xf32, #tpu.memory_space<vmem>>, vector<1x64xf32>
    %38 = vector.broadcast %37 : vector<1x64xf32> to vector<16x64xf32>
    %39 = arith.addf %36, %38 : vector<16x64xf32>
    %40 = tpu.concatenate %17, %39 in 1 : vector<16x16xf32>, vector<16x64xf32> -> vector<16x80xf32>
    %c0_34 = arith.constant 0 : index
    %c0_35 = arith.constant 0 : index
    %41 = vector.load %arg7[%c0_34, %c0_35] : memref<80x30xf32, #tpu.memory_space<vmem>>, vector<80x30xf32>
    %cst_36 = arith.constant dense<0.000000e+00> : vector<16x30xf32>
    %42 = tpu.matmul %40, %41, %cst_36 {dimension_numbers = #tpu.dot_dimension_numbers<[1], [0], [0], [1], [0, 0, 1, 1], [], []>} : vector<16x80xf32>, vector<80x30xf32>, vector<16x30xf32> -> vector<16x30xf32>
    %c0_37 = arith.constant 0 : index
    %c0_38 = arith.constant 0 : index
    %43 = vector.load %arg8[%c0_37, %c0_38] : memref<1x30xf32, #tpu.memory_space<vmem>>, vector<1x30xf32>
    %44 = vector.broadcast %43 : vector<1x30xf32> to vector<16x30xf32>
    %45 = arith.addf %42, %44 : vector<16x30xf32>
    %cst_39 = arith.constant 0.000000e+00 : f32
    %46 = vector.broadcast %cst_39 : f32 to vector<16x30xf32>
    %47 = arith.maximumf %45, %46 : vector<16x30xf32>
    %c0_40 = arith.constant 0 : index
    %c0_41 = arith.constant 0 : index
    %48 = vector.load %arg9[%c0_40, %c0_41] : memref<30x4xf32, #tpu.memory_space<vmem>>, vector<30x4xf32>
    %cst_42 = arith.constant dense<0.000000e+00> : vector<16x4xf32>
    %49 = tpu.matmul %47, %48, %cst_42 {dimension_numbers = #tpu.dot_dimension_numbers<[1], [0], [0], [1], [0, 0, 1, 1], [], []>} : vector<16x30xf32>, vector<30x4xf32>, vector<16x4xf32> -> vector<16x4xf32>
    %c0_43 = arith.constant 0 : index
    %c0_44 = arith.constant 0 : index
    %50 = vector.load %arg10[%c0_43, %c0_44] : memref<1x4xf32, #tpu.memory_space<vmem>>, vector<1x4xf32>
    %51 = vector.broadcast %50 : vector<1x4xf32> to vector<16x4xf32>
    %52 = arith.addf %49, %51 : vector<16x4xf32>
    %cst_45 = arith.constant 0.000000e+00 : f32
    %53 = vector.broadcast %cst_45 : f32 to vector<16x4xf32>
    %54 = arith.maximumf %52, %53 : vector<16x4xf32>
    %55 = vector.broadcast %7 : vector<1x4xf32> to vector<16x4xf32>
    %56 = arith.mulf %54, %55 : vector<16x4xf32>
    %57 = vector.broadcast %8 : vector<1x4xf32> to vector<16x4xf32>
    %58 = arith.addf %56, %57 : vector<16x4xf32>
    %c0_46 = arith.constant 0 : index
    %c16 = arith.constant 16 : index
    %59 = vector.load %arg34[%c0_46, %c16] : memref<16x24xf32, #tpu.memory_space<vmem>>, vector<16x4xf32>
    tpu.vector_store %arg34[%c0_46, %c16], %58 {strides = array<i32>} : memref<16x24xf32, #tpu.memory_space<vmem>>, vector<16x4xf32>,
    %c0_47 = arith.constant 0 : index
    %c0_48 = arith.constant 0 : index
    %60 = vector.load %arg34[%c0_47, %c0_48] : memref<16x24xf32, #tpu.memory_space<vmem>>, vector<16x20xf32>
    %61 = tpu.concatenate %60, %60, %60, %60 in 1 : vector<16x20xf32>, vector<16x20xf32>, vector<16x20xf32>, vector<16x20xf32> -> vector<16x80xf32>
    %c0_49 = arith.constant 0 : index
    %c0_50 = arith.constant 0 : index
    %c0_51 = arith.constant 0 : index
    %62 = vector.load %arg11[%c0_49, %c0_50, %c0_51] : memref<2x20x80xf32, #tpu.memory_space<vmem>>, vector<1x20x80xf32>
    %63 = vector.shape_cast %62 : vector<1x20x80xf32> to vector<20x80xf32>
    %cst_52 = arith.constant dense<0.000000e+00> : vector<16x80xf32>
    %64 = tpu.matmul %60, %63, %cst_52 {dimension_numbers = #tpu.dot_dimension_numbers<[1], [0], [0], [1], [0, 0, 1, 1], [], []>} : vector<16x20xf32>, vector<20x80xf32>, vector<16x80xf32> -> vector<16x80xf32>
    %c1_53 = arith.constant 1 : index
    %c0_54 = arith.constant 0 : index
    %c0_55 = arith.constant 0 : index
    %65 = vector.load %arg11[%c1_53, %c0_54, %c0_55] : memref<2x20x80xf32, #tpu.memory_space<vmem>>, vector<1x20x80xf32>
    %66 = vector.shape_cast %65 : vector<1x20x80xf32> to vector<20x80xf32>
    %cst_56 = arith.constant dense<0.000000e+00> : vector<16x80xf32>
    %67 = tpu.matmul %60, %66, %cst_56 {dimension_numbers = #tpu.dot_dimension_numbers<[1], [0], [0], [1], [0, 0, 1, 1], [], []>} : vector<16x20xf32>, vector<20x80xf32>, vector<16x80xf32> -> vector<16x80xf32>
    %c0_57 = arith.constant 0 : index
    %c0_58 = arith.constant 0 : index
    %c0_59 = arith.constant 0 : index
    %68 = vector.load %arg12[%c0_57, %c0_58, %c0_59] : memref<3x16x80xf32, #tpu.memory_space<vmem>>, vector<1x16x80xf32>
    %69 = vector.shape_cast %68 : vector<1x16x80xf32> to vector<16x80xf32>
    %70 = arith.mulf %69, %64 : vector<16x80xf32>
    %c1_60 = arith.constant 1 : index
    %c0_61 = arith.constant 0 : index
    %c0_62 = arith.constant 0 : index
    %71 = vector.load %arg12[%c1_60, %c0_61, %c0_62] : memref<3x16x80xf32, #tpu.memory_space<vmem>>, vector<1x16x80xf32>
    %72 = vector.shape_cast %71 : vector<1x16x80xf32> to vector<16x80xf32>
    %73 = arith.mulf %72, %61 : vector<16x80xf32>
    %74 = arith.addf %70, %73 : vector<16x80xf32>
    %c2_63 = arith.constant 2 : index
    %c0_64 = arith.constant 0 : index
    %c0_65 = arith.constant 0 : index
    %75 = vector.load %arg12[%c2_63, %c0_64, %c0_65] : memref<3x16x80xf32, #tpu.memory_space<vmem>>, vector<1x16x80xf32>
    %76 = vector.shape_cast %75 : vector<1x16x80xf32> to vector<16x80xf32>
    %77 = arith.mulf %76, %67 : vector<16x80xf32>
    %78 = arith.addf %74, %77 : vector<16x80xf32>
    %cst_66 = arith.constant dense<0.000000e+00> : vector<16x80xf32>
    %79 = tpu.matmul %6, %78, %cst_66 {dimension_numbers = #tpu.dot_dimension_numbers<[1], [0], [0], [1], [0, 0, 1, 1], [], []>} : vector<16x16xf32>, vector<16x80xf32>, vector<16x80xf32> -> vector<16x80xf32>
    %c0_67 = arith.constant 0 : index
    %c0_68 = arith.constant 0 : index
    %80 = vector.load %arg13[%c0_67, %c0_68] : memref<1x80xf32, #tpu.memory_space<vmem>>, vector<1x80xf32>
    %81 = vector.broadcast %80 : vector<1x80xf32> to vector<16x80xf32>
    %82 = arith.addf %79, %81 : vector<16x80xf32>
    %83 = tpu.concatenate %60, %82 in 1 : vector<16x20xf32>, vector<16x80xf32> -> vector<16x100xf32>
    %c0_69 = arith.constant 0 : index
    %c0_70 = arith.constant 0 : index
    %84 = vector.load %arg14[%c0_69, %c0_70] : memref<100x36xf32, #tpu.memory_space<vmem>>, vector<100x36xf32>
    %cst_71 = arith.constant dense<0.000000e+00> : vector<16x36xf32>
    %85 = tpu.matmul %83, %84, %cst_71 {dimension_numbers = #tpu.dot_dimension_numbers<[1], [0], [0], [1], [0, 0, 1, 1], [], []>} : vector<16x100xf32>, vector<100x36xf32>, vector<16x36xf32> -> vector<16x36xf32>
    %c0_72 = arith.constant 0 : index
    %c0_73 = arith.constant 0 : index
    %86 = vector.load %arg15[%c0_72, %c0_73] : memref<1x36xf32, #tpu.memory_space<vmem>>, vector<1x36xf32>
    %87 = vector.broadcast %86 : vector<1x36xf32> to vector<16x36xf32>
    %88 = arith.addf %85, %87 : vector<16x36xf32>
    %cst_74 = arith.constant 0.000000e+00 : f32
    %89 = vector.broadcast %cst_74 : f32 to vector<16x36xf32>
    %90 = arith.maximumf %88, %89 : vector<16x36xf32>
    %c0_75 = arith.constant 0 : index
    %c0_76 = arith.constant 0 : index
    %91 = vector.load %arg16[%c0_75, %c0_76] : memref<36x4xf32, #tpu.memory_space<vmem>>, vector<36x4xf32>
    %cst_77 = arith.constant dense<0.000000e+00> : vector<16x4xf32>
    %92 = tpu.matmul %90, %91, %cst_77 {dimension_numbers = #tpu.dot_dimension_numbers<[1], [0], [0], [1], [0, 0, 1, 1], [], []>} : vector<16x36xf32>, vector<36x4xf32>, vector<16x4xf32> -> vector<16x4xf32>
    %c0_78 = arith.constant 0 : index
    %c0_79 = arith.constant 0 : index
    %93 = vector.load %arg17[%c0_78, %c0_79] : memref<1x4xf32, #tpu.memory_space<vmem>>, vector<1x4xf32>
    %94 = vector.broadcast %93 : vector<1x4xf32> to vector<16x4xf32>
    %95 = arith.addf %92, %94 : vector<16x4xf32>
    %cst_80 = arith.constant 0.000000e+00 : f32
    %96 = vector.broadcast %cst_80 : f32 to vector<16x4xf32>
    %97 = arith.maximumf %95, %96 : vector<16x4xf32>
    %98 = vector.broadcast %7 : vector<1x4xf32> to vector<16x4xf32>
    %99 = arith.mulf %97, %98 : vector<16x4xf32>
    %100 = vector.broadcast %8 : vector<1x4xf32> to vector<16x4xf32>
    %101 = arith.addf %99, %100 : vector<16x4xf32>
    %c0_81 = arith.constant 0 : index
    %c20 = arith.constant 20 : index
    %102 = vector.load %arg34[%c0_81, %c20] : memref<16x24xf32, #tpu.memory_space<vmem>>, vector<16x4xf32>
    tpu.vector_store %arg34[%c0_81, %c20], %101 {strides = array<i32>} : memref<16x24xf32, #tpu.memory_space<vmem>>, vector<16x4xf32>,
    %c0_82 = arith.constant 0 : index
    %c0_83 = arith.constant 0 : index
    %103 = vector.load %arg34[%c0_82, %c0_83] : memref<16x24xf32, #tpu.memory_space<vmem>>, vector<16x24xf32>
    %c0_84 = arith.constant 0 : index
    %c0_85 = arith.constant 0 : index
    %104 = vector.load %arg20[%c0_84, %c0_85] : memref<24x4xf32, #tpu.memory_space<vmem>>, vector<24x4xf32>
    %cst_86 = arith.constant dense<0.000000e+00> : vector<16x4xf32>
    %105 = tpu.matmul %103, %104, %cst_86 {dimension_numbers = #tpu.dot_dimension_numbers<[1], [0], [0], [1], [0, 0, 1, 1], [], []>} : vector<16x24xf32>, vector<24x4xf32>, vector<16x4xf32> -> vector<16x4xf32>
    %c0_87 = arith.constant 0 : index
    %c0_88 = arith.constant 0 : index
    %106 = vector.load %arg21[%c0_87, %c0_88] : memref<1x4xf32, #tpu.memory_space<vmem>>, vector<1x4xf32>
    %107 = vector.broadcast %106 : vector<1x4xf32> to vector<16x4xf32>
    %108 = arith.addf %105, %107 : vector<16x4xf32>
    %cst_89 = arith.constant dense<0.000000e+00> : vector<16x4xf32>
    %109 = tpu.matmul %6, %108, %cst_89 {dimension_numbers = #tpu.dot_dimension_numbers<[1], [0], [0], [1], [0, 0, 1, 1], [], []>} : vector<16x16xf32>, vector<16x4xf32>, vector<16x4xf32> -> vector<16x4xf32>
    %c0_90 = arith.constant 0 : index
    %c0_91 = arith.constant 0 : index
    %110 = vector.load %arg22[%c0_90, %c0_91] : memref<2x16xf32, #tpu.memory_space<vmem>>, vector<2x16xf32>
    %cst_92 = arith.constant dense<0.000000e+00> : vector<2x4xf32>
    %111 = tpu.matmul %110, %109, %cst_92 {dimension_numbers = #tpu.dot_dimension_numbers<[1], [0], [0], [1], [0, 0, 1, 1], [], []>} : vector<2x16xf32>, vector<16x4xf32>, vector<2x4xf32> -> vector<2x4xf32>
    %c0_i32_93 = arith.constant 0 : i32
    %112 = tpu.memref_slice %arg38[%c0_i32_93] : memref<3x!tpu.dma_semaphore, #tpu.memory_space<semaphore_mem>> -> memref<1x!tpu.dma_semaphore, #tpu.memory_space<semaphore_mem>>
    %113 = tpu.memref_squeeze %112 : memref<1x!tpu.dma_semaphore, #tpu.memory_space<semaphore_mem>> -> memref<!tpu.dma_semaphore, #tpu.memory_space<semaphore_mem>>
    tpu.wait_dma2 semaphore(%113 : memref<!tpu.dma_semaphore, #tpu.memory_space<semaphore_mem>>) src(%arg30 : memref<256x512xbf16, #tpu.memory_space<any>>) dst(%arg35 : memref<256x512xbf16, #tpu.memory_space<vmem>>)
    %c0_94 = arith.constant 0 : index
    %c0_95 = arith.constant 0 : index
    %114 = vector.load %arg23[%c0_94, %c0_95] : memref<2x256xf32, #tpu.memory_space<vmem>>, vector<2x256xf32>
    %115 = arith.truncf %114 : vector<2x256xf32> to vector<2x256xbf16>
    %c0_96 = arith.constant 0 : index
    %c0_97 = arith.constant 0 : index
    %116 = vector.load %arg35[%c0_96, %c0_97] : memref<256x512xbf16, #tpu.memory_space<vmem>>, vector<256x512xbf16>
    %cst_98 = arith.constant dense<0.000000e+00> : vector<2x512xf32>
    %117 = tpu.matmul %115, %116, %cst_98 {dimension_numbers = #tpu.dot_dimension_numbers<[1], [0], [0], [1], [0, 0, 1, 1], [], []>} : vector<2x256xbf16>, vector<256x512xbf16>, vector<2x512xf32> -> vector<2x512xf32>
    %c0_99 = arith.constant 0 : index
    %c0_100 = arith.constant 0 : index
    %118 = vector.load %arg24[%c0_99, %c0_100] : memref<1x512xf32, #tpu.memory_space<vmem>>, vector<1x512xf32>
    %119 = vector.broadcast %118 : vector<1x512xf32> to vector<2x512xf32>
    %120 = arith.addf %117, %119 : vector<2x512xf32>
    %cst_101 = arith.constant 0.000000e+00 : f32
    %121 = vector.broadcast %cst_101 : f32 to vector<2x512xf32>
    %122 = arith.maximumf %120, %121 : vector<2x512xf32>
    %c1_i32_102 = arith.constant 1 : i32
    %123 = tpu.memref_slice %arg38[%c1_i32_102] : memref<3x!tpu.dma_semaphore, #tpu.memory_space<semaphore_mem>> -> memref<1x!tpu.dma_semaphore, #tpu.memory_space<semaphore_mem>>
    %124 = tpu.memref_squeeze %123 : memref<1x!tpu.dma_semaphore, #tpu.memory_space<semaphore_mem>> -> memref<!tpu.dma_semaphore, #tpu.memory_space<semaphore_mem>>
    tpu.wait_dma2 semaphore(%124 : memref<!tpu.dma_semaphore, #tpu.memory_space<semaphore_mem>>) src(%arg31 : memref<512x1024xbf16, #tpu.memory_space<any>>) dst(%arg36 : memref<512x1024xbf16, #tpu.memory_space<vmem>>)
    %125 = arith.truncf %122 : vector<2x512xf32> to vector<2x512xbf16>
    %c0_103 = arith.constant 0 : index
    %c0_104 = arith.constant 0 : index
    %126 = vector.load %arg36[%c0_103, %c0_104] : memref<512x1024xbf16, #tpu.memory_space<vmem>>, vector<512x1024xbf16>
    %cst_105 = arith.constant dense<0.000000e+00> : vector<2x1024xf32>
    %127 = tpu.matmul %125, %126, %cst_105 {dimension_numbers = #tpu.dot_dimension_numbers<[1], [0], [0], [1], [0, 0, 1, 1], [], []>} : vector<2x512xbf16>, vector<512x1024xbf16>, vector<2x1024xf32> -> vector<2x1024xf32>
    %c0_106 = arith.constant 0 : index
    %c0_107 = arith.constant 0 : index
    %128 = vector.load %arg25[%c0_106, %c0_107] : memref<1x1024xf32, #tpu.memory_space<vmem>>, vector<1x1024xf32>
    %129 = vector.broadcast %128 : vector<1x1024xf32> to vector<2x1024xf32>
    %130 = arith.addf %127, %129 : vector<2x1024xf32>
    %cst_108 = arith.constant 0.000000e+00 : f32
    %131 = vector.broadcast %cst_108 : f32 to vector<2x1024xf32>
    %132 = arith.maximumf %130, %131 : vector<2x1024xf32>
    %c2_i32_109 = arith.constant 2 : i32
    %133 = tpu.memref_slice %arg38[%c2_i32_109] : memref<3x!tpu.dma_semaphore, #tpu.memory_space<semaphore_mem>> -> memref<1x!tpu.dma_semaphore, #tpu.memory_space<semaphore_mem>>
    %134 = tpu.memref_squeeze %133 : memref<1x!tpu.dma_semaphore, #tpu.memory_space<semaphore_mem>> -> memref<!tpu.dma_semaphore, #tpu.memory_space<semaphore_mem>>
    tpu.wait_dma2 semaphore(%134 : memref<!tpu.dma_semaphore, #tpu.memory_space<semaphore_mem>>) src(%arg32 : memref<1024x256xbf16, #tpu.memory_space<any>>) dst(%arg37 : memref<1024x256xbf16, #tpu.memory_space<vmem>>)
    %135 = arith.truncf %132 : vector<2x1024xf32> to vector<2x1024xbf16>
    %c0_110 = arith.constant 0 : index
    %c0_111 = arith.constant 0 : index
    %136 = vector.load %arg37[%c0_110, %c0_111] : memref<1024x256xbf16, #tpu.memory_space<vmem>>, vector<1024x256xbf16>
    %cst_112 = arith.constant dense<0.000000e+00> : vector<2x256xf32>
    %137 = tpu.matmul %135, %136, %cst_112 {dimension_numbers = #tpu.dot_dimension_numbers<[1], [0], [0], [1], [0, 0, 1, 1], [], []>} : vector<2x1024xbf16>, vector<1024x256xbf16>, vector<2x256xf32> -> vector<2x256xf32>
    %c0_113 = arith.constant 0 : index
    %c0_114 = arith.constant 0 : index
    %138 = vector.load %arg26[%c0_113, %c0_114] : memref<1x256xf32, #tpu.memory_space<vmem>>, vector<1x256xf32>
    %139 = vector.broadcast %138 : vector<1x256xf32> to vector<2x256xf32>
    %140 = arith.addf %137, %139 : vector<2x256xf32>
    %c0_115 = arith.constant 0 : index
    %c0_116 = arith.constant 0 : index
    %141 = vector.load %arg27[%c0_115, %c0_116] : memref<4x1xf32, #tpu.memory_space<vmem>>, vector<4x1xf32>
    %cst_117 = arith.constant dense<0.000000e+00> : vector<2x1xf32>
    %142 = tpu.matmul %111, %141, %cst_117 {dimension_numbers = #tpu.dot_dimension_numbers<[1], [0], [0], [1], [0, 0, 1, 1], [], []>} : vector<2x4xf32>, vector<4x1xf32>, vector<2x1xf32> -> vector<2x1xf32>
    %c0_118 = arith.constant 0 : index
    %c0_119 = arith.constant 0 : index
    %143 = vector.load %arg28[%c0_118, %c0_119] : memref<256x1xf32, #tpu.memory_space<vmem>>, vector<256x1xf32>
    %cst_120 = arith.constant dense<0.000000e+00> : vector<2x1xf32>
    %144 = tpu.matmul %140, %143, %cst_120 {dimension_numbers = #tpu.dot_dimension_numbers<[1], [0], [0], [1], [0, 0, 1, 1], [], []>} : vector<2x256xf32>, vector<256x1xf32>, vector<2x1xf32> -> vector<2x1xf32>
    %145 = arith.addf %142, %144 : vector<2x1xf32>
    %c0_121 = arith.constant 0 : index
    %c0_122 = arith.constant 0 : index
    %146 = vector.load %arg29[%c0_121, %c0_122] : memref<1x1xf32, #tpu.memory_space<vmem>>, vector<1x1xf32>
    %147 = vector.broadcast %146 : vector<1x1xf32> to vector<2x1xf32>
    %148 = arith.addf %145, %147 : vector<2x1xf32>
    %c0_123 = arith.constant 0 : index
    %c0_124 = arith.constant 0 : index
    %149 = vector.load %arg33[%c0_123, %c0_124] : memref<2x1xf32, #tpu.memory_space<vmem>>, vector<2x1xf32>
    tpu.vector_store %arg33[%c0_123, %c0_124], %148 {strides = array<i32>} : memref<2x1xf32, #tpu.memory_space<vmem>>, vector<2x1xf32>,
    return
  }
}

</mosaic_0001>

<llo_original>
// kernel: tpu_custom_call.1
$region0: #{tpu_custom_call.1}
  #allocation0 [shape = 'u32[]', space=smem, size = 0x4, offset = 0x4, fixed_abs, tag = 'smem constant byte address 0x4 - core index']
  #allocation1 [shape = 'u32[144,128]{1,0:T(1,128)}', space=vmem, size = 0x12000, scoped, tag = 'internal scratch']
  #allocation2 [shape = 'f32[16,24]{1,0:T(8,128)}', space=vmem, size = 0x2000, scoped, tag = 'scratch operand']
  #allocation3 [shape = 'bf16[256,512]{1,0:T(16,128)(2,1)}', space=vmem, size = 0x40000, scoped, tag = 'scratch operand']
  #allocation4 [shape = 'bf16[512,1024]{1,0:T(16,128)(2,1)}', space=vmem, size = 0x100000, scoped, tag = 'scratch operand']
  #allocation5 [shape = 'bf16[1024,256]{1,0:T(16,128)(2,1)}', space=vmem, size = 0x80000, scoped, tag = 'scratch operand']
  #allocation6 [shape = 's32[3]{0}', space=sflag, size = 0xc, scoped, tag = 'scratch operand']
  #allocation7 [shape = 'f32[1,1]{1,0:T(1,128)S(1)}', space=vmem, size = 0x200, scoped, tag = 'scoped memory for tpu_custom_call.1']
  #allocation8 [shape = 's32[]', space=sflag, size = 0x4, offset = 0, fixed_abs, tag = 'sflag constant byte address 0x0 - dummy sync flag']
  #allocation9 [shape = 's32[]', space=sflag, size = 0x4, offset = 0, fixed_abs, tag = 'sflag constant byte address 0x0 - dummy sync flag']
  #allocation11 [shape = 's32[]', space=sflag, size = 0x4, offset = 0, fixed_abs, tag = 'sflag constant byte address 0x0 - dummy sync flag']
  %s0 = inlined_call_operand.smem [shape: u32[34], index: -1, kind: input, shape index: {}]
  %s1 = sld [smem:[%s0]]
  %s2 = scalar_lea.smem %s0, 1
  %s3 = sld [smem:[%s2]]
  %s4 = scalar_lea.smem %s0, 2
  %s5 = sld [smem:[%s4]]
  %s6 = scalar_lea.smem %s0, 3
  %s7 = sld [smem:[%s6]]
  %s8 = scalar_lea.smem %s0, 4
  %s9 = sld [smem:[%s8]]
  %s10 = scalar_lea.smem %s0, 5
  %s11 = sld [smem:[%s10]]
  %s12 = scalar_lea.smem %s0, 6
  %s13 = sld [smem:[%s12]]
  %s14 = scalar_lea.smem %s0, 7
  %s15 = sld [smem:[%s14]]
  %s16 = scalar_lea.smem %s0, 8
  %s17 = sld [smem:[%s16]]
  %s18 = scalar_lea.smem %s0, 9
  %s19 = sld [smem:[%s18]]
  %s20 = scalar_lea.smem %s0, 10
  %s21 = sld [smem:[%s20]]
  %s22 = scalar_lea.smem %s0, 11
  %s23 = sld [smem:[%s22]]
  %s24 = scalar_lea.smem %s0, 12
  %s25 = sld [smem:[%s24]]
  %s26 = scalar_lea.smem %s0, 13
  %s27 = sld [smem:[%s26]]
  %s28 = scalar_lea.smem %s0, 14
  %s29 = sld [smem:[%s28]]
  %s30 = scalar_lea.smem %s0, 15
  %s31 = sld [smem:[%s30]]
  %s32 = scalar_lea.smem %s0, 16
  %s33 = sld [smem:[%s32]]
  %s34 = scalar_lea.smem %s0, 17
  %s35 = sld [smem:[%s34]]
  %s36 = scalar_lea.smem %s0, 18
  %s37 = sld [smem:[%s36]]
  %s38 = scalar_lea.smem %s0, 19
  %s39 = sld [smem:[%s38]]
  %s40 = scalar_lea.smem %s0, 20
  %s41 = sld [smem:[%s40]]
  %s42 = scalar_lea.smem %s0, 21
  %s43 = sld [smem:[%s42]]
  %s44 = scalar_lea.smem %s0, 22
  %s45 = sld [smem:[%s44]]
  %s46 = scalar_lea.smem %s0, 23
  %s47 = sld [smem:[%s46]]
  %s48 = scalar_lea.smem %s0, 24
  %s49 = sld [smem:[%s48]]
  %s50 = scalar_lea.smem %s0, 25
  %s51 = sld [smem:[%s50]]
  %s52 = scalar_lea.smem %s0, 26
  %s53 = sld [smem:[%s52]]
  %s54 = scalar_lea.smem %s0, 27
  %s55 = sld [smem:[%s54]]
  %s56 = scalar_lea.smem %s0, 28
  %s57 = sld [smem:[%s56]]
  %s58 = scalar_lea.smem %s0, 29
  %s59 = sld [smem:[%s58]]
  %s60 = scalar_lea.smem %s0, 30
  %s61 = sld [smem:[%s60]]
  %s62 = scalar_lea.smem %s0, 31
  %s63 = sld [smem:[%s62]]
  %s64 = scalar_lea.smem %s0, 32
  %s65 = sld [smem:[%s64]]
  %s66 = scalar_lea.smem %s0, 33
  %s67 = sld [smem:[%s66]]
  %s68 = sld [smem:[#allocation0]]
  $region167: #{tpu_custom_call.1} parent=0
    _
  %s70 = ssub.s32 1, %s68
  %s71 = scalar_select 0, %s70, %s68
  %v72 = vstv %s59
  %73 = vst [vmem:[#allocation7] sm:$0x1] %v72
  $region1: #{tpu_custom_call.1} parent=0
    #allocation10 [shape = 'u32[9]{0}', space=smem, size = 0x24, scoped, tag = 'DMA stride descriptor']
    #allocation12 [shape = 'u32[9]{0}', space=smem, size = 0x24, scoped, tag = 'DMA stride descriptor']
    // Predicated region
    $region2: #{tpu_custom_call.1} parent=1 // pred_check
      _
    $region3: #{tpu_custom_call.1} parent=1 // pred_check_branch
      %75 = sbr.rel (0) target = $region5
    $region4: #{tpu_custom_call.1} parent=1 // pred_region
      _
    $region5: #{tpu_custom_call.1} parent=1 // pred_fallthru
      _
    // Predicated region
    $region6: #{tpu_custom_call.1} parent=1 // pred_check
      _
    $region7: #{tpu_custom_call.1} parent=1 // pred_check_branch
      %77 = sbr.rel (0) target = $region9
    $region8: #{tpu_custom_call.1} parent=1 // pred_region
      _
    $region9: #{tpu_custom_call.1} parent=1 // pred_fallthru
      _
    // Predicated region
    $region10: #{tpu_custom_call.1} parent=1 // pred_check
      _
    $region11: #{tpu_custom_call.1} parent=1 // pred_check_branch
      %79 = sbr.rel (0) target = $region13
    $region12: #{tpu_custom_call.1} parent=1 // pred_region
      _
    $region13: #{tpu_custom_call.1} parent=1 // pred_fallthru
      _
    // Predicated region
    $region14: #{tpu_custom_call.1} parent=1 // pred_check
      _
    $region15: #{tpu_custom_call.1} parent=1 // pred_check_branch
      %81 = sbr.rel (0) target = $region17
    $region16: #{tpu_custom_call.1} parent=1 // pred_region
      _
    $region17: #{tpu_custom_call.1} parent=1 // pred_fallthru
      _
    // Predicated region
    $region18: #{tpu_custom_call.1} parent=1 // pred_check
      _
    $region19: #{tpu_custom_call.1} parent=1 // pred_check_branch
      %83 = sbr.rel (0) target = $region21
    $region20: #{tpu_custom_call.1} parent=1 // pred_region
      _
    $region21: #{tpu_custom_call.1} parent=1 // pred_fallthru
      _
    // Predicated region
    $region22: #{tpu_custom_call.1} parent=1 // pred_check
      _
    $region23: #{tpu_custom_call.1} parent=1 // pred_check_branch
      %85 = sbr.rel (0) target = $region25
    $region24: #{tpu_custom_call.1} parent=1 // pred_region
      _
    $region25: #{tpu_custom_call.1} parent=1 // pred_fallthru
      _
    // Predicated region
    $region26: #{tpu_custom_call.1} parent=1 // pred_check
      _
    $region27: #{tpu_custom_call.1} parent=1 // pred_check_branch
      %87 = sbr.rel (0) target = $region29
    $region28: #{tpu_custom_call.1} parent=1 // pred_region
      _
    $region29: #{tpu_custom_call.1} parent=1 // pred_fallthru
      _
    // Predicated region
    $region30: #{tpu_custom_call.1} parent=1 // pred_check
      _
    $region31: #{tpu_custom_call.1} parent=1 // pred_check_branch
      %89 = sbr.rel (0) target = $region33
    $region32: #{tpu_custom_call.1} parent=1 // pred_region
      _
    $region33: #{tpu_custom_call.1} parent=1 // pred_fallthru
      _
    // Predicated region
    $region34: #{tpu_custom_call.1} parent=1 // pred_check
      _
    $region35: #{tpu_custom_call.1} parent=1 // pred_check_branch
      %91 = sbr.rel (0) target = $region37
    $region36: #{tpu_custom_call.1} parent=1 // pred_region
      _
    $region37: #{tpu_custom_call.1} parent=1 // pred_fallthru
      _
    // Predicated region
    $region38: #{tpu_custom_call.1} parent=1 // pred_check
      _
    $region39: #{tpu_custom_call.1} parent=1 // pred_check_branch
      %93 = sbr.rel (0) target = $region41
    $region40: #{tpu_custom_call.1} parent=1 // pred_region
      _
    $region41: #{tpu_custom_call.1} parent=1 // pred_fallthru
      _
    // Predicated region
    $region42: #{tpu_custom_call.1} parent=1 // pred_check
      _
    $region43: #{tpu_custom_call.1} parent=1 // pred_check_branch
      %95 = sbr.rel (0) target = $region45
    $region44: #{tpu_custom_call.1} parent=1 // pred_region
      _
    $region45: #{tpu_custom_call.1} parent=1 // pred_fallthru
      _
    // Predicated region
    $region46: #{tpu_custom_call.1} parent=1 // pred_check
      _
    $region47: #{tpu_custom_call.1} parent=1 // pred_check_branch
      %97 = sbr.rel (0) target = $region49
    $region48: #{tpu_custom_call.1} parent=1 // pred_region
      _
    $region49: #{tpu_custom_call.1} parent=1 // pred_fallthru
      _
    // Predicated region
    $region50: #{tpu_custom_call.1} parent=1 // pred_check
      _
    $region51: #{tpu_custom_call.1} parent=1 // pred_check_branch
      %99 = sbr.rel (0) target = $region53
    $region52: #{tpu_custom_call.1} parent=1 // pred_region
      _
    $region53: #{tpu_custom_call.1} parent=1 // pred_fallthru
      _
    // Predicated region
    $region54: #{tpu_custom_call.1} parent=1 // pred_check
      _
    $region55: #{tpu_custom_call.1} parent=1 // pred_check_branch
      %101 = sbr.rel (0) target = $region57
    $region56: #{tpu_custom_call.1} parent=1 // pred_region
      _
    $region57: #{tpu_custom_call.1} parent=1 // pred_fallthru
      _
    // Predicated region
    $region58: #{tpu_custom_call.1} parent=1 // pred_check
      _
    $region59: #{tpu_custom_call.1} parent=1 // pred_check_branch
      %103 = sbr.rel (0) target = $region61
    $region60: #{tpu_custom_call.1} parent=1 // pred_region
      _
    $region61: #{tpu_custom_call.1} parent=1 // pred_fallthru
      _
    // Predicated region
    $region62: #{tpu_custom_call.1} parent=1 // pred_check
      _
    $region63: #{tpu_custom_call.1} parent=1 // pred_check_branch
      %105 = sbr.rel (0) target = $region65
    $region64: #{tpu_custom_call.1} parent=1 // pred_region
      _
    $region65: #{tpu_custom_call.1} parent=1 // pred_fallthru
      _
    // Predicated region
    $region66: #{tpu_custom_call.1} parent=1 // pred_check
      _
    $region67: #{tpu_custom_call.1} parent=1 // pred_check_branch
      %107 = sbr.rel (0) target = $region69
    $region68: #{tpu_custom_call.1} parent=1 // pred_region
      _
    $region69: #{tpu_custom_call.1} parent=1 // pred_fallthru
      _
    // Predicated region
    $region70: #{tpu_custom_call.1} parent=1 // pred_check
      _
    $region71: #{tpu_custom_call.1} parent=1 // pred_check_branch
      %109 = sbr.rel (0) target = $region73
    $region72: #{tpu_custom_call.1} parent=1 // pred_region
      _
    $region73: #{tpu_custom_call.1} parent=1 // pred_fallthru
      _
    // Predicated region
    $region74: #{tpu_custom_call.1} parent=1 // pred_check
      _
    $region75: #{tpu_custom_call.1} parent=1 // pred_check_branch
      %111 = sbr.rel (0) target = $region77
    $region76: #{tpu_custom_call.1} parent=1 // pred_region
      _
    $region77: #{tpu_custom_call.1} parent=1 // pred_fallthru
      _
    // Predicated region
    $region78: #{tpu_custom_call.1} parent=1 // pred_check
      _
    $region79: #{tpu_custom_call.1} parent=1 // pred_check_branch
      %113 = sbr.rel (0) target = $region81
    $region80: #{tpu_custom_call.1} parent=1 // pred_region
      _
    $region81: #{tpu_custom_call.1} parent=1 // pred_fallthru
      _
    // Predicated region
    $region82: #{tpu_custom_call.1} parent=1 // pred_check
      _
    $region83: #{tpu_custom_call.1} parent=1 // pred_check_branch
      %115 = sbr.rel (0) target = $region85
    $region84: #{tpu_custom_call.1} parent=1 // pred_region
      _
    $region85: #{tpu_custom_call.1} parent=1 // pred_fallthru
      _
    // Predicated region
    $region86: #{tpu_custom_call.1} parent=1 // pred_check
      _
    $region87: #{tpu_custom_call.1} parent=1 // pred_check_branch
      %117 = sbr.rel (0) target = $region89
    $region88: #{tpu_custom_call.1} parent=1 // pred_region
      _
    $region89: #{tpu_custom_call.1} parent=1 // pred_fallthru
      _
    // Predicated region
    $region90: #{tpu_custom_call.1} parent=1 // pred_check
      _
    $region91: #{tpu_custom_call.1} parent=1 // pred_check_branch
      %119 = sbr.rel (0) target = $region93
    $region92: #{tpu_custom_call.1} parent=1 // pred_region
      _
    $region93: #{tpu_custom_call.1} parent=1 // pred_fallthru
      _
    // Predicated region
    $region94: #{tpu_custom_call.1} parent=1 // pred_check
      _
    $region95: #{tpu_custom_call.1} parent=1 // pred_check_branch
      %121 = sbr.rel (0) target = $region97
    $region96: #{tpu_custom_call.1} parent=1 // pred_region
      _
    $region97: #{tpu_custom_call.1} parent=1 // pred_fallthru
      _
    // Predicated region
    $region98: #{tpu_custom_call.1} parent=1 // pred_check
      _
    $region99: #{tpu_custom_call.1} parent=1 // pred_check_branch
      %123 = sbr.rel (0) target = $region101
    $region100: #{tpu_custom_call.1} parent=1 // pred_region
      _
    $region101: #{tpu_custom_call.1} parent=1 // pred_fallthru
      _
    // Predicated region
    $region102: #{tpu_custom_call.1} parent=1 // pred_check
      _
    $region103: #{tpu_custom_call.1} parent=1 // pred_check_branch
      %125 = sbr.rel (0) target = $region105
    $region104: #{tpu_custom_call.1} parent=1 // pred_region
      _
    $region105: #{tpu_custom_call.1} parent=1 // pred_fallthru
      _
    // Predicated region
    $region106: #{tpu_custom_call.1} parent=1 // pred_check
      _
    $region107: #{tpu_custom_call.1} parent=1 // pred_check_branch
      %127 = sbr.rel (0) target = $region109
    $region108: #{tpu_custom_call.1} parent=1 // pred_region
      _
    $region109: #{tpu_custom_call.1} parent=1 // pred_fallthru
      _
    // Predicated region
    $region110: #{tpu_custom_call.1} parent=1 // pred_check
      _
    $region111: #{tpu_custom_call.1} parent=1 // pred_check_branch
      %129 = sbr.rel (0) target = $region113
    $region112: #{tpu_custom_call.1} parent=1 // pred_region
      _
    $region113: #{tpu_custom_call.1} parent=1 // pred_fallthru
      _
    // Predicated region
    $region114: #{tpu_custom_call.1} parent=1 // pred_check
      _
    $region115: #{tpu_custom_call.1} parent=1 // pred_check_branch
      %131 = sbr.rel (0) target = $region117
    $region116: #{tpu_custom_call.1} parent=1 // pred_region
      _
    $region117: #{tpu_custom_call.1} parent=1 // pred_fallthru
      _
    // Predicated region
    $region118: #{tpu_custom_call.1} parent=1 // pred_check
      _
    $region119: #{tpu_custom_call.1} parent=1 // pred_check_branch
      %133 = sbr.rel (0) target = $region121
    $region120: #{tpu_custom_call.1} parent=1 // pred_region
      _
    $region121: #{tpu_custom_call.1} parent=1 // pred_fallthru
      _
    %p135 = scmp.lt.u32.totalorder 4, 8
    %p136 = pneg %p135
    // Predicated region
    $region122: #{tpu_custom_call.1} parent=1 // pred_check
      _
    $region123: #{tpu_custom_call.1} parent=1 // pred_check_branch
      %138 = sbr.rel (%p135) target = $region125
    $region124: #{tpu_custom_call.1} parent=1 // pred_region
      %s407 = sand.u32 4, 7
      %p408 = scmp.eq.s32.totalorder %s407, 0
      %p409 = pneg %p408
      // Predicated region
      $region137: #{tpu_custom_call.1} parent=124 // pred_check
        _
      $region138: #{tpu_custom_call.1} parent=124 // pred_check_branch
        %411 = sbr.rel (%p408) target = $region140
      $region139: #{tpu_custom_call.1} parent=124 // pred_region
        %s412 = sand.u32 4, 7
        %s413 = ssub.s32 4, %s412
        %s414 = scalar_lea.vmem %s61, %s413
        %s415 = ssub.s32 4, %s412
        %s416 = scalar_lea.vmem [#allocation3], %s415
        loop: start=0, step=1, limit=1
        $region141: #{tpu_custom_call.1} parent=139 // loop_pre_header
          _
        $region142: #{tpu_custom_call.1} parent=139 // loop_header
          %s418 = sphi 0, %s422
          %p419 = scmp.ge.s32.totalorder %s418, 1
          %s423 = sphi %s61, %s61
          %s424 = sphi [#allocation3], [#allocation3]
        $region143: #{tpu_custom_call.1} parent=139 // loop_header_branch
          %421 = sbr.rel (%p419) target = $region147
        $region144: #{tpu_custom_call.1} parent=139 // loop_body
          _
        $region145: #{tpu_custom_call.1} parent=139 // loop_footer
          %s422 = sadd.s32 1, %s418
        $region146: #{tpu_custom_call.1} parent=139 // loop_footer_branch
          %417 = sbr.rel target = $region142
        $region147: #{tpu_custom_call.1} parent=139 // loop_exit
          _
        %s425 = sshllo.u32 0, %s412
        loop: start=0, step=1, limit=1
        $region148: #{tpu_custom_call.1} parent=139 // loop_pre_header
          _
        $region149: #{tpu_custom_call.1} parent=139 // loop_header
          %s427 = sphi 0, %s431
          %p428 = scmp.ge.s32.totalorder %s427, 1
          %s432 = sphi %s414, %s414
          %s433 = sphi %s416, %s416
        $region150: #{tpu_custom_call.1} parent=139 // loop_header_branch
          %430 = sbr.rel (%p428) target = $region154
        $region151: #{tpu_custom_call.1} parent=139 // loop_body
          %v434 = vld [vmem:[%s432] sm:%s425]
          %435 = vst [vmem:[%s433] sm:%s425] %v434
          %v436 = vld [vmem:[%s432 + $0x10] sm:%s425]
          %437 = vst [vmem:[%s433 + $0x4] sm:%s425] %v436
          %v438 = vld [vmem:[%s432 + $0x4] sm:%s425]
          %439 = vst [vmem:[%s433 + $0x8] sm:%s425] %v438
          %v440 = vld [vmem:[%s432 + $0x14] sm:%s425]
          %441 = vst [vmem:[%s433 + $0xc] sm:%s425] %v440
          %v442 = vld [vmem:[%s432 + $0x8] sm:%s425]
          %443 = vst [vmem:[%s433 + $0x10] sm:%s425] %v442
          %v444 = vld [vmem:[%s432 + $0x18] sm:%s425]
          %445 = vst [vmem:[%s433 + $0x14] sm:%s425] %v444
          %v446 = vld [vmem:[%s432 + $0xc] sm:%s425]
          %447 = vst [vmem:[%s433 + $0x18] sm:%s425] %v446
          %v448 = vld [vmem:[%s432 + $0x1c] sm:%s425]
          %449 = vst [vmem:[%s433 + $0x1c] sm:%s425] %v448
          %v450 = vld [vmem:[%s432 + $0x20] sm:%s425]
          %451 = vst [vmem:[%s433 + $0x20] sm:%s425] %v450
          %v452 = vld [vmem:[%s432 + $0x30] sm:%s425]
          %453 = vst [vmem:[%s433 + $0x24] sm:%s425] %v452
          %v454 = vld [vmem:[%s432 + $0x24] sm:%s425]
          %455 = vst [vmem:[%s433 + $0x28] sm:%s425] %v454
          %v456 = vld [vmem:[%s432 + $0x34] sm:%s425]
          %457 = vst [vmem:[%s433 + $0x2c] sm:%s425] %v456
          %v458 = vld [vmem:[%s432 + $0x28] sm:%s425]
          %459 = vst [vmem:[%s433 + $0x30] sm:%s425] %v458
          %v460 = vld [vmem:[%s432 + $0x38] sm:%s425]
          %461 = vst [vmem:[%s433 + $0x34] sm:%s425] %v460
          %v462 = vld [vmem:[%s432 + $0x2c] sm:%s425]
          %463 = vst [vmem:[%s433 + $0x38] sm:%s425] %v462
          %v464 = vld [vmem:[%s432 + $0x3c] sm:%s425]
          %465 = vst [vmem:[%s433 + $0x3c] sm:%s425] %v464
          %v466 = vld [vmem:[%s432 + $0x40] sm:%s425]
          %467 = vst [vmem:[%s433 + $0x40] sm:%s425] %v466
          %v468 = vld [vmem:[%s432 + $0x50] sm:%s425]
          %469 = vst [vmem:[%s433 + $0x44] sm:%s425] %v468
          %v470 = vld [vmem:[%s432 + $0x44] sm:%s425]
          %471 = vst [vmem:[%s433 + $0x48] sm:%s425] %v470
          %v472 = vld [vmem:[%s432 + $0x54] sm:%s425]
          %473 = vst [vmem:[%s433 + $0x4c] sm:%s425] %v472
          %v474 = vld [vmem:[%s432 + $0x48] sm:%s425]
          %475 = vst [vmem:[%s433 + $0x50] sm:%s425] %v474
          %v476 = vld [vmem:[%s432 + $0x58] sm:%s425]
          %477 = vst [vmem:[%s433 + $0x54] sm:%s425] %v476
          %v478 = vld [vmem:[%s432 + $0x4c] sm:%s425]
          %479 = vst [vmem:[%s433 + $0x58] sm:%s425] %v478
          %v480 = vld [vmem:[%s432 + $0x5c] sm:%s425]
          %481 = vst [vmem:[%s433 + $0x5c] sm:%s425] %v480
          %v482 = vld [vmem:[%s432 + $0x60] sm:%s425]
          %483 = vst [vmem:[%s433 + $0x60] sm:%s425] %v482
          %v484 = vld [vmem:[%s432 + $0x70] sm:%s425]
          %485 = vst [vmem:[%s433 + $0x64] sm:%s425] %v484
          %v486 = vld [vmem:[%s432 + $0x64] sm:%s425]
          %487 = vst [vmem:[%s433 + $0x68] sm:%s425] %v486
          %v488 = vld [vmem:[%s432 + $0x74] sm:%s425]
          %489 = vst [vmem:[%s433 + $0x6c] sm:%s425] %v488
          %v490 = vld [vmem:[%s432 + $0x68] sm:%s425]
          %491 = vst [vmem:[%s433 + $0x70] sm:%s425] %v490
          %v492 = vld [vmem:[%s432 + $0x78] sm:%s425]
          %493 = vst [vmem:[%s433 + $0x74] sm:%s425] %v492
          %v494 = vld [vmem:[%s432 + $0x6c] sm:%s425]
          %495 = vst [vmem:[%s433 + $0x78] sm:%s425] %v494
          %v496 = vld [vmem:[%s432 + $0x7c] sm:%s425]
          %497 = vst [vmem:[%s433 + $0x7c] sm:%s425] %v496
          %v498 = vld [vmem:[%s432 + $0x80] sm:%s425]
          %499 = vst [vmem:[%s433 + $0x80] sm:%s425] %v498
          %v500 = vld [vmem:[%s432 + $0x90] sm:%s425]
          %501 = vst [vmem:[%s433 + $0x84] sm:%s425] %v500
          %v502 = vld [vmem:[%s432 + $0x84] sm:%s425]
          %503 = vst [vmem:[%s433 + $0x88] sm:%s425] %v502
          %v504 = vld [vmem:[%s432 + $0x94] sm:%s425]
          %505 = vst [vmem:[%s433 + $0x8c] sm:%s425] %v504
          %v506 = vld [vmem:[%s432 + $0x88] sm:%s425]
          %507 = vst [vmem:[%s433 + $0x90] sm:%s425] %v506
          %v508 = vld [vmem:[%s432 + $0x98] sm:%s425]
          %509 = vst [vmem:[%s433 + $0x94] sm:%s425] %v508
          %v510 = vld [vmem:[%s432 + $0x8c] sm:%s425]
          %511 = vst [vmem:[%s433 + $0x98] sm:%s425] %v510
          %v512 = vld [vmem:[%s432 + $0x9c] sm:%s425]
          %513 = vst [vmem:[%s433 + $0x9c] sm:%s425] %v512
          %v514 = vld [vmem:[%s432 + $0xa0] sm:%s425]
          %515 = vst [vmem:[%s433 + $0xa0] sm:%s425] %v514
          %v516 = vld [vmem:[%s432 + $0xb0] sm:%s425]
          %517 = vst [vmem:[%s433 + $0xa4] sm:%s425] %v516
          %v518 = vld [vmem:[%s432 + $0xa4] sm:%s425]
          %519 = vst [vmem:[%s433 + $0xa8] sm:%s425] %v518
          %v520 = vld [vmem:[%s432 + $0xb4] sm:%s425]
          %521 = vst [vmem:[%s433 + $0xac] sm:%s425] %v520
          %v522 = vld [vmem:[%s432 + $0xa8] sm:%s425]
          %523 = vst [vmem:[%s433 + $0xb0] sm:%s425] %v522
          %v524 = vld [vmem:[%s432 + $0xb8] sm:%s425]
          %525 = vst [vmem:[%s433 + $0xb4] sm:%s425] %v524
          %v526 = vld [vmem:[%s432 + $0xac] sm:%s425]
          %527 = vst [vmem:[%s433 + $0xb8] sm:%s425] %v526
          %v528 = vld [vmem:[%s432 + $0xbc] sm:%s425]
          %529 = vst [vmem:[%s433 + $0xbc] sm:%s425] %v528
          %v530 = vld [vmem:[%s432 + $0xc0] sm:%s425]
          %531 = vst [vmem:[%s433 + $0xc0] sm:%s425] %v530
          %v532 = vld [vmem:[%s432 + $0xd0] sm:%s425]
          %533 = vst [vmem:[%s433 + $0xc4] sm:%s425] %v532
          %v534 = vld [vmem:[%s432 + $0xc4] sm:%s425]
          %535 = vst [vmem:[%s433 + $0xc8] sm:%s425] %v534
          %v536 = vld [vmem:[%s432 + $0xd4] sm:%s425]
          %537 = vst [vmem:[%s433 + $0xcc] sm:%s425] %v536
          %v538 = vld [vmem:[%s432 + $0xc8] sm:%s425]
          %539 = vst [vmem:[%s433 + $0xd0] sm:%s425] %v538
          %v540 = vld [vmem:[%s432 + $0xd8] sm:%s425]
          %541 = vst [vmem:[%s433 + $0xd4] sm:%s425] %v540
          %v542 = vld [vmem:[%s432 + $0xcc] sm:%s425]
          %543 = vst [vmem:[%s433 + $0xd8] sm:%s425] %v542
          %v544 = vld [vmem:[%s432 + $0xdc] sm:%s425]
          %545 = vst [vmem:[%s433 + $0xdc] sm:%s425] %v544
          %v546 = vld [vmem:[%s432 + $0xe0] sm:%s425]
          %547 = vst [vmem:[%s433 + $0xe0] sm:%s425] %v546
          %v548 = vld [vmem:[%s432 + $0xf0] sm:%s425]
          %549 = vst [vmem:[%s433 + $0xe4] sm:%s425] %v548
          %v550 = vld [vmem:[%s432 + $0xe4] sm:%s425]
          %551 = vst [vmem:[%s433 + $0xe8] sm:%s425] %v550
          %v552 = vld [vmem:[%s432 + $0xf4] sm:%s425]
          %553 = vst [vmem:[%s433 + $0xec] sm:%s425] %v552
          %v554 = vld [vmem:[%s432 + $0xe8] sm:%s425]
          %555 = vst [vmem:[%s433 + $0xf0] sm:%s425] %v554
          %v556 = vld [vmem:[%s432 + $0xf8] sm:%s425]
          %557 = vst [vmem:[%s433 + $0xf4] sm:%s425] %v556
          %v558 = vld [vmem:[%s432 + $0xec] sm:%s425]
          %559 = vst [vmem:[%s433 + $0xf8] sm:%s425] %v558
          %v560 = vld [vmem:[%s432 + $0xfc] sm:%s425]
          %561 = vst [vmem:[%s433 + $0xfc] sm:%s425] %v560
          %v562 = vld [vmem:[%s432 + $0x100] sm:%s425]
          %563 = vst [vmem:[%s433 + $0x100] sm:%s425] %v562
          %v564 = vld [vmem:[%s432 + $0x110] sm:%s425]
          %565 = vst [vmem:[%s433 + $0x104] sm:%s425] %v564
          %v566 = vld [vmem:[%s432 + $0x104] sm:%s425]
          %567 = vst [vmem:[%s433 + $0x108] sm:%s425] %v566
          %v568 = vld [vmem:[%s432 + $0x114] sm:%s425]
          %569 = vst [vmem:[%s433 + $0x10c] sm:%s425] %v568
          %v570 = vld [vmem:[%s432 + $0x108] sm:%s425]
          %571 = vst [vmem:[%s433 + $0x110] sm:%s425] %v570
          %v572 = vld [vmem:[%s432 + $0x118] sm:%s425]
          %573 = vst [vmem:[%s433 + $0x114] sm:%s425] %v572
          %v574 = vld [vmem:[%s432 + $0x10c] sm:%s425]
          %575 = vst [vmem:[%s433 + $0x118] sm:%s425] %v574
          %v576 = vld [vmem:[%s432 + $0x11c] sm:%s425]
          %577 = vst [vmem:[%s433 + $0x11c] sm:%s425] %v576
          %v578 = vld [vmem:[%s432 + $0x120] sm:%s425]
          %579 = vst [vmem:[%s433 + $0x120] sm:%s425] %v578
          %v580 = vld [vmem:[%s432 + $0x130] sm:%s425]
          %581 = vst [vmem:[%s433 + $0x124] sm:%s425] %v580
          %v582 = vld [vmem:[%s432 + $0x124] sm:%s425]
          %583 = vst [vmem:[%s433 + $0x128] sm:%s425] %v582
          %v584 = vld [vmem:[%s432 + $0x134] sm:%s425]
          %585 = vst [vmem:[%s433 + $0x12c] sm:%s425] %v584
          %v586 = vld [vmem:[%s432 + $0x128] sm:%s425]
          %587 = vst [vmem:[%s433 + $0x130] sm:%s425] %v586
          %v588 = vld [vmem:[%s432 + $0x138] sm:%s425]
          %589 = vst [vmem:[%s433 + $0x134] sm:%s425] %v588
          %v590 = vld [vmem:[%s432 + $0x12c] sm:%s425]
          %591 = vst [vmem:[%s433 + $0x138] sm:%s425] %v590
          %v592 = vld [vmem:[%s432 + $0x13c] sm:%s425]
          %593 = vst [vmem:[%s433 + $0x13c] sm:%s425] %v592
          %v594 = vld [vmem:[%s432 + $0x140] sm:%s425]
          %595 = vst [vmem:[%s433 + $0x140] sm:%s425] %v594
          %v596 = vld [vmem:[%s432 + $0x150] sm:%s425]
          %597 = vst [vmem:[%s433 + $0x144] sm:%s425] %v596
          %v598 = vld [vmem:[%s432 + $0x144] sm:%s425]
          %599 = vst [vmem:[%s433 + $0x148] sm:%s425] %v598
          %v600 = vld [vmem:[%s432 + $0x154] sm:%s425]
          %601 = vst [vmem:[%s433 + $0x14c] sm:%s425] %v600
          %v602 = vld [vmem:[%s432 + $0x148] sm:%s425]
          %603 = vst [vmem:[%s433 + $0x150] sm:%s425] %v602
          %v604 = vld [vmem:[%s432 + $0x158] sm:%s425]
          %605 = vst [vmem:[%s433 + $0x154] sm:%s425] %v604
          %v606 = vld [vmem:[%s432 + $0x14c] sm:%s425]
          %607 = vst [vmem:[%s433 + $0x158] sm:%s425] %v606
          %v608 = vld [vmem:[%s432 + $0x15c] sm:%s425]
          %609 = vst [vmem:[%s433 + $0x15c] sm:%s425] %v608
          %v610 = vld [vmem:[%s432 + $0x160] sm:%s425]
          %611 = vst [vmem:[%s433 + $0x160] sm:%s425] %v610
          %v612 = vld [vmem:[%s432 + $0x170] sm:%s425]
          %613 = vst [vmem:[%s433 + $0x164] sm:%s425] %v612
          %v614 = vld [vmem:[%s432 + $0x164] sm:%s425]
          %615 = vst [vmem:[%s433 + $0x168] sm:%s425] %v614
          %v616 = vld [vmem:[%s432 + $0x174] sm:%s425]
          %617 = vst [vmem:[%s433 + $0x16c] sm:%s425] %v616
          %v618 = vld [vmem:[%s432 + $0x168] sm:%s425]
          %619 = vst [vmem:[%s433 + $0x170] sm:%s425] %v618
          %v620 = vld [vmem:[%s432 + $0x178] sm:%s425]
          %621 = vst [vmem:[%s433 + $0x174] sm:%s425] %v620
          %v622 = vld [vmem:[%s432 + $0x16c] sm:%s425]
          %623 = vst [vmem:[%s433 + $0x178] sm:%s425] %v622
          %v624 = vld [vmem:[%s432 + $0x17c] sm:%s425]
          %625 = vst [vmem:[%s433 + $0x17c] sm:%s425] %v624
          %v626 = vld [vmem:[%s432 + $0x180] sm:%s425]
          %627 = vst [vmem:[%s433 + $0x180] sm:%s425] %v626
          %v628 = vld [vmem:[%s432 + $0x190] sm:%s425]
          %629 = vst [vmem:[%s433 + $0x184] sm:%s425] %v628
          %v630 = vld [vmem:[%s432 + $0x184] sm:%s425]
          %631 = vst [vmem:[%s433 + $0x188] sm:%s425] %v630
          %v632 = vld [vmem:[%s432 + $0x194] sm:%s425]
          %633 = vst [vmem:[%s433 + $0x18c] sm:%s425] %v632
          %v634 = vld [vmem:[%s432 + $0x188] sm:%s425]
          %635 = vst [vmem:[%s433 + $0x190] sm:%s425] %v634
          %v636 = vld [vmem:[%s432 + $0x198] sm:%s425]
          %637 = vst [vmem:[%s433 + $0x194] sm:%s425] %v636
          %v638 = vld [vmem:[%s432 + $0x18c] sm:%s425]
          %639 = vst [vmem:[%s433 + $0x198] sm:%s425] %v638
          %v640 = vld [vmem:[%s432 + $0x19c] sm:%s425]
          %641 = vst [vmem:[%s433 + $0x19c] sm:%s425] %v640
          %v642 = vld [vmem:[%s432 + $0x1a0] sm:%s425]
          %643 = vst [vmem:[%s433 + $0x1a0] sm:%s425] %v642
          %v644 = vld [vmem:[%s432 + $0x1b0] sm:%s425]
          %645 = vst [vmem:[%s433 + $0x1a4] sm:%s425] %v644
          %v646 = vld [vmem:[%s432 + $0x1a4] sm:%s425]
          %647 = vst [vmem:[%s433 + $0x1a8] sm:%s425] %v646
          %v648 = vld [vmem:[%s432 + $0x1b4] sm:%s425]
          %649 = vst [vmem:[%s433 + $0x1ac] sm:%s425] %v648
          %v650 = vld [vmem:[%s432 + $0x1a8] sm:%s425]
          %651 = vst [vmem:[%s433 + $0x1b0] sm:%s425] %v650
          %v652 = vld [vmem:[%s432 + $0x1b8] sm:%s425]
          %653 = vst [vmem:[%s433 + $0x1b4] sm:%s425] %v652
          %v654 = vld [vmem:[%s432 + $0x1ac] sm:%s425]
          %655 = vst [vmem:[%s433 + $0x1b8] sm:%s425] %v654
          %v656 = vld [vmem:[%s432 + $0x1bc] sm:%s425]
          %657 = vst [vmem:[%s433 + $0x1bc] sm:%s425] %v656
          %v658 = vld [vmem:[%s432 + $0x1c0] sm:%s425]
          %659 = vst [vmem:[%s433 + $0x1c0] sm:%s425] %v658
          %v660 = vld [vmem:[%s432 + $0x1d0] sm:%s425]
          %661 = vst [vmem:[%s433 + $0x1c4] sm:%s425] %v660
          %v662 = vld [vmem:[%s432 + $0x1c4] sm:%s425]
          %663 = vst [vmem:[%s433 + $0x1c8] sm:%s425] %v662
          %v664 = vld [vmem:[%s432 + $0x1d4] sm:%s425]
          %665 = vst [vmem:[%s433 + $0x1cc] sm:%s425] %v664
          %v666 = vld [vmem:[%s432 + $0x1c8] sm:%s425]
          %667 = vst [vmem:[%s433 + $0x1d0] sm:%s425] %v666
          %v668 = vld [vmem:[%s432 + $0x1d8] sm:%s425]
          %669 = vst [vmem:[%s433 + $0x1d4] sm:%s425] %v668
          %v670 = vld [vmem:[%s432 + $0x1cc] sm:%s425]
          %671 = vst [vmem:[%s433 + $0x1d8] sm:%s425] %v670
          %v672 = vld [vmem:[%s432 + $0x1dc] sm:%s425]
          %673 = vst [vmem:[%s433 + $0x1dc] sm:%s425] %v672
          %v674 = vld [vmem:[%s432 + $0x1e0] sm:%s425]
          %675 = vst [vmem:[%s433 + $0x1e0] sm:%s425] %v674
          %v676 = vld [vmem:[%s432 + $0x1f0] sm:%s425]
          %677 = vst [vmem:[%s433 + $0x1e4] sm:%s425] %v676
          %v678 = vld [vmem:[%s432 + $0x1e4] sm:%s425]
          %679 = vst [vmem:[%s433 + $0x1e8] sm:%s425] %v678
          %v680 = vld [vmem:[%s432 + $0x1f4] sm:%s425]
          %681 = vst [vmem:[%s433 + $0x1ec] sm:%s425] %v680
          %v682 = vld [vmem:[%s432 + $0x1e8] sm:%s425]
          %683 = vst [vmem:[%s433 + $0x1f0] sm:%s425] %v682
          %v684 = vld [vmem:[%s432 + $0x1f8] sm:%s425]
          %685 = vst [vmem:[%s433 + $0x1f4] sm:%s425] %v684
          %v686 = vld [vmem:[%s432 + $0x1ec] sm:%s425]
          %687 = vst [vmem:[%s433 + $0x1f8] sm:%s425] %v686
          %v688 = vld [vmem:[%s432 + $0x1fc] sm:%s425]
          %689 = vst [vmem:[%s433 + $0x1fc] sm:%s425] %v688
        $region152: #{tpu_custom_call.1} parent=139 // loop_footer
          %s431 = sadd.s32 1, %s427
        $region153: #{tpu_custom_call.1} parent=139 // loop_footer_branch
          %426 = sbr.rel target = $region149
        $region154: #{tpu_custom_call.1} parent=139 // loop_exit
          _
      $region140: #{tpu_custom_call.1} parent=124 // pred_fallthru
        _
    $region125: #{tpu_custom_call.1} parent=1 // pred_fallthru
      _
    // Predicated region
    $region126: #{tpu_custom_call.1} parent=1 // pred_check
      %p139 = pneg %p135
    $region127: #{tpu_custom_call.1} parent=1 // pred_check_branch
      %141 = sbr.rel (%p139) target = $region129
    $region128: #{tpu_custom_call.1} parent=1 // pred_region
      %s142 = sshllo.u32 0, 4
      loop: start=0, step=1, limit=1
      $region130: #{tpu_custom_call.1} parent=128 // loop_pre_header
        _
      $region131: #{tpu_custom_call.1} parent=128 // loop_header
        %s144 = sphi 0, %s148
        %p145 = scmp.ge.s32.totalorder %s144, 1
        %s149 = sphi %s61, %s61
        %s150 = sphi [#allocation3], [#allocation3]
      $region132: #{tpu_custom_call.1} parent=128 // loop_header_branch
        %147 = sbr.rel (%p145) target = $region136
      $region133: #{tpu_custom_call.1} parent=128 // loop_body
        %v151 = vld [vmem:[%s149] sm:%s142]
        %152 = vst [vmem:[%s150] sm:%s142] %v151
        %v153 = vld [vmem:[%s149 + $0x10] sm:%s142]
        %154 = vst [vmem:[%s150 + $0x4] sm:%s142] %v153
        %v155 = vld [vmem:[%s149 + $0x4] sm:%s142]
        %156 = vst [vmem:[%s150 + $0x8] sm:%s142] %v155
        %v157 = vld [vmem:[%s149 + $0x14] sm:%s142]
        %158 = vst [vmem:[%s150 + $0xc] sm:%s142] %v157
        %v159 = vld [vmem:[%s149 + $0x8] sm:%s142]
        %160 = vst [vmem:[%s150 + $0x10] sm:%s142] %v159
        %v161 = vld [vmem:[%s149 + $0x18] sm:%s142]
        %162 = vst [vmem:[%s150 + $0x14] sm:%s142] %v161
        %v163 = vld [vmem:[%s149 + $0xc] sm:%s142]
        %164 = vst [vmem:[%s150 + $0x18] sm:%s142] %v163
        %v165 = vld [vmem:[%s149 + $0x1c] sm:%s142]
        %166 = vst [vmem:[%s150 + $0x1c] sm:%s142] %v165
        %v167 = vld [vmem:[%s149 + $0x20] sm:%s142]
        %168 = vst [vmem:[%s150 + $0x20] sm:%s142] %v167
        %v169 = vld [vmem:[%s149 + $0x30] sm:%s142]
        %170 = vst [vmem:[%s150 + $0x24] sm:%s142] %v169
        %v171 = vld [vmem:[%s149 + $0x24] sm:%s142]
        %172 = vst [vmem:[%s150 + $0x28] sm:%s142] %v171
        %v173 = vld [vmem:[%s149 + $0x34] sm:%s142]
        %174 = vst [vmem:[%s150 + $0x2c] sm:%s142] %v173
        %v175 = vld [vmem:[%s149 + $0x28] sm:%s142]
        %176 = vst [vmem:[%s150 + $0x30] sm:%s142] %v175
        %v177 = vld [vmem:[%s149 + $0x38] sm:%s142]
        %178 = vst [vmem:[%s150 + $0x34] sm:%s142] %v177
        %v179 = vld [vmem:[%s149 + $0x2c] sm:%s142]
        %180 = vst [vmem:[%s150 + $0x38] sm:%s142] %v179
        %v181 = vld [vmem:[%s149 + $0x3c] sm:%s142]
        %182 = vst [vmem:[%s150 + $0x3c] sm:%s142] %v181
        %v183 = vld [vmem:[%s149 + $0x40] sm:%s142]
        %184 = vst [vmem:[%s150 + $0x40] sm:%s142] %v183
        %v185 = vld [vmem:[%s149 + $0x50] sm:%s142]
        %186 = vst [vmem:[%s150 + $0x44] sm:%s142] %v185
        %v187 = vld [vmem:[%s149 + $0x44] sm:%s142]
        %188 = vst [vmem:[%s150 + $0x48] sm:%s142] %v187
        %v189 = vld [vmem:[%s149 + $0x54] sm:%s142]
        %190 = vst [vmem:[%s150 + $0x4c] sm:%s142] %v189
        %v191 = vld [vmem:[%s149 + $0x48] sm:%s142]
        %192 = vst [vmem:[%s150 + $0x50] sm:%s142] %v191
        %v193 = vld [vmem:[%s149 + $0x58] sm:%s142]
        %194 = vst [vmem:[%s150 + $0x54] sm:%s142] %v193
        %v195 = vld [vmem:[%s149 + $0x4c] sm:%s142]
        %196 = vst [vmem:[%s150 + $0x58] sm:%s142] %v195
        %v197 = vld [vmem:[%s149 + $0x5c] sm:%s142]
        %198 = vst [vmem:[%s150 + $0x5c] sm:%s142] %v197
        %v199 = vld [vmem:[%s149 + $0x60] sm:%s142]
        %200 = vst [vmem:[%s150 + $0x60] sm:%s142] %v199
        %v201 = vld [vmem:[%s149 + $0x70] sm:%s142]
        %202 = vst [vmem:[%s150 + $0x64] sm:%s142] %v201
        %v203 = vld [vmem:[%s149 + $0x64] sm:%s142]
        %204 = vst [vmem:[%s150 + $0x68] sm:%s142] %v203
        %v205 = vld [vmem:[%s149 + $0x74] sm:%s142]
        %206 = vst [vmem:[%s150 + $0x6c] sm:%s142] %v205
        %v207 = vld [vmem:[%s149 + $0x68] sm:%s142]
        %208 = vst [vmem:[%s150 + $0x70] sm:%s142] %v207
        %v209 = vld [vmem:[%s149 + $0x78] sm:%s142]
        %210 = vst [vmem:[%s150 + $0x74] sm:%s142] %v209
        %v211 = vld [vmem:[%s149 + $0x6c] sm:%s142]
        %212 = vst [vmem:[%s150 + $0x78] sm:%s142] %v211
        %v213 = vld [vmem:[%s149 + $0x7c] sm:%s142]
        %214 = vst [vmem:[%s150 + $0x7c] sm:%s142] %v213
        %v215 = vld [vmem:[%s149 + $0x80] sm:%s142]
        %216 = vst [vmem:[%s150 + $0x80] sm:%s142] %v215
        %v217 = vld [vmem:[%s149 + $0x90] sm:%s142]
        %218 = vst [vmem:[%s150 + $0x84] sm:%s142] %v217
        %v219 = vld [vmem:[%s149 + $0x84] sm:%s142]
        %220 = vst [vmem:[%s150 + $0x88] sm:%s142] %v219
        %v221 = vld [vmem:[%s149 + $0x94] sm:%s142]
        %222 = vst [vmem:[%s150 + $0x8c] sm:%s142] %v221
        %v223 = vld [vmem:[%s149 + $0x88] sm:%s142]
        %224 = vst [vmem:[%s150 + $0x90] sm:%s142] %v223
        %v225 = vld [vmem:[%s149 + $0x98] sm:%s142]
        %226 = vst [vmem:[%s150 + $0x94] sm:%s142] %v225
        %v227 = vld [vmem:[%s149 + $0x8c] sm:%s142]
        %228 = vst [vmem:[%s150 + $0x98] sm:%s142] %v227
        %v229 = vld [vmem:[%s149 + $0x9c] sm:%s142]
        %230 = vst [vmem:[%s150 + $0x9c] sm:%s142] %v229
        %v231 = vld [vmem:[%s149 + $0xa0] sm:%s142]
        %232 = vst [vmem:[%s150 + $0xa0] sm:%s142] %v231
        %v233 = vld [vmem:[%s149 + $0xb0] sm:%s142]
        %234 = vst [vmem:[%s150 + $0xa4] sm:%s142] %v233
        %v235 = vld [vmem:[%s149 + $0xa4] sm:%s142]
        %236 = vst [vmem:[%s150 + $0xa8] sm:%s142] %v235
        %v237 = vld [vmem:[%s149 + $0xb4] sm:%s142]
        %238 = vst [vmem:[%s150 + $0xac] sm:%s142] %v237
        %v239 = vld [vmem:[%s149 + $0xa8] sm:%s142]
        %240 = vst [vmem:[%s150 + $0xb0] sm:%s142] %v239
        %v241 = vld [vmem:[%s149 + $0xb8] sm:%s142]
        %242 = vst [vmem:[%s150 + $0xb4] sm:%s142] %v241
        %v243 = vld [vmem:[%s149 + $0xac] sm:%s142]
        %244 = vst [vmem:[%s150 + $0xb8] sm:%s142] %v243
        %v245 = vld [vmem:[%s149 + $0xbc] sm:%s142]
        %246 = vst [vmem:[%s150 + $0xbc] sm:%s142] %v245
        %v247 = vld [vmem:[%s149 + $0xc0] sm:%s142]
        %248 = vst [vmem:[%s150 + $0xc0] sm:%s142] %v247
        %v249 = vld [vmem:[%s149 + $0xd0] sm:%s142]
        %250 = vst [vmem:[%s150 + $0xc4] sm:%s142] %v249
        %v251 = vld [vmem:[%s149 + $0xc4] sm:%s142]
        %252 = vst [vmem:[%s150 + $0xc8] sm:%s142] %v251
        %v253 = vld [vmem:[%s149 + $0xd4] sm:%s142]
        %254 = vst [vmem:[%s150 + $0xcc] sm:%s142] %v253
        %v255 = vld [vmem:[%s149 + $0xc8] sm:%s142]
        %256 = vst [vmem:[%s150 + $0xd0] sm:%s142] %v255
        %v257 = vld [vmem:[%s149 + $0xd8] sm:%s142]
        %258 = vst [vmem:[%s150 + $0xd4] sm:%s142] %v257
        %v259 = vld [vmem:[%s149 + $0xcc] sm:%s142]
        %260 = vst [vmem:[%s150 + $0xd8] sm:%s142] %v259
        %v261 = vld [vmem:[%s149 + $0xdc] sm:%s142]
        %262 = vst [vmem:[%s150 + $0xdc] sm:%s142] %v261
        %v263 = vld [vmem:[%s149 + $0xe0] sm:%s142]
        %264 = vst [vmem:[%s150 + $0xe0] sm:%s142] %v263
        %v265 = vld [vmem:[%s149 + $0xf0] sm:%s142]
        %266 = vst [vmem:[%s150 + $0xe4] sm:%s142] %v265
        %v267 = vld [vmem:[%s149 + $0xe4] sm:%s142]
        %268 = vst [vmem:[%s150 + $0xe8] sm:%s142] %v267
        %v269 = vld [vmem:[%s149 + $0xf4] sm:%s142]
        %270 = vst [vmem:[%s150 + $0xec] sm:%s142] %v269
        %v271 = vld [vmem:[%s149 + $0xe8] sm:%s142]
        %272 = vst [vmem:[%s150 + $0xf0] sm:%s142] %v271
        %v273 = vld [vmem:[%s149 + $0xf8] sm:%s142]
        %274 = vst [vmem:[%s150 + $0xf4] sm:%s142] %v273
        %v275 = vld [vmem:[%s149 + $0xec] sm:%s142]
        %276 = vst [vmem:[%s150 + $0xf8] sm:%s142] %v275
        %v277 = vld [vmem:[%s149 + $0xfc] sm:%s142]
        %278 = vst [vmem:[%s150 + $0xfc] sm:%s142] %v277
        %v279 = vld [vmem:[%s149 + $0x100] sm:%s142]
        %280 = vst [vmem:[%s150 + $0x100] sm:%s142] %v279
        %v281 = vld [vmem:[%s149 + $0x110] sm:%s142]
        %282 = vst [vmem:[%s150 + $0x104] sm:%s142] %v281
        %v283 = vld [vmem:[%s149 + $0x104] sm:%s142]
        %284 = vst [vmem:[%s150 + $0x108] sm:%s142] %v283
        %v285 = vld [vmem:[%s149 + $0x114] sm:%s142]
        %286 = vst [vmem:[%s150 + $0x10c] sm:%s142] %v285
        %v287 = vld [vmem:[%s149 + $0x108] sm:%s142]
        %288 = vst [vmem:[%s150 + $0x110] sm:%s142] %v287
        %v289 = vld [vmem:[%s149 + $0x118] sm:%s142]
        %290 = vst [vmem:[%s150 + $0x114] sm:%s142] %v289
        %v291 = vld [vmem:[%s149 + $0x10c] sm:%s142]
        %292 = vst [vmem:[%s150 + $0x118] sm:%s142] %v291
        %v293 = vld [vmem:[%s149 + $0x11c] sm:%s142]
        %294 = vst [vmem:[%s150 + $0x11c] sm:%s142] %v293
        %v295 = vld [vmem:[%s149 + $0x120] sm:%s142]
        %296 = vst [vmem:[%s150 + $0x120] sm:%s142] %v295
        %v297 = vld [vmem:[%s149 + $0x130] sm:%s142]
        %298 = vst [vmem:[%s150 + $0x124] sm:%s142] %v297
        %v299 = vld [vmem:[%s149 + $0x124] sm:%s142]
        %300 = vst [vmem:[%s150 + $0x128] sm:%s142] %v299
        %v301 = vld [vmem:[%s149 + $0x134] sm:%s142]
        %302 = vst [vmem:[%s150 + $0x12c] sm:%s142] %v301
        %v303 = vld [vmem:[%s149 + $0x128] sm:%s142]
        %304 = vst [vmem:[%s150 + $0x130] sm:%s142] %v303
        %v305 = vld [vmem:[%s149 + $0x138] sm:%s142]
        %306 = vst [vmem:[%s150 + $0x134] sm:%s142] %v305
        %v307 = vld [vmem:[%s149 + $0x12c] sm:%s142]
        %308 = vst [vmem:[%s150 + $0x138] sm:%s142] %v307
        %v309 = vld [vmem:[%s149 + $0x13c] sm:%s142]
        %310 = vst [vmem:[%s150 + $0x13c] sm:%s142] %v309
        %v311 = vld [vmem:[%s149 + $0x140] sm:%s142]
        %312 = vst [vmem:[%s150 + $0x140] sm:%s142] %v311
        %v313 = vld [vmem:[%s149 + $0x150] sm:%s142]
        %314 = vst [vmem:[%s150 + $0x144] sm:%s142] %v313
        %v315 = vld [vmem:[%s149 + $0x144] sm:%s142]
        %316 = vst [vmem:[%s150 + $0x148] sm:%s142] %v315
        %v317 = vld [vmem:[%s149 + $0x154] sm:%s142]
        %318 = vst [vmem:[%s150 + $0x14c] sm:%s142] %v317
        %v319 = vld [vmem:[%s149 + $0x148] sm:%s142]
        %320 = vst [vmem:[%s150 + $0x150] sm:%s142] %v319
        %v321 = vld [vmem:[%s149 + $0x158] sm:%s142]
        %322 = vst [vmem:[%s150 + $0x154] sm:%s142] %v321
        %v323 = vld [vmem:[%s149 + $0x14c] sm:%s142]
        %324 = vst [vmem:[%s150 + $0x158] sm:%s142] %v323
        %v325 = vld [vmem:[%s149 + $0x15c] sm:%s142]
        %326 = vst [vmem:[%s150 + $0x15c] sm:%s142] %v325
        %v327 = vld [vmem:[%s149 + $0x160] sm:%s142]
        %328 = vst [vmem:[%s150 + $0x160] sm:%s142] %v327
        %v329 = vld [vmem:[%s149 + $0x170] sm:%s142]
        %330 = vst [vmem:[%s150 + $0x164] sm:%s142] %v329
        %v331 = vld [vmem:[%s149 + $0x164] sm:%s142]
        %332 = vst [vmem:[%s150 + $0x168] sm:%s142] %v331
        %v333 = vld [vmem:[%s149 + $0x174] sm:%s142]
        %334 = vst [vmem:[%s150 + $0x16c] sm:%s142] %v333
        %v335 = vld [vmem:[%s149 + $0x168] sm:%s142]
        %336 = vst [vmem:[%s150 + $0x170] sm:%s142] %v335
        %v337 = vld [vmem:[%s149 + $0x178] sm:%s142]
        %338 = vst [vmem:[%s150 + $0x174] sm:%s142] %v337
        %v339 = vld [vmem:[%s149 + $0x16c] sm:%s142]
        %340 = vst [vmem:[%s150 + $0x178] sm:%s142] %v339
        %v341 = vld [vmem:[%s149 + $0x17c] sm:%s142]
        %342 = vst [vmem:[%s150 + $0x17c] sm:%s142] %v341
        %v343 = vld [vmem:[%s149 + $0x180] sm:%s142]
        %344 = vst [vmem:[%s150 + $0x180] sm:%s142] %v343
        %v345 = vld [vmem:[%s149 + $0x190] sm:%s142]
        %346 = vst [vmem:[%s150 + $0x184] sm:%s142] %v345
        %v347 = vld [vmem:[%s149 + $0x184] sm:%s142]
        %348 = vst [vmem:[%s150 + $0x188] sm:%s142] %v347
        %v349 = vld [vmem:[%s149 + $0x194] sm:%s142]
        %350 = vst [vmem:[%s150 + $0x18c] sm:%s142] %v349
        %v351 = vld [vmem:[%s149 + $0x188] sm:%s142]
        %352 = vst [vmem:[%s150 + $0x190] sm:%s142] %v351
        %v353 = vld [vmem:[%s149 + $0x198] sm:%s142]
        %354 = vst [vmem:[%s150 + $0x194] sm:%s142] %v353
        %v355 = vld [vmem:[%s149 + $0x18c] sm:%s142]
        %356 = vst [vmem:[%s150 + $0x198] sm:%s142] %v355
        %v357 = vld [vmem:[%s149 + $0x19c] sm:%s142]
        %358 = vst [vmem:[%s150 + $0x19c] sm:%s142] %v357
        %v359 = vld [vmem:[%s149 + $0x1a0] sm:%s142]
        %360 = vst [vmem:[%s150 + $0x1a0] sm:%s142] %v359
        %v361 = vld [vmem:[%s149 + $0x1b0] sm:%s142]
        %362 = vst [vmem:[%s150 + $0x1a4] sm:%s142] %v361
        %v363 = vld [vmem:[%s149 + $0x1a4] sm:%s142]
        %364 = vst [vmem:[%s150 + $0x1a8] sm:%s142] %v363
        %v365 = vld [vmem:[%s149 + $0x1b4] sm:%s142]
        %366 = vst [vmem:[%s150 + $0x1ac] sm:%s142] %v365
        %v367 = vld [vmem:[%s149 + $0x1a8] sm:%s142]
        %368 = vst [vmem:[%s150 + $0x1b0] sm:%s142] %v367
        %v369 = vld [vmem:[%s149 + $0x1b8] sm:%s142]
        %370 = vst [vmem:[%s150 + $0x1b4] sm:%s142] %v369
        %v371 = vld [vmem:[%s149 + $0x1ac] sm:%s142]
        %372 = vst [vmem:[%s150 + $0x1b8] sm:%s142] %v371
        %v373 = vld [vmem:[%s149 + $0x1bc] sm:%s142]
        %374 = vst [vmem:[%s150 + $0x1bc] sm:%s142] %v373
        %v375 = vld [vmem:[%s149 + $0x1c0] sm:%s142]
        %376 = vst [vmem:[%s150 + $0x1c0] sm:%s142] %v375
        %v377 = vld [vmem:[%s149 + $0x1d0] sm:%s142]
        %378 = vst [vmem:[%s150 + $0x1c4] sm:%s142] %v377
        %v379 = vld [vmem:[%s149 + $0x1c4] sm:%s142]
        %380 = vst [vmem:[%s150 + $0x1c8] sm:%s142] %v379
        %v381 = vld [vmem:[%s149 + $0x1d4] sm:%s142]
        %382 = vst [vmem:[%s150 + $0x1cc] sm:%s142] %v381
        %v383 = vld [vmem:[%s149 + $0x1c8] sm:%s142]
        %384 = vst [vmem:[%s150 + $0x1d0] sm:%s142] %v383
        %v385 = vld [vmem:[%s149 + $0x1d8] sm:%s142]
        %386 = vst [vmem:[%s150 + $0x1d4] sm:%s142] %v385
        %v387 = vld [vmem:[%s149 + $0x1cc] sm:%s142]
        %388 = vst [vmem:[%s150 + $0x1d8] sm:%s142] %v387
        %v389 = vld [vmem:[%s149 + $0x1dc] sm:%s142]
        %390 = vst [vmem:[%s150 + $0x1dc] sm:%s142] %v389
        %v391 = vld [vmem:[%s149 + $0x1e0] sm:%s142]
        %392 = vst [vmem:[%s150 + $0x1e0] sm:%s142] %v391
        %v393 = vld [vmem:[%s149 + $0x1f0] sm:%s142]
        %394 = vst [vmem:[%s150 + $0x1e4] sm:%s142] %v393
        %v395 = vld [vmem:[%s149 + $0x1e4] sm:%s142]
        %396 = vst [vmem:[%s150 + $0x1e8] sm:%s142] %v395
        %v397 = vld [vmem:[%s149 + $0x1f4] sm:%s142]
        %398 = vst [vmem:[%s150 + $0x1ec] sm:%s142] %v397
        %v399 = vld [vmem:[%s149 + $0x1e8] sm:%s142]
        %400 = vst [vmem:[%s150 + $0x1f0] sm:%s142] %v399
        %v401 = vld [vmem:[%s149 + $0x1f8] sm:%s142]
        %402 = vst [vmem:[%s150 + $0x1f4] sm:%s142] %v401
        %v403 = vld [vmem:[%s149 + $0x1ec] sm:%s142]
        %404 = vst [vmem:[%s150 + $0x1f8] sm:%s142] %v403
        %v405 = vld [vmem:[%s149 + $0x1fc] sm:%s142]
        %406 = vst [vmem:[%s150 + $0x1fc] sm:%s142] %v405
      $region134: #{tpu_custom_call.1} parent=128 // loop_footer
        %s148 = sadd.s32 1, %s144
      $region135: #{tpu_custom_call.1} parent=128 // loop_footer_branch
        %143 = sbr.rel target = $region131
      $region136: #{tpu_custom_call.1} parent=128 // loop_exit
        _
    $region129: #{tpu_custom_call.1} parent=1 // pred_fallthru
      _
    // Predicated region
    $region155: #{tpu_custom_call.1} parent=1 // pred_check
      _
    $region156: #{tpu_custom_call.1} parent=1 // pred_check_branch
      %692 = sbr.rel (0) target = $region158
    $region157: #{tpu_custom_call.1} parent=1 // pred_region
      %693 = vsyncadd [#allocation6], 8192
    $region158: #{tpu_custom_call.1} parent=1 // pred_fallthru
      _
    %s694 = scalar_lea.sflag [#allocation6], 1
    %s696 = sshll.u32 1, 14
    %s697 = sxor.u32 4294967295, %s696
    %s699 = sld [smem:[#allocation0]]
    %s700 = sadd.s32 2, %s699
    %s702 = sshll.u32 7, 26
    %s703 = sxor.u32 4294967295, %s702
    %s704 = sand.u32 0, %s703
    %s705 = sshll.u32 %s700, 26
    %s706 = sor.u32 %s704, %s705
    %s707 = sshll.u32 [#allocation4], 4
    %s708 = int_to_ptr.vmem [resolvable:$true] %s707
    %711 = sst [smem:[#allocation10]] 1024
    %s712 = scalar_lea.smem [#allocation10], 1
    %713 = sst [smem:[%s712]] 1024
    %s714 = scalar_lea.smem [#allocation10], 2
    %715 = sst [smem:[%s714]] 8
    %s716 = scalar_lea.smem [#allocation10], 3
    %717 = sst [smem:[%s716]] 64
    %s718 = scalar_lea.smem [#allocation10], 4
    %719 = sst [smem:[%s718]] 128
    %s720 = scalar_lea.smem [#allocation10], 5
    %721 = sst [smem:[%s720]] 2
    %s722 = scalar_lea.smem [#allocation10], 6
    %723 = sst [smem:[%s722]] 512
    %s724 = scalar_lea.smem [#allocation10], 7
    %725 = sst [smem:[%s724]] 64
    %s726 = scalar_lea.smem [#allocation10], 8
    %727 = sst [smem:[%s726]] 4
    %729 = dma.general %s63, 32768, %s708, %s694, [#allocation9], [#allocation10], %s706, 0
    %s730 = scalar_lea.sflag [#allocation6], 2
    %s732 = sshll.u32 1, 14
    %s733 = sxor.u32 4294967295, %s732
    %s735 = sadd.s32 2, %s699
    %s737 = sshll.u32 7, 26
    %s738 = sxor.u32 4294967295, %s737
    %s739 = sand.u32 0, %s738
    %s740 = sshll.u32 %s735, 26
    %s741 = sor.u32 %s739, %s740
    %s742 = sshll.u32 [#allocation5], 4
    %s743 = int_to_ptr.vmem [resolvable:$true] %s742
    %746 = sst [smem:[#allocation12]] 256
    %s747 = scalar_lea.smem [#allocation12], 1
    %748 = sst [smem:[%s747]] 256
    %s749 = scalar_lea.smem [#allocation12], 2
    %750 = sst [smem:[%s749]] 2
    %s751 = scalar_lea.smem [#allocation12], 3
    %752 = sst [smem:[%s751]] 64
    %s753 = scalar_lea.smem [#allocation12], 4
    %754 = sst [smem:[%s753]] 128
    %s755 = scalar_lea.smem [#allocation12], 5
    %756 = sst [smem:[%s755]] 2
    %s757 = scalar_lea.smem [#allocation12], 6
    %758 = sst [smem:[%s757]] 128
    %s759 = scalar_lea.smem [#allocation12], 7
    %760 = sst [smem:[%s759]] 64
    %s761 = scalar_lea.smem [#allocation12], 8
    %762 = sst [smem:[%s761]] 4
    %764 = dma.general %s65, 16384, %s743, %s730, [#allocation11], [#allocation12], %s741, 0
    %v765 = vld [vmem:[%s1] sm:$0xff]
    %v766 = vld [vmem:[%s1 + $0x8] sm:$0xff]
    %v767 = vld [vmem:[%s37] sm:$0x1]
    %v768 = vld [vmem:[%s39] sm:$0x1]
    %v769 = vld [vmem:[%s3] sm:$0xff]
    %v770 = vld [vmem:[%s3 + $0x8] sm:$0xff]
    %v771 = vld [vmem:[%s5] sm:$0xff]
    %v772 = vld [vmem:[%s5 + $0x8] sm:$0xff]
    %v773 = vld [vmem:[%s5 + $0x10] sm:$0xff]
    %v774 = vld [vmem:[%s5 + $0x18] sm:$0xff]
    %v775 = vld [vmem:[%s5 + $0x20] sm:$0xff]
    %v776 = vld [vmem:[%s5 + $0x28] sm:$0xff]
    %v777 = vld [vmem:[%s5 + $0x30] sm:$0xff]
    %v778 = vld [vmem:[%s5 + $0x38] sm:$0xff]
    %v779 = vld [vmem:[%s5 + $0x40] sm:$0xff]
    %v780 = vld [vmem:[%s5 + $0x48] sm:$0x7]
    %v781 = vld [vmem:[%s7] sm:$0x1]
    %v783 = vlaneseq
    %v784 = vshrl.u32 %v783, 7
    %v785 = vsub.s32 0, %v784
    %v786 = vrot.slane %v781, %v785
    %vm788 = vcmask 613376
    %v790 = vsel %vm788, %v769, 0
    %v793 = vsel %vm788, %v770, 0
    %vm795 = vcmask 1042432
    %v797 = vsel %vm795, %v780, 0
    %799 = vmatprep.subr.mxu0 0.0
    %800 = vmatpush1.msra.mxu0 %v771
    %801 = vmatprep.subr.mxu0 0.0
    %802 = vmatpush1.msra.mxu0 %v772
    %803 = vmatprep.subr.mxu0 0.0
    %804 = vmatpush1.msra.mxu0 %v773
    %805 = vmatprep.subr.mxu0 0.0
    %806 = vmatpush1.msra.mxu0 %v774
    %807 = vmatprep.subr.mxu0 0.0
    %808 = vmatpush1.msra.mxu0 %v775
    %809 = vmatprep.subr.mxu0 0.0
    %810 = vmatpush1.msra.mxu0 %v776
    %811 = vmatprep.subr.mxu0 0.0
    %812 = vmatpush1.msra.mxu0 %v777
    %813 = vmatprep.subr.mxu0 0.0
    %814 = vmatpush1.msra.mxu0 %v778
    %815 = vmatprep.subr.mxu0 0.0
    %816 = vmatpush1.msra.mxu0 %v779
    %817 = vmatprep.subr.mxu0 0.0
    %818 = vmatpush1.msra.mxu0 %v797
    %819 = vmatprep.subr.mxu0 0.0
    %820 = vmatpush1.msra.mxu0 0.0
    %821 = vmatprep.subr.mxu0 0.0
    %822 = vmatpush1.msra.mxu0 0.0
    %823 = vmatprep.subr.mxu0 0.0
    %824 = vmatpush1.msra.mxu0 0.0
    %825 = vmatprep.subr.mxu0 0.0
    %826 = vmatpush1.msra.mxu0 0.0
    %827 = vmatprep.subr.mxu0 0.0
    %828 = vmatpush1.msra.mxu0 0.0
    %829 = vmatprep.subr.mxu0 0.0
    %830 = vmatpush1.msra.mxu0 0.0
    %831 = vmatprep.subr.mxu0 0.0
    %832 = vmatpush1.msra.mxu0 0.0
    %833 = vmatprep.subr.mxu0 0.0
    %834 = vmatpush1.msra.mxu0 0.0
    %835 = vmatprep.subr.mxu0 0.0
    %836 = vmatpush1.msra.mxu0 0.0
    %837 = vmatprep.subr.mxu0 0.0
    %838 = vmatpush1.msra.mxu0 0.0
    %839 = vmatprep.subr.mxu0 0.0
    %840 = vmatpush1.msra.mxu0 0.0
    %841 = vmatprep.subr.mxu0 0.0
    %842 = vmatpush1.msra.mxu0 0.0
    %843 = vmatprep.subr.mxu0 0.0
    %844 = vmatpush1.msra.mxu0 0.0
    %845 = vmatprep.subr.mxu0 0.0
    %846 = vmatpush1.msra.mxu0 0.0
    %847 = vmatprep.subr.mxu0 0.0
    %848 = vmatpush1.msra.mxu0 0.0
    %849 = vmatprep.subr.mxu0 0.0
    %850 = vmatpush1.msra.mxu0 0.0
    %851 = vmatprep.subr.mxu0 0.0
    %852 = vmatpush1.msra.mxu0 0.0
    %853 = vmatprep.subr.mxu0 0.0
    %854 = vmatpush1.msra.mxu0 0.0
    %855 = vmatprep.subr.mxu0 0.0
    %856 = vmatpush1.msra.mxu0 0.0
    %857 = vmatprep.subr.mxu0 0.0
    %858 = vmatpush1.msra.mxu0 0.0
    %859 = vmatprep.subr.mxu0 0.0
    %860 = vmatpush1.msra.mxu0 0.0
    %861 = vmatprep.subr.mxu0 0.0
    %862 = vmatpush1.msra.mxu0 0.0
    %863 = vmatprep.mubr.f32.mxu0 0.0
    %864 = vmatmul.mubr.f32.gmra.mrb[0].mxu0 %v790
    %v865 = vpop.f32.mrb[0].mxu0
    %v866 = vadd.f32 %v786, %v865
    %v867 = vpop.f32.mrb[0].mxu0
    %868 = vmatprep.mubr.f32.mxu0 0.0
    %869 = vmatmul.mubr.f32.gmra.mrb[0].mxu0 %v793
    %v870 = vpop.f32.mrb[0].mxu0
    %v871 = vadd.f32 %v786, %v870
    %v872 = vpop.f32.mrb[0].mxu0
    %873 = vdwg.mxu0
    %vm874 = vcmask 130048
    %v876 = vsel %vm874, %v765, 0
    %v879 = vsel %vm874, %v766, 0
    %881 = vmatprep.subr.mxu0 0.0
    %882 = vmatpush1.msra.mxu0 %v866
    %883 = vmatprep.subr.mxu0 0.0
    %884 = vmatpush1.msra.mxu0 %v871
    %885 = vmatprep.subr.mxu0 0.0
    %886 = vmatpush1.msra.mxu0 0.0
    %887 = vmatprep.subr.mxu0 0.0
    %888 = vmatpush1.msra.mxu0 0.0
    %889 = vmatprep.subr.mxu0 0.0
    %890 = vmatpush1.msra.mxu0 0.0
    %891 = vmatprep.subr.mxu0 0.0
    %892 = vmatpush1.msra.mxu0 0.0
    %893 = vmatprep.subr.mxu0 0.0
    %894 = vmatpush1.msra.mxu0 0.0
    %895 = vmatprep.subr.mxu0 0.0
    %896 = vmatpush1.msra.mxu0 0.0
    %897 = vmatprep.subr.mxu0 0.0
    %898 = vmatpush1.msra.mxu0 0.0
    %899 = vmatprep.subr.mxu0 0.0
    %900 = vmatpush1.msra.mxu0 0.0
    %901 = vmatprep.subr.mxu0 0.0
    %902 = vmatpush1.msra.mxu0 0.0
    %903 = vmatprep.subr.mxu0 0.0
    %904 = vmatpush1.msra.mxu0 0.0
    %905 = vmatprep.subr.mxu0 0.0
    %906 = vmatpush1.msra.mxu0 0.0
    %907 = vmatprep.subr.mxu0 0.0
    %908 = vmatpush1.msra.mxu0 0.0
    %909 = vmatprep.subr.mxu0 0.0
    %910 = vmatpush1.msra.mxu0 0.0
    %911 = vmatprep.subr.mxu0 0.0
    %912 = vmatpush1.msra.mxu0 0.0
    %913 = vmatprep.subr.mxu0 0.0
    %914 = vmatpush1.msra.mxu0 0.0
    %915 = vmatprep.subr.mxu0 0.0
    %916 = vmatpush1.msra.mxu0 0.0
    %917 = vmatprep.subr.mxu0 0.0
    %918 = vmatpush1.msra.mxu0 0.0
    %919 = vmatprep.subr.mxu0 0.0
    %920 = vmatpush1.msra.mxu0 0.0
    %921 = vmatprep.subr.mxu0 0.0
    %922 = vmatpush1.msra.mxu0 0.0
    %923 = vmatprep.subr.mxu0 0.0
    %924 = vmatpush1.msra.mxu0 0.0
    %925 = vmatprep.subr.mxu0 0.0
    %926 = vmatpush1.msra.mxu0 0.0
    %927 = vmatprep.subr.mxu0 0.0
    %928 = vmatpush1.msra.mxu0 0.0
    %929 = vmatprep.subr.mxu0 0.0
    %930 = vmatpush1.msra.mxu0 0.0
    %931 = vmatprep.subr.mxu0 0.0
    %932 = vmatpush1.msra.mxu0 0.0
    %933 = vmatprep.subr.mxu0 0.0
    %934 = vmatpush1.msra.mxu0 0.0
    %935 = vmatprep.subr.mxu0 0.0
    %936 = vmatpush1.msra.mxu0 0.0
    %937 = vmatprep.subr.mxu0 0.0
    %938 = vmatpush1.msra.mxu0 0.0
    %939 = vmatprep.subr.mxu0 0.0
    %940 = vmatpush1.msra.mxu0 0.0
    %941 = vmatprep.subr.mxu0 0.0
    %942 = vmatpush1.msra.mxu0 0.0
    %943 = vmatprep.subr.mxu0 0.0
    %944 = vmatpush1.msra.mxu0 0.0
    %945 = vmatprep.mubr.f32.mxu0 0.0
    %946 = vmatmul.mubr.f32.gmra.mrb[0].mxu0 %v876
    %v947 = vpop.f32.mrb[0].mxu0
    %v948 = vadd.f32 0.0, %v947
    %v949 = vpop.f32.mrb[0].mxu0
    %950 = vmatprep.mubr.f32.mxu0 0.0
    %951 = vmatmul.mubr.f32.gmra.mrb[0].mxu0 %v879
    %v952 = vpop.f32.mrb[0].mxu0
    %v953 = vadd.f32 0.0, %v952
    %v954 = vpop.f32.mrb[0].mxu0
    %955 = vdwg.mxu0
    %956 = vst.msk [vmem:[#allocation2] sm:$0xff] %vm874, %v948
    %957 = vst.msk [vmem:[#allocation2 + $0x8] sm:$0xff] %vm874, %v953
    %v958 = vld [vmem:[#allocation2] sm:$0xff]
    %v959 = vld [vmem:[#allocation2 + $0x8] sm:$0xff]
    %962 = vrot.lane.b32.xlu0 %v958, 16
    %v963 = vpop.permute.xlu0 %962
    %964 = vrot.lane.b32.xlu0 %v959, 16
    %v965 = vpop.permute.xlu0 %964
    %968 = vrot.lane.b32.xlu0 %v958, 32
    %v969 = vpop.permute.xlu0 %968
    %970 = vrot.lane.b32.xlu0 %v959, 32
    %v971 = vpop.permute.xlu0 %970
    %974 = vrot.lane.b32.xlu0 %v958, 48
    %v975 = vpop.permute.xlu0 %974
    %976 = vrot.lane.b32.xlu0 %v959, 48
    %v977 = vpop.permute.xlu0 %976
    %v980 = vsel %vm874, %v958, %v963
    %v981 = vsel %vm874, %v959, %v965
    %vm982 = vcmask 261120
    %v983 = vsel %vm982, %v980, %v969
    %v984 = vsel %vm982, %v981, %v971
    %vm985 = vcmask 392192
    %v986 = vsel %vm985, %v983, %v975
    %v987 = vsel %vm985, %v984, %v977
    %v988 = vld [vmem:[%s9] sm:$0xff]
    %v989 = vld [vmem:[%s9 + $0x8] sm:$0xff]
    %v990 = vsel %vm874, %v958, 0
    %v992 = vsel %vm874, %v959, 0
    %994 = vmatprep.subr.mxu0 0.0
    %995 = vmatpush1.msra.mxu0 %v988
    %996 = vmatprep.subr.mxu0 0.0
    %997 = vmatpush1.msra.mxu0 %v989
    %998 = vmatprep.subr.mxu0 0.0
    %999 = vmatpush1.msra.mxu0 0.0
    %1000 = vmatprep.subr.mxu0 0.0
    %1001 = vmatpush1.msra.mxu0 0.0
    %1002 = vmatprep.subr.mxu0 0.0
    %1003 = vmatpush1.msra.mxu0 0.0
    %1004 = vmatprep.subr.mxu0 0.0
    %1005 = vmatpush1.msra.mxu0 0.0
    %1006 = vmatprep.subr.mxu0 0.0
    %1007 = vmatpush1.msra.mxu0 0.0
    %1008 = vmatprep.subr.mxu0 0.0
    %1009 = vmatpush1.msra.mxu0 0.0
    %1010 = vmatprep.subr.mxu0 0.0
    %1011 = vmatpush1.msra.mxu0 0.0
    %1012 = vmatprep.subr.mxu0 0.0
    %1013 = vmatpush1.msra.mxu0 0.0
    %1014 = vmatprep.subr.mxu0 0.0
    %1015 = vmatpush1.msra.mxu0 0.0
    %1016 = vmatprep.subr.mxu0 0.0
    %1017 = vmatpush1.msra.mxu0 0.0
    %1018 = vmatprep.subr.mxu0 0.0
    %1019 = vmatpush1.msra.mxu0 0.0
    %1020 = vmatprep.subr.mxu0 0.0
    %1021 = vmatpush1.msra.mxu0 0.0
    %1022 = vmatprep.subr.mxu0 0.0
    %1023 = vmatpush1.msra.mxu0 0.0
    %1024 = vmatprep.subr.mxu0 0.0
    %1025 = vmatpush1.msra.mxu0 0.0
    %1026 = vmatprep.subr.mxu0 0.0
    %1027 = vmatpush1.msra.mxu0 0.0
    %1028 = vmatprep.subr.mxu0 0.0
    %1029 = vmatpush1.msra.mxu0 0.0
    %1030 = vmatprep.subr.mxu0 0.0
    %1031 = vmatpush1.msra.mxu0 0.0
    %1032 = vmatprep.subr.mxu0 0.0
    %1033 = vmatpush1.msra.mxu0 0.0
    %1034 = vmatprep.subr.mxu0 0.0
    %1035 = vmatpush1.msra.mxu0 0.0
    %1036 = vmatprep.subr.mxu0 0.0
    %1037 = vmatpush1.msra.mxu0 0.0
    %1038 = vmatprep.subr.mxu0 0.0
    %1039 = vmatpush1.msra.mxu0 0.0
    %1040 = vmatprep.subr.mxu0 0.0
    %1041 = vmatpush1.msra.mxu0 0.0
    %1042 = vmatprep.subr.mxu0 0.0
    %1043 = vmatpush1.msra.mxu0 0.0
    %1044 = vmatprep.subr.mxu0 0.0
    %1045 = vmatpush1.msra.mxu0 0.0
    %1046 = vmatprep.subr.mxu0 0.0
    %1047 = vmatpush1.msra.mxu0 0.0
    %1048 = vmatprep.subr.mxu0 0.0
    %1049 = vmatpush1.msra.mxu0 0.0
    %1050 = vmatprep.subr.mxu0 0.0
    %1051 = vmatpush1.msra.mxu0 0.0
    %1052 = vmatprep.subr.mxu0 0.0
    %1053 = vmatpush1.msra.mxu0 0.0
    %1054 = vmatprep.subr.mxu0 0.0
    %1055 = vmatpush1.msra.mxu0 0.0
    %1056 = vmatprep.subr.mxu0 0.0
    %1057 = vmatpush1.msra.mxu0 0.0
    %1058 = vmatprep.mubr.f32.mxu0 0.0
    %1059 = vmatmul.mubr.f32.gmra.mrb[0].mxu0 %v990
    %v1060 = vpop.f32.mrb[0].mxu0
    %v1061 = vadd.f32 0.0, %v1060
    %v1062 = vpop.f32.mrb[0].mxu0
    %1063 = vmatprep.mubr.f32.mxu0 0.0
    %1064 = vmatmul.mubr.f32.gmra.mrb[0].mxu0 %v992
    %v1065 = vpop.f32.mrb[0].mxu0
    %v1066 = vadd.f32 0.0, %v1065
    %v1067 = vpop.f32.mrb[0].mxu0
    %1068 = vdwg.mxu0
    %s1069 = scalar_lea.vmem %s9, 16
    %v1070 = vld [vmem:[%s1069] sm:$0xff]
    %v1071 = vld [vmem:[%s1069 + $0x8] sm:$0xff]
    %1072 = vmatprep.subr.mxu0 0.0
    %1073 = vmatpush1.msra.mxu0 %v1070
    %1074 = vmatprep.subr.mxu0 0.0
    %1075 = vmatpush1.msra.mxu0 %v1071
    %1076 = vmatprep.subr.mxu0 0.0
    %1077 = vmatpush1.msra.mxu0 0.0
    %1078 = vmatprep.subr.mxu0 0.0
    %1079 = vmatpush1.msra.mxu0 0.0
    %1080 = vmatprep.subr.mxu0 0.0
    %1081 = vmatpush1.msra.mxu0 0.0
    %1082 = vmatprep.subr.mxu0 0.0
    %1083 = vmatpush1.msra.mxu0 0.0
    %1084 = vmatprep.subr.mxu0 0.0
    %1085 = vmatpush1.msra.mxu0 0.0
    %1086 = vmatprep.subr.mxu0 0.0
    %1087 = vmatpush1.msra.mxu0 0.0
    %1088 = vmatprep.subr.mxu0 0.0
    %1089 = vmatpush1.msra.mxu0 0.0
    %1090 = vmatprep.subr.mxu0 0.0
    %1091 = vmatpush1.msra.mxu0 0.0
    %1092 = vmatprep.subr.mxu0 0.0
    %1093 = vmatpush1.msra.mxu0 0.0
    %1094 = vmatprep.subr.mxu0 0.0
    %1095 = vmatpush1.msra.mxu0 0.0
    %1096 = vmatprep.subr.mxu0 0.0
    %1097 = vmatpush1.msra.mxu0 0.0
    %1098 = vmatprep.subr.mxu0 0.0
    %1099 = vmatpush1.msra.mxu0 0.0
    %1100 = vmatprep.subr.mxu0 0.0
    %1101 = vmatpush1.msra.mxu0 0.0
    %1102 = vmatprep.subr.mxu0 0.0
    %1103 = vmatpush1.msra.mxu0 0.0
    %1104 = vmatprep.subr.mxu0 0.0
    %1105 = vmatpush1.msra.mxu0 0.0
    %1106 = vmatprep.subr.mxu0 0.0
    %1107 = vmatpush1.msra.mxu0 0.0
    %1108 = vmatprep.subr.mxu0 0.0
    %1109 = vmatpush1.msra.mxu0 0.0
    %1110 = vmatprep.subr.mxu0 0.0
    %1111 = vmatpush1.msra.mxu0 0.0
    %1112 = vmatprep.subr.mxu0 0.0
    %1113 = vmatpush1.msra.mxu0 0.0
    %1114 = vmatprep.subr.mxu0 0.0
    %1115 = vmatpush1.msra.mxu0 0.0
    %1116 = vmatprep.subr.mxu0 0.0
    %1117 = vmatpush1.msra.mxu0 0.0
    %1118 = vmatprep.subr.mxu0 0.0
    %1119 = vmatpush1.msra.mxu0 0.0
    %1120 = vmatprep.subr.mxu0 0.0
    %1121 = vmatpush1.msra.mxu0 0.0
    %1122 = vmatprep.subr.mxu0 0.0
    %1123 = vmatpush1.msra.mxu0 0.0
    %1124 = vmatprep.subr.mxu0 0.0
    %1125 = vmatpush1.msra.mxu0 0.0
    %1126 = vmatprep.subr.mxu0 0.0
    %1127 = vmatpush1.msra.mxu0 0.0
    %1128 = vmatprep.subr.mxu0 0.0
    %1129 = vmatpush1.msra.mxu0 0.0
    %1130 = vmatprep.subr.mxu0 0.0
    %1131 = vmatpush1.msra.mxu0 0.0
    %1132 = vmatprep.subr.mxu0 0.0
    %1133 = vmatpush1.msra.mxu0 0.0
    %1134 = vmatprep.subr.mxu0 0.0
    %1135 = vmatpush1.msra.mxu0 0.0
    %1136 = vmatprep.mubr.f32.mxu0 0.0
    %1137 = vmatmul.mubr.f32.gmra.mrb[0].mxu0 %v990
    %v1138 = vpop.f32.mrb[0].mxu0
    %v1139 = vadd.f32 0.0, %v1138
    %v1140 = vpop.f32.mrb[0].mxu0
    %1141 = vmatprep.mubr.f32.mxu0 0.0
    %1142 = vmatmul.mubr.f32.gmra.mrb[0].mxu0 %v992
    %v1143 = vpop.f32.mrb[0].mxu0
    %v1144 = vadd.f32 0.0, %v1143
    %v1145 = vpop.f32.mrb[0].mxu0
    %1146 = vdwg.mxu0
    %v1147 = vld [vmem:[%s11] sm:$0xff]
    %v1148 = vld [vmem:[%s11 + $0x8] sm:$0xff]
    %v1149 = vmul.f32 %v1147, %v1061
    %v1150 = vmul.f32 %v1148, %v1066
    %s1151 = scalar_lea.vmem %s11, 16
    %v1152 = vld [vmem:[%s1151] sm:$0xff]
    %v1153 = vld [vmem:[%s1151 + $0x8] sm:$0xff]
    %v1154 = vmul.f32 %v1152, %v986
    %v1155 = vmul.f32 %v1153, %v987
    %v1156 = vadd.f32 %v1149, %v1154
    %v1157 = vadd.f32 %v1150, %v1155
    %s1158 = scalar_lea.vmem %s11, 32
    %v1159 = vld [vmem:[%s1158] sm:$0xff]
    %v1160 = vld [vmem:[%s1158 + $0x8] sm:$0xff]
    %v1161 = vmul.f32 %v1159, %v1139
    %v1162 = vmul.f32 %v1160, %v1144
    %v1163 = vadd.f32 %v1156, %v1161
    %v1164 = vadd.f32 %v1157, %v1162
    %v1165 = vld [vmem:[%s13] sm:$0x1]
    %v1167 = vlaneseq
    %v1168 = vshrl.u32 %v1167, 7
    %v1169 = vsub.s32 0, %v1168
    %v1170 = vrot.slane %v1165, %v1169
    %1172 = vmatprep.subr.mxu0 0.0
    %1173 = vmatpush1.msra.mxu0 %v1163
    %1174 = vmatprep.subr.mxu0 0.0
    %1175 = vmatpush1.msra.mxu0 %v1164
    %1176 = vmatprep.subr.mxu0 0.0
    %1177 = vmatpush1.msra.mxu0 0.0
    %1178 = vmatprep.subr.mxu0 0.0
    %1179 = vmatpush1.msra.mxu0 0.0
    %1180 = vmatprep.subr.mxu0 0.0
    %1181 = vmatpush1.msra.mxu0 0.0
    %1182 = vmatprep.subr.mxu0 0.0
    %1183 = vmatpush1.msra.mxu0 0.0
    %1184 = vmatprep.subr.mxu0 0.0
    %1185 = vmatpush1.msra.mxu0 0.0
    %1186 = vmatprep.subr.mxu0 0.0
    %1187 = vmatpush1.msra.mxu0 0.0
    %1188 = vmatprep.subr.mxu0 0.0
    %1189 = vmatpush1.msra.mxu0 0.0
    %1190 = vmatprep.subr.mxu0 0.0
    %1191 = vmatpush1.msra.mxu0 0.0
    %1192 = vmatprep.subr.mxu0 0.0
    %1193 = vmatpush1.msra.mxu0 0.0
    %1194 = vmatprep.subr.mxu0 0.0
    %1195 = vmatpush1.msra.mxu0 0.0
    %1196 = vmatprep.subr.mxu0 0.0
    %1197 = vmatpush1.msra.mxu0 0.0
    %1198 = vmatprep.subr.mxu0 0.0
    %1199 = vmatpush1.msra.mxu0 0.0
    %1200 = vmatprep.subr.mxu0 0.0
    %1201 = vmatpush1.msra.mxu0 0.0
    %1202 = vmatprep.subr.mxu0 0.0
    %1203 = vmatpush1.msra.mxu0 0.0
    %1204 = vmatprep.subr.mxu0 0.0
    %1205 = vmatpush1.msra.mxu0 0.0
    %1206 = vmatprep.subr.mxu0 0.0
    %1207 = vmatpush1.msra.mxu0 0.0
    %1208 = vmatprep.subr.mxu0 0.0
    %1209 = vmatpush1.msra.mxu0 0.0
    %1210 = vmatprep.subr.mxu0 0.0
    %1211 = vmatpush1.msra.mxu0 0.0
    %1212 = vmatprep.subr.mxu0 0.0
    %1213 = vmatpush1.msra.mxu0 0.0
    %1214 = vmatprep.subr.mxu0 0.0
    %1215 = vmatpush1.msra.mxu0 0.0
    %1216 = vmatprep.subr.mxu0 0.0
    %1217 = vmatpush1.msra.mxu0 0.0
    %1218 = vmatprep.subr.mxu0 0.0
    %1219 = vmatpush1.msra.mxu0 0.0
    %1220 = vmatprep.subr.mxu0 0.0
    %1221 = vmatpush1.msra.mxu0 0.0
    %1222 = vmatprep.subr.mxu0 0.0
    %1223 = vmatpush1.msra.mxu0 0.0
    %1224 = vmatprep.subr.mxu0 0.0
    %1225 = vmatpush1.msra.mxu0 0.0
    %1226 = vmatprep.subr.mxu0 0.0
    %1227 = vmatpush1.msra.mxu0 0.0
    %1228 = vmatprep.subr.mxu0 0.0
    %1229 = vmatpush1.msra.mxu0 0.0
    %1230 = vmatprep.subr.mxu0 0.0
    %1231 = vmatpush1.msra.mxu0 0.0
    %1232 = vmatprep.subr.mxu0 0.0
    %1233 = vmatpush1.msra.mxu0 0.0
    %1234 = vmatprep.subr.mxu0 0.0
    %1235 = vmatpush1.msra.mxu0 0.0
    %1236 = vmatprep.mubr.f32.mxu0 0.0
    %1237 = vmatmul.mubr.f32.gmra.mrb[0].mxu0 %v876
    %v1238 = vpop.f32.mrb[0].mxu0
    %v1239 = vadd.f32 %v1170, %v1238
    %v1240 = vpop.f32.mrb[0].mxu0
    %1241 = vmatprep.mubr.f32.mxu0 0.0
    %1242 = vmatmul.mubr.f32.gmra.mrb[0].mxu0 %v879
    %v1243 = vpop.f32.mrb[0].mxu0
    %v1244 = vadd.f32 %v1170, %v1243
    %v1245 = vpop.f32.mrb[0].mxu0
    %1246 = vdwg.mxu0
    %1249 = vrot.lane.b32.xlu0 %v1239, 16
    %v1250 = vpop.permute.xlu0 %1249
    %1251 = vrot.lane.b32.xlu0 %v1244, 16
    %v1252 = vpop.permute.xlu0 %1251
    %v1255 = vsel %vm874, %v958, %v1250
    %v1256 = vsel %vm874, %v959, %v1252
    %v1257 = vld [vmem:[%s15] sm:$0xff]
    %v1258 = vld [vmem:[%s15 + $0x8] sm:$0xff]
    %v1259 = vld [vmem:[%s15 + $0x10] sm:$0xff]
    %v1260 = vld [vmem:[%s15 + $0x18] sm:$0xff]
    %v1261 = vld [vmem:[%s15 + $0x20] sm:$0xff]
    %v1262 = vld [vmem:[%s15 + $0x28] sm:$0xff]
    %v1263 = vld [vmem:[%s15 + $0x30] sm:$0xff]
    %v1264 = vld [vmem:[%s15 + $0x38] sm:$0xff]
    %v1265 = vld [vmem:[%s15 + $0x40] sm:$0xff]
    %v1266 = vld [vmem:[%s15 + $0x48] sm:$0xff]
    %v1267 = vld [vmem:[%s17] sm:$0x1]
    %v1269 = vlaneseq
    %v1270 = vshrl.u32 %v1269, 7
    %v1271 = vsub.s32 0, %v1270
    %v1272 = vrot.slane %v1267, %v1271
    %vm1274 = vcmask 654336
    %v1276 = vsel %vm1274, %v1255, 0
    %v1279 = vsel %vm1274, %v1256, 0
    %1281 = vmatprep.subr.mxu0 0.0
    %1282 = vmatpush1.msra.mxu0 %v1257
    %1283 = vmatprep.subr.mxu0 0.0
    %1284 = vmatpush1.msra.mxu0 %v1258
    %1285 = vmatprep.subr.mxu0 0.0
    %1286 = vmatpush1.msra.mxu0 %v1259
    %1287 = vmatprep.subr.mxu0 0.0
    %1288 = vmatpush1.msra.mxu0 %v1260
    %1289 = vmatprep.subr.mxu0 0.0
    %1290 = vmatpush1.msra.mxu0 %v1261
    %1291 = vmatprep.subr.mxu0 0.0
    %1292 = vmatpush1.msra.mxu0 %v1262
    %1293 = vmatprep.subr.mxu0 0.0
    %1294 = vmatpush1.msra.mxu0 %v1263
    %1295 = vmatprep.subr.mxu0 0.0
    %1296 = vmatpush1.msra.mxu0 %v1264
    %1297 = vmatprep.subr.mxu0 0.0
    %1298 = vmatpush1.msra.mxu0 %v1265
    %1299 = vmatprep.subr.mxu0 0.0
    %1300 = vmatpush1.msra.mxu0 %v1266
    %1301 = vmatprep.subr.mxu0 0.0
    %1302 = vmatpush1.msra.mxu0 0.0
    %1303 = vmatprep.subr.mxu0 0.0
    %1304 = vmatpush1.msra.mxu0 0.0
    %1305 = vmatprep.subr.mxu0 0.0
    %1306 = vmatpush1.msra.mxu0 0.0
    %1307 = vmatprep.subr.mxu0 0.0
    %1308 = vmatpush1.msra.mxu0 0.0
    %1309 = vmatprep.subr.mxu0 0.0
    %1310 = vmatpush1.msra.mxu0 0.0
    %1311 = vmatprep.subr.mxu0 0.0
    %1312 = vmatpush1.msra.mxu0 0.0
    %1313 = vmatprep.subr.mxu0 0.0
    %1314 = vmatpush1.msra.mxu0 0.0
    %1315 = vmatprep.subr.mxu0 0.0
    %1316 = vmatpush1.msra.mxu0 0.0
    %1317 = vmatprep.subr.mxu0 0.0
    %1318 = vmatpush1.msra.mxu0 0.0
    %1319 = vmatprep.subr.mxu0 0.0
    %1320 = vmatpush1.msra.mxu0 0.0
    %1321 = vmatprep.subr.mxu0 0.0
    %1322 = vmatpush1.msra.mxu0 0.0
    %1323 = vmatprep.subr.mxu0 0.0
    %1324 = vmatpush1.msra.mxu0 0.0
    %1325 = vmatprep.subr.mxu0 0.0
    %1326 = vmatpush1.msra.mxu0 0.0
    %1327 = vmatprep.subr.mxu0 0.0
    %1328 = vmatpush1.msra.mxu0 0.0
    %1329 = vmatprep.subr.mxu0 0.0
    %1330 = vmatpush1.msra.mxu0 0.0
    %1331 = vmatprep.subr.mxu0 0.0
    %1332 = vmatpush1.msra.mxu0 0.0
    %1333 = vmatprep.subr.mxu0 0.0
    %1334 = vmatpush1.msra.mxu0 0.0
    %1335 = vmatprep.subr.mxu0 0.0
    %1336 = vmatpush1.msra.mxu0 0.0
    %1337 = vmatprep.subr.mxu0 0.0
    %1338 = vmatpush1.msra.mxu0 0.0
    %1339 = vmatprep.subr.mxu0 0.0
    %1340 = vmatpush1.msra.mxu0 0.0
    %1341 = vmatprep.subr.mxu0 0.0
    %1342 = vmatpush1.msra.mxu0 0.0
    %1343 = vmatprep.subr.mxu0 0.0
    %1344 = vmatpush1.msra.mxu0 0.0
    %1345 = vmatprep.mubr.f32.mxu0 0.0
    %1346 = vmatmul.mubr.f32.gmra.mrb[0].mxu0 %v1276
    %v1347 = vpop.f32.mrb[0].mxu0
    %v1348 = vadd.f32 %v1272, %v1347
    %v1349 = vpop.f32.mrb[0].mxu0
    %1350 = vmatprep.mubr.f32.mxu0 0.0
    %1351 = vmatmul.mubr.f32.gmra.mrb[0].mxu0 %v1279
    %v1352 = vpop.f32.mrb[0].mxu0
    %v1353 = vadd.f32 %v1272, %v1352
    %v1354 = vpop.f32.mrb[0].mxu0
    %1355 = vdwg.mxu0
    %v1356 = vmax.f32 %v1348, 0.0
    %v1357 = vmax.f32 %v1353, 0.0
    %v1358 = vld [vmem:[%s19] sm:$0xff]
    %v1359 = vld [vmem:[%s19 + $0x8] sm:$0xff]
    %v1360 = vld [vmem:[%s19 + $0x10] sm:$0xff]
    %v1361 = vld [vmem:[%s19 + $0x18] sm:$0x3f]
    %v1362 = vld [vmem:[%s21] sm:$0x1]
    %v1364 = vlaneseq
    %v1365 = vshrl.u32 %v1364, 7
    %v1366 = vsub.s32 0, %v1365
    %v1367 = vrot.slane %v1362, %v1366
    %vm1369 = vcmask 244736
    %v1371 = vsel %vm1369, %v1356, 0
    %v1374 = vsel %vm1369, %v1357, 0
    %vm1376 = vcmask 1045504
    %v1378 = vsel %vm1376, %v1361, 0
    %1380 = vmatprep.subr.mxu0 0.0
    %1381 = vmatpush1.msra.mxu0 %v1358
    %1382 = vmatprep.subr.mxu0 0.0
    %1383 = vmatpush1.msra.mxu0 %v1359
    %1384 = vmatprep.subr.mxu0 0.0
    %1385 = vmatpush1.msra.mxu0 %v1360
    %1386 = vmatprep.subr.mxu0 0.0
    %1387 = vmatpush1.msra.mxu0 %v1378
    %1388 = vmatprep.subr.mxu0 0.0
    %1389 = vmatpush1.msra.mxu0 0.0
    %1390 = vmatprep.subr.mxu0 0.0
    %1391 = vmatpush1.msra.mxu0 0.0
    %1392 = vmatprep.subr.mxu0 0.0
    %1393 = vmatpush1.msra.mxu0 0.0
    %1394 = vmatprep.subr.mxu0 0.0
    %1395 = vmatpush1.msra.mxu0 0.0
    %1396 = vmatprep.subr.mxu0 0.0
    %1397 = vmatpush1.msra.mxu0 0.0
    %1398 = vmatprep.subr.mxu0 0.0
    %1399 = vmatpush1.msra.mxu0 0.0
    %1400 = vmatprep.subr.mxu0 0.0
    %1401 = vmatpush1.msra.mxu0 0.0
    %1402 = vmatprep.subr.mxu0 0.0
    %1403 = vmatpush1.msra.mxu0 0.0
    %1404 = vmatprep.subr.mxu0 0.0
    %1405 = vmatpush1.msra.mxu0 0.0
    %1406 = vmatprep.subr.mxu0 0.0
    %1407 = vmatpush1.msra.mxu0 0.0
    %1408 = vmatprep.subr.mxu0 0.0
    %1409 = vmatpush1.msra.mxu0 0.0
    %1410 = vmatprep.subr.mxu0 0.0
    %1411 = vmatpush1.msra.mxu0 0.0
    %1412 = vmatprep.subr.mxu0 0.0
    %1413 = vmatpush1.msra.mxu0 0.0
    %1414 = vmatprep.subr.mxu0 0.0
    %1415 = vmatpush1.msra.mxu0 0.0
    %1416 = vmatprep.subr.mxu0 0.0
    %1417 = vmatpush1.msra.mxu0 0.0
    %1418 = vmatprep.subr.mxu0 0.0
    %1419 = vmatpush1.msra.mxu0 0.0
    %1420 = vmatprep.subr.mxu0 0.0
    %1421 = vmatpush1.msra.mxu0 0.0
    %1422 = vmatprep.subr.mxu0 0.0
    %1423 = vmatpush1.msra.mxu0 0.0
    %1424 = vmatprep.subr.mxu0 0.0
    %1425 = vmatpush1.msra.mxu0 0.0
    %1426 = vmatprep.subr.mxu0 0.0
    %1427 = vmatpush1.msra.mxu0 0.0
    %1428 = vmatprep.subr.mxu0 0.0
    %1429 = vmatpush1.msra.mxu0 0.0
    %1430 = vmatprep.subr.mxu0 0.0
    %1431 = vmatpush1.msra.mxu0 0.0
    %1432 = vmatprep.subr.mxu0 0.0
    %1433 = vmatpush1.msra.mxu0 0.0
    %1434 = vmatprep.subr.mxu0 0.0
    %1435 = vmatpush1.msra.mxu0 0.0
    %1436 = vmatprep.subr.mxu0 0.0
    %1437 = vmatpush1.msra.mxu0 0.0
    %1438 = vmatprep.subr.mxu0 0.0
    %1439 = vmatpush1.msra.mxu0 0.0
    %1440 = vmatprep.subr.mxu0 0.0
    %1441 = vmatpush1.msra.mxu0 0.0
    %1442 = vmatprep.subr.mxu0 0.0
    %1443 = vmatpush1.msra.mxu0 0.0
    %1444 = vmatprep.mubr.f32.mxu0 0.0
    %1445 = vmatmul.mubr.f32.gmra.mrb[0].mxu0 %v1371
    %v1446 = vpop.f32.mrb[0].mxu0
    %v1447 = vadd.f32 %v1367, %v1446
    %v1448 = vpop.f32.mrb[0].mxu0
    %1449 = vmatprep.mubr.f32.mxu0 0.0
    %1450 = vmatmul.mubr.f32.gmra.mrb[0].mxu0 %v1374
    %v1451 = vpop.f32.mrb[0].mxu0
    %v1452 = vadd.f32 %v1367, %v1451
    %v1453 = vpop.f32.mrb[0].mxu0
    %1454 = vdwg.mxu0
    %v1455 = vmax.f32 %v1447, 0.0
    %v1456 = vmax.f32 %v1452, 0.0
    %v1458 = vlaneseq
    %v1459 = vshrl.u32 %v1458, 7
    %v1460 = vsub.s32 0, %v1459
    %v1461 = vrot.slane %v767, %v1460
    %v1463 = vmul.f32 %v1455, %v1461
    %v1464 = vmul.f32 %v1456, %v1461
    %v1466 = vlaneseq
    %v1467 = vshrl.u32 %v1466, 7
    %v1468 = vsub.s32 0, %v1467
    %v1469 = vrot.slane %v768, %v1468
    %v1471 = vadd.f32 %v1463, %v1469
    %v1472 = vadd.f32 %v1464, %v1469
    %1475 = vrot.lane.b32.xlu0 %v1471, 16
    %v1476 = vpop.permute.xlu0 %1475
    %1477 = vrot.lane.b32.xlu0 %v1472, 16
    %v1478 = vpop.permute.xlu0 %1477
    %vm1481 = vcmask 162944
    %1482 = vst.msk [vmem:[#allocation2] sm:$0xff] %vm1481, %v1476
    %1483 = vst.msk [vmem:[#allocation2 + $0x8] sm:$0xff] %vm1481, %v1478
    %v1484 = vld [vmem:[#allocation2] sm:$0xff]
    %v1485 = vld [vmem:[#allocation2 + $0x8] sm:$0xff]
    %1488 = vrot.lane.b32.xlu0 %v1484, 20
    %v1489 = vpop.permute.xlu0 %1488
    %1490 = vrot.lane.b32.xlu0 %v1485, 20
    %v1491 = vpop.permute.xlu0 %1490
    %1494 = vrot.lane.b32.xlu0 %v1484, 40
    %v1495 = vpop.permute.xlu0 %1494
    %1496 = vrot.lane.b32.xlu0 %v1485, 40
    %v1497 = vpop.permute.xlu0 %1496
    %1500 = vrot.lane.b32.xlu0 %v1484, 60
    %v1501 = vpop.permute.xlu0 %1500
    %1502 = vrot.lane.b32.xlu0 %v1485, 60
    %v1503 = vpop.permute.xlu0 %1502
    %vm1506 = vcmask 162816
    %v1507 = vsel %vm1506, %v1484, %v1489
    %v1508 = vsel %vm1506, %v1485, %v1491
    %vm1509 = vcmask 326656
    %v1510 = vsel %vm1509, %v1507, %v1495
    %v1511 = vsel %vm1509, %v1508, %v1497
    %vm1512 = vcmask 490496
    %v1513 = vsel %vm1512, %v1510, %v1501
    %v1514 = vsel %vm1512, %v1511, %v1503
    %v1515 = vld [vmem:[%s23] sm:$0xff]
    %v1516 = vld [vmem:[%s23 + $0x8] sm:$0xff]
    %v1517 = vld [vmem:[%s23 + $0x10] sm:$0xf]
    %v1518 = vsel %vm1506, %v1484, 0
    %v1520 = vsel %vm1506, %v1485, 0
    %vm1522 = vcmask 1043456
    %v1524 = vsel %vm1522, %v1517, 0
    %1526 = vmatprep.subr.mxu0 0.0
    %1527 = vmatpush1.msra.mxu0 %v1515
    %1528 = vmatprep.subr.mxu0 0.0
    %1529 = vmatpush1.msra.mxu0 %v1516
    %1530 = vmatprep.subr.mxu0 0.0
    %1531 = vmatpush1.msra.mxu0 %v1524
    %1532 = vmatprep.subr.mxu0 0.0
    %1533 = vmatpush1.msra.mxu0 0.0
    %1534 = vmatprep.subr.mxu0 0.0
    %1535 = vmatpush1.msra.mxu0 0.0
    %1536 = vmatprep.subr.mxu0 0.0
    %1537 = vmatpush1.msra.mxu0 0.0
    %1538 = vmatprep.subr.mxu0 0.0
    %1539 = vmatpush1.msra.mxu0 0.0
    %1540 = vmatprep.subr.mxu0 0.0
    %1541 = vmatpush1.msra.mxu0 0.0
    %1542 = vmatprep.subr.mxu0 0.0
    %1543 = vmatpush1.msra.mxu0 0.0
    %1544 = vmatprep.subr.mxu0 0.0
    %1545 = vmatpush1.msra.mxu0 0.0
    %1546 = vmatprep.subr.mxu0 0.0
    %1547 = vmatpush1.msra.mxu0 0.0
    %1548 = vmatprep.subr.mxu0 0.0
    %1549 = vmatpush1.msra.mxu0 0.0
    %1550 = vmatprep.subr.mxu0 0.0
    %1551 = vmatpush1.msra.mxu0 0.0
    %1552 = vmatprep.subr.mxu0 0.0
    %1553 = vmatpush1.msra.mxu0 0.0
    %1554 = vmatprep.subr.mxu0 0.0
    %1555 = vmatpush1.msra.mxu0 0.0
    %1556 = vmatprep.subr.mxu0 0.0
    %1557 = vmatpush1.msra.mxu0 0.0
    %1558 = vmatprep.subr.mxu0 0.0
    %1559 = vmatpush1.msra.mxu0 0.0
    %1560 = vmatprep.subr.mxu0 0.0
    %1561 = vmatpush1.msra.mxu0 0.0
    %1562 = vmatprep.subr.mxu0 0.0
    %1563 = vmatpush1.msra.mxu0 0.0
    %1564 = vmatprep.subr.mxu0 0.0
    %1565 = vmatpush1.msra.mxu0 0.0
    %1566 = vmatprep.subr.mxu0 0.0
    %1567 = vmatpush1.msra.mxu0 0.0
    %1568 = vmatprep.subr.mxu0 0.0
    %1569 = vmatpush1.msra.mxu0 0.0
    %1570 = vmatprep.subr.mxu0 0.0
    %1571 = vmatpush1.msra.mxu0 0.0
    %1572 = vmatprep.subr.mxu0 0.0
    %1573 = vmatpush1.msra.mxu0 0.0
    %1574 = vmatprep.subr.mxu0 0.0
    %1575 = vmatpush1.msra.mxu0 0.0
    %1576 = vmatprep.subr.mxu0 0.0
    %1577 = vmatpush1.msra.mxu0 0.0
    %1578 = vmatprep.subr.mxu0 0.0
    %1579 = vmatpush1.msra.mxu0 0.0
    %1580 = vmatprep.subr.mxu0 0.0
    %1581 = vmatpush1.msra.mxu0 0.0
    %1582 = vmatprep.subr.mxu0 0.0
    %1583 = vmatpush1.msra.mxu0 0.0
    %1584 = vmatprep.subr.mxu0 0.0
    %1585 = vmatpush1.msra.mxu0 0.0
    %1586 = vmatprep.subr.mxu0 0.0
    %1587 = vmatpush1.msra.mxu0 0.0
    %1588 = vmatprep.subr.mxu0 0.0
    %1589 = vmatpush1.msra.mxu0 0.0
    %1590 = vmatprep.mubr.f32.mxu0 0.0
    %1591 = vmatmul.mubr.f32.gmra.mrb[0].mxu0 %v1518
    %v1592 = vpop.f32.mrb[0].mxu0
    %v1593 = vadd.f32 0.0, %v1592
    %v1594 = vpop.f32.mrb[0].mxu0
    %1595 = vmatprep.mubr.f32.mxu0 0.0
    %1596 = vmatmul.mubr.f32.gmra.mrb[0].mxu0 %v1520
    %v1597 = vpop.f32.mrb[0].mxu0
    %v1598 = vadd.f32 0.0, %v1597
    %v1599 = vpop.f32.mrb[0].mxu0
    %1600 = vdwg.mxu0
    %s1601 = scalar_lea.vmem %s23, 24
    %v1602 = vld [vmem:[%s1601] sm:$0xff]
    %v1603 = vld [vmem:[%s1601 + $0x8] sm:$0xff]
    %v1604 = vld [vmem:[%s1601 + $0x10] sm:$0xf]
    %v1606 = vsel %vm1522, %v1604, 0
    %1608 = vmatprep.subr.mxu0 0.0
    %1609 = vmatpush1.msra.mxu0 %v1602
    %1610 = vmatprep.subr.mxu0 0.0
    %1611 = vmatpush1.msra.mxu0 %v1603
    %1612 = vmatprep.subr.mxu0 0.0
    %1613 = vmatpush1.msra.mxu0 %v1606
    %1614 = vmatprep.subr.mxu0 0.0
    %1615 = vmatpush1.msra.mxu0 0.0
    %1616 = vmatprep.subr.mxu0 0.0
    %1617 = vmatpush1.msra.mxu0 0.0
    %1618 = vmatprep.subr.mxu0 0.0
    %1619 = vmatpush1.msra.mxu0 0.0
    %1620 = vmatprep.subr.mxu0 0.0
    %1621 = vmatpush1.msra.mxu0 0.0
    %1622 = vmatprep.subr.mxu0 0.0
    %1623 = vmatpush1.msra.mxu0 0.0
    %1624 = vmatprep.subr.mxu0 0.0
    %1625 = vmatpush1.msra.mxu0 0.0
    %1626 = vmatprep.subr.mxu0 0.0
    %1627 = vmatpush1.msra.mxu0 0.0
    %1628 = vmatprep.subr.mxu0 0.0
    %1629 = vmatpush1.msra.mxu0 0.0
    %1630 = vmatprep.subr.mxu0 0.0
    %1631 = vmatpush1.msra.mxu0 0.0
    %1632 = vmatprep.subr.mxu0 0.0
    %1633 = vmatpush1.msra.mxu0 0.0
    %1634 = vmatprep.subr.mxu0 0.0
    %1635 = vmatpush1.msra.mxu0 0.0
    %1636 = vmatprep.subr.mxu0 0.0
    %1637 = vmatpush1.msra.mxu0 0.0
    %1638 = vmatprep.subr.mxu0 0.0
    %1639 = vmatpush1.msra.mxu0 0.0
    %1640 = vmatprep.subr.mxu0 0.0
    %1641 = vmatpush1.msra.mxu0 0.0
    %1642 = vmatprep.subr.mxu0 0.0
    %1643 = vmatpush1.msra.mxu0 0.0
    %1644 = vmatprep.subr.mxu0 0.0
    %1645 = vmatpush1.msra.mxu0 0.0
    %1646 = vmatprep.subr.mxu0 0.0
    %1647 = vmatpush1.msra.mxu0 0.0
    %1648 = vmatprep.subr.mxu0 0.0
    %1649 = vmatpush1.msra.mxu0 0.0
    %1650 = vmatprep.subr.mxu0 0.0
    %1651 = vmatpush1.msra.mxu0 0.0
    %1652 = vmatprep.subr.mxu0 0.0
    %1653 = vmatpush1.msra.mxu0 0.0
    %1654 = vmatprep.subr.mxu0 0.0
    %1655 = vmatpush1.msra.mxu0 0.0
    %1656 = vmatprep.subr.mxu0 0.0
    %1657 = vmatpush1.msra.mxu0 0.0
    %1658 = vmatprep.subr.mxu0 0.0
    %1659 = vmatpush1.msra.mxu0 0.0
    %1660 = vmatprep.subr.mxu0 0.0
    %1661 = vmatpush1.msra.mxu0 0.0
    %1662 = vmatprep.subr.mxu0 0.0
    %1663 = vmatpush1.msra.mxu0 0.0
    %1664 = vmatprep.subr.mxu0 0.0
    %1665 = vmatpush1.msra.mxu0 0.0
    %1666 = vmatprep.subr.mxu0 0.0
    %1667 = vmatpush1.msra.mxu0 0.0
    %1668 = vmatprep.subr.mxu0 0.0
    %1669 = vmatpush1.msra.mxu0 0.0
    %1670 = vmatprep.subr.mxu0 0.0
    %1671 = vmatpush1.msra.mxu0 0.0
    %1672 = vmatprep.mubr.f32.mxu0 0.0
    %1673 = vmatmul.mubr.f32.gmra.mrb[0].mxu0 %v1518
    %v1674 = vpop.f32.mrb[0].mxu0
    %v1675 = vadd.f32 0.0, %v1674
    %v1676 = vpop.f32.mrb[0].mxu0
    %1677 = vmatprep.mubr.f32.mxu0 0.0
    %1678 = vmatmul.mubr.f32.gmra.mrb[0].mxu0 %v1520
    %v1679 = vpop.f32.mrb[0].mxu0
    %v1680 = vadd.f32 0.0, %v1679
    %v1681 = vpop.f32.mrb[0].mxu0
    %1682 = vdwg.mxu0
    %v1683 = vld [vmem:[%s25] sm:$0xff]
    %v1684 = vld [vmem:[%s25 + $0x8] sm:$0xff]
    %v1685 = vmul.f32 %v1683, %v1593
    %v1686 = vmul.f32 %v1684, %v1598
    %s1687 = scalar_lea.vmem %s25, 16
    %v1688 = vld [vmem:[%s1687] sm:$0xff]
    %v1689 = vld [vmem:[%s1687 + $0x8] sm:$0xff]
    %v1690 = vmul.f32 %v1688, %v1513
    %v1691 = vmul.f32 %v1689, %v1514
    %v1692 = vadd.f32 %v1685, %v1690
    %v1693 = vadd.f32 %v1686, %v1691
    %s1694 = scalar_lea.vmem %s25, 32
    %v1695 = vld [vmem:[%s1694] sm:$0xff]
    %v1696 = vld [vmem:[%s1694 + $0x8] sm:$0xff]
    %v1697 = vmul.f32 %v1695, %v1675
    %v1698 = vmul.f32 %v1696, %v1680
    %v1699 = vadd.f32 %v1692, %v1697
    %v1700 = vadd.f32 %v1693, %v1698
    %v1701 = vld [vmem:[%s27] sm:$0x1]
    %v1703 = vlaneseq
    %v1704 = vshrl.u32 %v1703, 7
    %v1705 = vsub.s32 0, %v1704
    %v1706 = vrot.slane %v1701, %v1705
    %1708 = vmatprep.subr.mxu0 0.0
    %1709 = vmatpush1.msra.mxu0 %v1699
    %1710 = vmatprep.subr.mxu0 0.0
    %1711 = vmatpush1.msra.mxu0 %v1700
    %1712 = vmatprep.subr.mxu0 0.0
    %1713 = vmatpush1.msra.mxu0 0.0
    %1714 = vmatprep.subr.mxu0 0.0
    %1715 = vmatpush1.msra.mxu0 0.0
    %1716 = vmatprep.subr.mxu0 0.0
    %1717 = vmatpush1.msra.mxu0 0.0
    %1718 = vmatprep.subr.mxu0 0.0
    %1719 = vmatpush1.msra.mxu0 0.0
    %1720 = vmatprep.subr.mxu0 0.0
    %1721 = vmatpush1.msra.mxu0 0.0
    %1722 = vmatprep.subr.mxu0 0.0
    %1723 = vmatpush1.msra.mxu0 0.0
    %1724 = vmatprep.subr.mxu0 0.0
    %1725 = vmatpush1.msra.mxu0 0.0
    %1726 = vmatprep.subr.mxu0 0.0
    %1727 = vmatpush1.msra.mxu0 0.0
    %1728 = vmatprep.subr.mxu0 0.0
    %1729 = vmatpush1.msra.mxu0 0.0
    %1730 = vmatprep.subr.mxu0 0.0
    %1731 = vmatpush1.msra.mxu0 0.0
    %1732 = vmatprep.subr.mxu0 0.0
    %1733 = vmatpush1.msra.mxu0 0.0
    %1734 = vmatprep.subr.mxu0 0.0
    %1735 = vmatpush1.msra.mxu0 0.0
    %1736 = vmatprep.subr.mxu0 0.0
    %1737 = vmatpush1.msra.mxu0 0.0
    %1738 = vmatprep.subr.mxu0 0.0
    %1739 = vmatpush1.msra.mxu0 0.0
    %1740 = vmatprep.subr.mxu0 0.0
    %1741 = vmatpush1.msra.mxu0 0.0
    %1742 = vmatprep.subr.mxu0 0.0
    %1743 = vmatpush1.msra.mxu0 0.0
    %1744 = vmatprep.subr.mxu0 0.0
    %1745 = vmatpush1.msra.mxu0 0.0
    %1746 = vmatprep.subr.mxu0 0.0
    %1747 = vmatpush1.msra.mxu0 0.0
    %1748 = vmatprep.subr.mxu0 0.0
    %1749 = vmatpush1.msra.mxu0 0.0
    %1750 = vmatprep.subr.mxu0 0.0
    %1751 = vmatpush1.msra.mxu0 0.0
    %1752 = vmatprep.subr.mxu0 0.0
    %1753 = vmatpush1.msra.mxu0 0.0
    %1754 = vmatprep.subr.mxu0 0.0
    %1755 = vmatpush1.msra.mxu0 0.0
    %1756 = vmatprep.subr.mxu0 0.0
    %1757 = vmatpush1.msra.mxu0 0.0
    %1758 = vmatprep.subr.mxu0 0.0
    %1759 = vmatpush1.msra.mxu0 0.0
    %1760 = vmatprep.subr.mxu0 0.0
    %1761 = vmatpush1.msra.mxu0 0.0
    %1762 = vmatprep.subr.mxu0 0.0
    %1763 = vmatpush1.msra.mxu0 0.0
    %1764 = vmatprep.subr.mxu0 0.0
    %1765 = vmatpush1.msra.mxu0 0.0
    %1766 = vmatprep.subr.mxu0 0.0
    %1767 = vmatpush1.msra.mxu0 0.0
    %1768 = vmatprep.subr.mxu0 0.0
    %1769 = vmatpush1.msra.mxu0 0.0
    %1770 = vmatprep.subr.mxu0 0.0
    %1771 = vmatpush1.msra.mxu0 0.0
    %1772 = vmatprep.mubr.f32.mxu0 0.0
    %1773 = vmatmul.mubr.f32.gmra.mrb[0].mxu0 %v876
    %v1774 = vpop.f32.mrb[0].mxu0
    %v1775 = vadd.f32 %v1706, %v1774
    %v1776 = vpop.f32.mrb[0].mxu0
    %1777 = vmatprep.mubr.f32.mxu0 0.0
    %1778 = vmatmul.mubr.f32.gmra.mrb[0].mxu0 %v879
    %v1779 = vpop.f32.mrb[0].mxu0
    %v1780 = vadd.f32 %v1706, %v1779
    %v1781 = vpop.f32.mrb[0].mxu0
    %1782 = vdwg.mxu0
    %1785 = vrot.lane.b32.xlu0 %v1775, 20
    %v1786 = vpop.permute.xlu0 %1785
    %1787 = vrot.lane.b32.xlu0 %v1780, 20
    %v1788 = vpop.permute.xlu0 %1787
    %v1791 = vsel %vm1506, %v1484, %v1786
    %v1792 = vsel %vm1506, %v1485, %v1788
    %v1793 = vld [vmem:[%s29] sm:$0xff]
    %v1794 = vld [vmem:[%s29 + $0x8] sm:$0xff]
    %v1795 = vld [vmem:[%s29 + $0x10] sm:$0xff]
    %v1796 = vld [vmem:[%s29 + $0x18] sm:$0xff]
    %v1797 = vld [vmem:[%s29 + $0x20] sm:$0xff]
    %v1798 = vld [vmem:[%s29 + $0x28] sm:$0xff]
    %v1799 = vld [vmem:[%s29 + $0x30] sm:$0xff]
    %v1800 = vld [vmem:[%s29 + $0x38] sm:$0xff]
    %v1801 = vld [vmem:[%s29 + $0x40] sm:$0xff]
    %v1802 = vld [vmem:[%s29 + $0x48] sm:$0xff]
    %v1803 = vld [vmem:[%s29 + $0x50] sm:$0xff]
    %v1804 = vld [vmem:[%s29 + $0x58] sm:$0xff]
    %v1805 = vld [vmem:[%s29 + $0x60] sm:$0xf]
    %v1806 = vld [vmem:[%s31] sm:$0x1]
    %v1808 = vlaneseq
    %v1809 = vshrl.u32 %v1808, 7
    %v1810 = vsub.s32 0, %v1809
    %v1811 = vrot.slane %v1806, %v1810
    %vm1813 = vcmask 818176
    %v1815 = vsel %vm1813, %v1791, 0
    %v1818 = vsel %vm1813, %v1792, 0
    %v1821 = vsel %vm1522, %v1805, 0
    %1823 = vmatprep.subr.mxu0 0.0
    %1824 = vmatpush1.msra.mxu0 %v1793
    %1825 = vmatprep.subr.mxu0 0.0
    %1826 = vmatpush1.msra.mxu0 %v1794
    %1827 = vmatprep.subr.mxu0 0.0
    %1828 = vmatpush1.msra.mxu0 %v1795
    %1829 = vmatprep.subr.mxu0 0.0
    %1830 = vmatpush1.msra.mxu0 %v1796
    %1831 = vmatprep.subr.mxu0 0.0
    %1832 = vmatpush1.msra.mxu0 %v1797
    %1833 = vmatprep.subr.mxu0 0.0
    %1834 = vmatpush1.msra.mxu0 %v1798
    %1835 = vmatprep.subr.mxu0 0.0
    %1836 = vmatpush1.msra.mxu0 %v1799
    %1837 = vmatprep.subr.mxu0 0.0
    %1838 = vmatpush1.msra.mxu0 %v1800
    %1839 = vmatprep.subr.mxu0 0.0
    %1840 = vmatpush1.msra.mxu0 %v1801
    %1841 = vmatprep.subr.mxu0 0.0
    %1842 = vmatpush1.msra.mxu0 %v1802
    %1843 = vmatprep.subr.mxu0 0.0
    %1844 = vmatpush1.msra.mxu0 %v1803
    %1845 = vmatprep.subr.mxu0 0.0
    %1846 = vmatpush1.msra.mxu0 %v1804
    %1847 = vmatprep.subr.mxu0 0.0
    %1848 = vmatpush1.msra.mxu0 %v1821
    %1849 = vmatprep.subr.mxu0 0.0
    %1850 = vmatpush1.msra.mxu0 0.0
    %1851 = vmatprep.subr.mxu0 0.0
    %1852 = vmatpush1.msra.mxu0 0.0
    %1853 = vmatprep.subr.mxu0 0.0
    %1854 = vmatpush1.msra.mxu0 0.0
    %1855 = vmatprep.subr.mxu0 0.0
    %1856 = vmatpush1.msra.mxu0 0.0
    %1857 = vmatprep.subr.mxu0 0.0
    %1858 = vmatpush1.msra.mxu0 0.0
    %1859 = vmatprep.subr.mxu0 0.0
    %1860 = vmatpush1.msra.mxu0 0.0
    %1861 = vmatprep.subr.mxu0 0.0
    %1862 = vmatpush1.msra.mxu0 0.0
    %1863 = vmatprep.subr.mxu0 0.0
    %1864 = vmatpush1.msra.mxu0 0.0
    %1865 = vmatprep.subr.mxu0 0.0
    %1866 = vmatpush1.msra.mxu0 0.0
    %1867 = vmatprep.subr.mxu0 0.0
    %1868 = vmatpush1.msra.mxu0 0.0
    %1869 = vmatprep.subr.mxu0 0.0
    %1870 = vmatpush1.msra.mxu0 0.0
    %1871 = vmatprep.subr.mxu0 0.0
    %1872 = vmatpush1.msra.mxu0 0.0
    %1873 = vmatprep.subr.mxu0 0.0
    %1874 = vmatpush1.msra.mxu0 0.0
    %1875 = vmatprep.subr.mxu0 0.0
    %1876 = vmatpush1.msra.mxu0 0.0
    %1877 = vmatprep.subr.mxu0 0.0
    %1878 = vmatpush1.msra.mxu0 0.0
    %1879 = vmatprep.subr.mxu0 0.0
    %1880 = vmatpush1.msra.mxu0 0.0
    %1881 = vmatprep.subr.mxu0 0.0
    %1882 = vmatpush1.msra.mxu0 0.0
    %1883 = vmatprep.subr.mxu0 0.0
    %1884 = vmatpush1.msra.mxu0 0.0
    %1885 = vmatprep.subr.mxu0 0.0
    %1886 = vmatpush1.msra.mxu0 0.0
    %1887 = vmatprep.mubr.f32.mxu0 0.0
    %1888 = vmatmul.mubr.f32.gmra.mrb[0].mxu0 %v1815
    %v1889 = vpop.f32.mrb[0].mxu0
    %v1890 = vadd.f32 %v1811, %v1889
    %v1891 = vpop.f32.mrb[0].mxu0
    %1892 = vmatprep.mubr.f32.mxu0 0.0
    %1893 = vmatmul.mubr.f32.gmra.mrb[0].mxu0 %v1818
    %v1894 = vpop.f32.mrb[0].mxu0
    %v1895 = vadd.f32 %v1811, %v1894
    %v1896 = vpop.f32.mrb[0].mxu0
    %1897 = vdwg.mxu0
    %v1898 = vmax.f32 %v1890, 0.0
    %v1899 = vmax.f32 %v1895, 0.0
    %v1900 = vld [vmem:[%s33] sm:$0xff]
    %v1901 = vld [vmem:[%s33 + $0x8] sm:$0xff]
    %v1902 = vld [vmem:[%s33 + $0x10] sm:$0xff]
    %v1903 = vld [vmem:[%s33 + $0x18] sm:$0xff]
    %v1904 = vld [vmem:[%s33 + $0x20] sm:$0xf]
    %v1905 = vld [vmem:[%s35] sm:$0x1]
    %v1907 = vlaneseq
    %v1908 = vshrl.u32 %v1907, 7
    %v1909 = vsub.s32 0, %v1908
    %v1910 = vrot.slane %v1905, %v1909
    %vm1912 = vcmask 293888
    %v1914 = vsel %vm1912, %v1898, 0
    %v1917 = vsel %vm1912, %v1899, 0
    %v1920 = vsel %vm1522, %v1904, 0
    %1922 = vmatprep.subr.mxu0 0.0
    %1923 = vmatpush1.msra.mxu0 %v1900
    %1924 = vmatprep.subr.mxu0 0.0
    %1925 = vmatpush1.msra.mxu0 %v1901
    %1926 = vmatprep.subr.mxu0 0.0
    %1927 = vmatpush1.msra.mxu0 %v1902
    %1928 = vmatprep.subr.mxu0 0.0
    %1929 = vmatpush1.msra.mxu0 %v1903
    %1930 = vmatprep.subr.mxu0 0.0
    %1931 = vmatpush1.msra.mxu0 %v1920
    %1932 = vmatprep.subr.mxu0 0.0
    %1933 = vmatpush1.msra.mxu0 0.0
    %1934 = vmatprep.subr.mxu0 0.0
    %1935 = vmatpush1.msra.mxu0 0.0
    %1936 = vmatprep.subr.mxu0 0.0
    %1937 = vmatpush1.msra.mxu0 0.0
    %1938 = vmatprep.subr.mxu0 0.0
    %1939 = vmatpush1.msra.mxu0 0.0
    %1940 = vmatprep.subr.mxu0 0.0
    %1941 = vmatpush1.msra.mxu0 0.0
    %1942 = vmatprep.subr.mxu0 0.0
    %1943 = vmatpush1.msra.mxu0 0.0
    %1944 = vmatprep.subr.mxu0 0.0
    %1945 = vmatpush1.msra.mxu0 0.0
    %1946 = vmatprep.subr.mxu0 0.0
    %1947 = vmatpush1.msra.mxu0 0.0
    %1948 = vmatprep.subr.mxu0 0.0
    %1949 = vmatpush1.msra.mxu0 0.0
    %1950 = vmatprep.subr.mxu0 0.0
    %1951 = vmatpush1.msra.mxu0 0.0
    %1952 = vmatprep.subr.mxu0 0.0
    %1953 = vmatpush1.msra.mxu0 0.0
    %1954 = vmatprep.subr.mxu0 0.0
    %1955 = vmatpush1.msra.mxu0 0.0
    %1956 = vmatprep.subr.mxu0 0.0
    %1957 = vmatpush1.msra.mxu0 0.0
    %1958 = vmatprep.subr.mxu0 0.0
    %1959 = vmatpush1.msra.mxu0 0.0
    %1960 = vmatprep.subr.mxu0 0.0
    %1961 = vmatpush1.msra.mxu0 0.0
    %1962 = vmatprep.subr.mxu0 0.0
    %1963 = vmatpush1.msra.mxu0 0.0
    %1964 = vmatprep.subr.mxu0 0.0
    %1965 = vmatpush1.msra.mxu0 0.0
    %1966 = vmatprep.subr.mxu0 0.0
    %1967 = vmatpush1.msra.mxu0 0.0
    %1968 = vmatprep.subr.mxu0 0.0
    %1969 = vmatpush1.msra.mxu0 0.0
    %1970 = vmatprep.subr.mxu0 0.0
    %1971 = vmatpush1.msra.mxu0 0.0
    %1972 = vmatprep.subr.mxu0 0.0
    %1973 = vmatpush1.msra.mxu0 0.0
    %1974 = vmatprep.subr.mxu0 0.0
    %1975 = vmatpush1.msra.mxu0 0.0
    %1976 = vmatprep.subr.mxu0 0.0
    %1977 = vmatpush1.msra.mxu0 0.0
    %1978 = vmatprep.subr.mxu0 0.0
    %1979 = vmatpush1.msra.mxu0 0.0
    %1980 = vmatprep.subr.mxu0 0.0
    %1981 = vmatpush1.msra.mxu0 0.0
    %1982 = vmatprep.subr.mxu0 0.0
    %1983 = vmatpush1.msra.mxu0 0.0
    %1984 = vmatprep.subr.mxu0 0.0
    %1985 = vmatpush1.msra.mxu0 0.0
    %1986 = vmatprep.mubr.f32.mxu0 0.0
    %1987 = vmatmul.mubr.f32.gmra.mrb[0].mxu0 %v1914
    %v1988 = vpop.f32.mrb[0].mxu0
    %v1989 = vadd.f32 %v1910, %v1988
    %v1990 = vpop.f32.mrb[0].mxu0
    %1991 = vmatprep.mubr.f32.mxu0 0.0
    %1992 = vmatmul.mubr.f32.gmra.mrb[0].mxu0 %v1917
    %v1993 = vpop.f32.mrb[0].mxu0
    %v1994 = vadd.f32 %v1910, %v1993
    %v1995 = vpop.f32.mrb[0].mxu0
    %1996 = vdwg.mxu0
    %v1997 = vmax.f32 %v1989, 0.0
    %v1998 = vmax.f32 %v1994, 0.0
    %v1999 = vmul.f32 %v1997, %v1461
    %v2000 = vmul.f32 %v1998, %v1461
    %v2001 = vadd.f32 %v1999, %v1469
    %v2002 = vadd.f32 %v2000, %v1469
    %2005 = vrot.lane.b32.xlu0 %v2001, 20
    %v2006 = vpop.permute.xlu0 %2005
    %2007 = vrot.lane.b32.xlu0 %v2002, 20
    %v2008 = vpop.permute.xlu0 %2007
    %vm2011 = vcmask 195744
    %2012 = vst.msk [vmem:[#allocation2] sm:$0xff] %vm2011, %v2006
    %2013 = vst.msk [vmem:[#allocation2 + $0x8] sm:$0xff] %vm2011, %v2008
    %v2014 = vld [vmem:[#allocation2] sm:$0xff]
    %v2015 = vld [vmem:[#allocation2 + $0x8] sm:$0xff]
    %v2016 = vld [vmem:[%s41] sm:$0xff]
    %v2017 = vld [vmem:[%s41 + $0x8] sm:$0xff]
    %v2018 = vld [vmem:[%s41 + $0x10] sm:$0xff]
    %v2019 = vld [vmem:[%s43] sm:$0x1]
    %v2021 = vlaneseq
    %v2022 = vshrl.u32 %v2021, 7
    %v2023 = vsub.s32 0, %v2022
    %v2024 = vrot.slane %v2019, %v2023
    %vm2026 = vcmask 195584
    %v2028 = vsel %vm2026, %v2014, 0
    %v2031 = vsel %vm2026, %v2015, 0
    %2033 = vmatprep.subr.mxu0 0.0
    %2034 = vmatpush1.msra.mxu0 %v2016
    %2035 = vmatprep.subr.mxu0 0.0
    %2036 = vmatpush1.msra.mxu0 %v2017
    %2037 = vmatprep.subr.mxu0 0.0
    %2038 = vmatpush1.msra.mxu0 %v2018
    %2039 = vmatprep.subr.mxu0 0.0
    %2040 = vmatpush1.msra.mxu0 0.0
    %2041 = vmatprep.subr.mxu0 0.0
    %2042 = vmatpush1.msra.mxu0 0.0
    %2043 = vmatprep.subr.mxu0 0.0
    %2044 = vmatpush1.msra.mxu0 0.0
    %2045 = vmatprep.subr.mxu0 0.0
    %2046 = vmatpush1.msra.mxu0 0.0
    %2047 = vmatprep.subr.mxu0 0.0
    %2048 = vmatpush1.msra.mxu0 0.0
    %2049 = vmatprep.subr.mxu0 0.0
    %2050 = vmatpush1.msra.mxu0 0.0
    %2051 = vmatprep.subr.mxu0 0.0
    %2052 = vmatpush1.msra.mxu0 0.0
    %2053 = vmatprep.subr.mxu0 0.0
    %2054 = vmatpush1.msra.mxu0 0.0
    %2055 = vmatprep.subr.mxu0 0.0
    %2056 = vmatpush1.msra.mxu0 0.0
    %2057 = vmatprep.subr.mxu0 0.0
    %2058 = vmatpush1.msra.mxu0 0.0
    %2059 = vmatprep.subr.mxu0 0.0
    %2060 = vmatpush1.msra.mxu0 0.0
    %2061 = vmatprep.subr.mxu0 0.0
    %2062 = vmatpush1.msra.mxu0 0.0
    %2063 = vmatprep.subr.mxu0 0.0
    %2064 = vmatpush1.msra.mxu0 0.0
    %2065 = vmatprep.subr.mxu0 0.0
    %2066 = vmatpush1.msra.mxu0 0.0
    %2067 = vmatprep.subr.mxu0 0.0
    %2068 = vmatpush1.msra.mxu0 0.0
    %2069 = vmatprep.subr.mxu0 0.0
    %2070 = vmatpush1.msra.mxu0 0.0
    %2071 = vmatprep.subr.mxu0 0.0
    %2072 = vmatpush1.msra.mxu0 0.0
    %2073 = vmatprep.subr.mxu0 0.0
    %2074 = vmatpush1.msra.mxu0 0.0
    %2075 = vmatprep.subr.mxu0 0.0
    %2076 = vmatpush1.msra.mxu0 0.0
    %2077 = vmatprep.subr.mxu0 0.0
    %2078 = vmatpush1.msra.mxu0 0.0
    %2079 = vmatprep.subr.mxu0 0.0
    %2080 = vmatpush1.msra.mxu0 0.0
    %2081 = vmatprep.subr.mxu0 0.0
    %2082 = vmatpush1.msra.mxu0 0.0
    %2083 = vmatprep.subr.mxu0 0.0
    %2084 = vmatpush1.msra.mxu0 0.0
    %2085 = vmatprep.subr.mxu0 0.0
    %2086 = vmatpush1.msra.mxu0 0.0
    %2087 = vmatprep.subr.mxu0 0.0
    %2088 = vmatpush1.msra.mxu0 0.0
    %2089 = vmatprep.subr.mxu0 0.0
    %2090 = vmatpush1.msra.mxu0 0.0
    %2091 = vmatprep.subr.mxu0 0.0
    %2092 = vmatpush1.msra.mxu0 0.0
    %2093 = vmatprep.subr.mxu0 0.0
    %2094 = vmatpush1.msra.mxu0 0.0
    %2095 = vmatprep.subr.mxu0 0.0
    %2096 = vmatpush1.msra.mxu0 0.0
    %2097 = vmatprep.mubr.f32.mxu0 0.0
    %2098 = vmatmul.mubr.f32.gmra.mrb[0].mxu0 %v2028
    %v2099 = vpop.f32.mrb[0].mxu0
    %v2100 = vadd.f32 %v2024, %v2099
    %v2101 = vpop.f32.mrb[0].mxu0
    %2102 = vmatprep.mubr.f32.mxu0 0.0
    %2103 = vmatmul.mubr.f32.gmra.mrb[0].mxu0 %v2031
    %v2104 = vpop.f32.mrb[0].mxu0
    %v2105 = vadd.f32 %v2024, %v2104
    %v2106 = vpop.f32.mrb[0].mxu0
    %2107 = vdwg.mxu0
    %2108 = vmatprep.subr.mxu0 0.0
    %2109 = vmatpush1.msra.mxu0 %v2100
    %2110 = vmatprep.subr.mxu0 0.0
    %2111 = vmatpush1.msra.mxu0 %v2105
    %2112 = vmatprep.subr.mxu0 0.0
    %2113 = vmatpush1.msra.mxu0 0.0
    %2114 = vmatprep.subr.mxu0 0.0
    %2115 = vmatpush1.msra.mxu0 0.0
    %2116 = vmatprep.subr.mxu0 0.0
    %2117 = vmatpush1.msra.mxu0 0.0
    %2118 = vmatprep.subr.mxu0 0.0
    %2119 = vmatpush1.msra.mxu0 0.0
    %2120 = vmatprep.subr.mxu0 0.0
    %2121 = vmatpush1.msra.mxu0 0.0
    %2122 = vmatprep.subr.mxu0 0.0
    %2123 = vmatpush1.msra.mxu0 0.0
    %2124 = vmatprep.subr.mxu0 0.0
    %2125 = vmatpush1.msra.mxu0 0.0
    %2126 = vmatprep.subr.mxu0 0.0
    %2127 = vmatpush1.msra.mxu0 0.0
    %2128 = vmatprep.subr.mxu0 0.0
    %2129 = vmatpush1.msra.mxu0 0.0
    %2130 = vmatprep.subr.mxu0 0.0
    %2131 = vmatpush1.msra.mxu0 0.0
    %2132 = vmatprep.subr.mxu0 0.0
    %2133 = vmatpush1.msra.mxu0 0.0
    %2134 = vmatprep.subr.mxu0 0.0
    %2135 = vmatpush1.msra.mxu0 0.0
    %2136 = vmatprep.subr.mxu0 0.0
    %2137 = vmatpush1.msra.mxu0 0.0
    %2138 = vmatprep.subr.mxu0 0.0
    %2139 = vmatpush1.msra.mxu0 0.0
    %2140 = vmatprep.subr.mxu0 0.0
    %2141 = vmatpush1.msra.mxu0 0.0
    %2142 = vmatprep.subr.mxu0 0.0
    %2143 = vmatpush1.msra.mxu0 0.0
    %2144 = vmatprep.subr.mxu0 0.0
    %2145 = vmatpush1.msra.mxu0 0.0
    %2146 = vmatprep.subr.mxu0 0.0
    %2147 = vmatpush1.msra.mxu0 0.0
    %2148 = vmatprep.subr.mxu0 0.0
    %2149 = vmatpush1.msra.mxu0 0.0
    %2150 = vmatprep.subr.mxu0 0.0
    %2151 = vmatpush1.msra.mxu0 0.0
    %2152 = vmatprep.subr.mxu0 0.0
    %2153 = vmatpush1.msra.mxu0 0.0
    %2154 = vmatprep.subr.mxu0 0.0
    %2155 = vmatpush1.msra.mxu0 0.0
    %2156 = vmatprep.subr.mxu0 0.0
    %2157 = vmatpush1.msra.mxu0 0.0
    %2158 = vmatprep.subr.mxu0 0.0
    %2159 = vmatpush1.msra.mxu0 0.0
    %2160 = vmatprep.subr.mxu0 0.0
    %2161 = vmatpush1.msra.mxu0 0.0
    %2162 = vmatprep.subr.mxu0 0.0
    %2163 = vmatpush1.msra.mxu0 0.0
    %2164 = vmatprep.subr.mxu0 0.0
    %2165 = vmatpush1.msra.mxu0 0.0
    %2166 = vmatprep.subr.mxu0 0.0
    %2167 = vmatpush1.msra.mxu0 0.0
    %2168 = vmatprep.subr.mxu0 0.0
    %2169 = vmatpush1.msra.mxu0 0.0
    %2170 = vmatprep.subr.mxu0 0.0
    %2171 = vmatpush1.msra.mxu0 0.0
    %2172 = vmatprep.mubr.f32.mxu0 0.0
    %2173 = vmatmul.mubr.f32.gmra.mrb[0].mxu0 %v876
    %v2174 = vpop.f32.mrb[0].mxu0
    %v2175 = vadd.f32 0.0, %v2174
    %v2176 = vpop.f32.mrb[0].mxu0
    %2177 = vmatprep.mubr.f32.mxu0 0.0
    %2178 = vmatmul.mubr.f32.gmra.mrb[0].mxu0 %v879
    %v2179 = vpop.f32.mrb[0].mxu0
    %v2180 = vadd.f32 0.0, %v2179
    %v2181 = vpop.f32.mrb[0].mxu0
    %2182 = vdwg.mxu0
    %v2183 = vld [vmem:[%s45] sm:$0x3]
    %v2185 = vsel %vm874, %v2183, 0
    %2187 = vmatprep.subr.mxu0 0.0
    %2188 = vmatpush1.msra.mxu0 %v2175
    %2189 = vmatprep.subr.mxu0 0.0
    %2190 = vmatpush1.msra.mxu0 %v2180
    %2191 = vmatprep.subr.mxu0 0.0
    %2192 = vmatpush1.msra.mxu0 0.0
    %2193 = vmatprep.subr.mxu0 0.0
    %2194 = vmatpush1.msra.mxu0 0.0
    %2195 = vmatprep.subr.mxu0 0.0
    %2196 = vmatpush1.msra.mxu0 0.0
    %2197 = vmatprep.subr.mxu0 0.0
    %2198 = vmatpush1.msra.mxu0 0.0
    %2199 = vmatprep.subr.mxu0 0.0
    %2200 = vmatpush1.msra.mxu0 0.0
    %2201 = vmatprep.subr.mxu0 0.0
    %2202 = vmatpush1.msra.mxu0 0.0
    %2203 = vmatprep.subr.mxu0 0.0
    %2204 = vmatpush1.msra.mxu0 0.0
    %2205 = vmatprep.subr.mxu0 0.0
    %2206 = vmatpush1.msra.mxu0 0.0
    %2207 = vmatprep.subr.mxu0 0.0
    %2208 = vmatpush1.msra.mxu0 0.0
    %2209 = vmatprep.subr.mxu0 0.0
    %2210 = vmatpush1.msra.mxu0 0.0
    %2211 = vmatprep.subr.mxu0 0.0
    %2212 = vmatpush1.msra.mxu0 0.0
    %2213 = vmatprep.subr.mxu0 0.0
    %2214 = vmatpush1.msra.mxu0 0.0
    %2215 = vmatprep.subr.mxu0 0.0
    %2216 = vmatpush1.msra.mxu0 0.0
    %2217 = vmatprep.subr.mxu0 0.0
    %2218 = vmatpush1.msra.mxu0 0.0
    %2219 = vmatprep.subr.mxu0 0.0
    %2220 = vmatpush1.msra.mxu0 0.0
    %2221 = vmatprep.subr.mxu0 0.0
    %2222 = vmatpush1.msra.mxu0 0.0
    %2223 = vmatprep.subr.mxu0 0.0
    %2224 = vmatpush1.msra.mxu0 0.0
    %2225 = vmatprep.subr.mxu0 0.0
    %2226 = vmatpush1.msra.mxu0 0.0
    %2227 = vmatprep.subr.mxu0 0.0
    %2228 = vmatpush1.msra.mxu0 0.0
    %2229 = vmatprep.subr.mxu0 0.0
    %2230 = vmatpush1.msra.mxu0 0.0
    %2231 = vmatprep.subr.mxu0 0.0
    %2232 = vmatpush1.msra.mxu0 0.0
    %2233 = vmatprep.subr.mxu0 0.0
    %2234 = vmatpush1.msra.mxu0 0.0
    %2235 = vmatprep.subr.mxu0 0.0
    %2236 = vmatpush1.msra.mxu0 0.0
    %2237 = vmatprep.subr.mxu0 0.0
    %2238 = vmatpush1.msra.mxu0 0.0
    %2239 = vmatprep.subr.mxu0 0.0
    %2240 = vmatpush1.msra.mxu0 0.0
    %2241 = vmatprep.subr.mxu0 0.0
    %2242 = vmatpush1.msra.mxu0 0.0
    %2243 = vmatprep.subr.mxu0 0.0
    %2244 = vmatpush1.msra.mxu0 0.0
    %2245 = vmatprep.subr.mxu0 0.0
    %2246 = vmatpush1.msra.mxu0 0.0
    %2247 = vmatprep.subr.mxu0 0.0
    %2248 = vmatpush1.msra.mxu0 0.0
    %2249 = vmatprep.subr.mxu0 0.0
    %2250 = vmatpush1.msra.mxu0 0.0
    %2251 = vmatprep.mubr.f32.mxu0 0.0
    %2252 = vmatmul.mubr.f32.gmra.mrb[0].mxu0 %v2185
    %v2253 = vpop.f32.mrb[0].mxu0
    %v2254 = vadd.f32 0.0, %v2253
    %v2255 = vpop.f32.mrb[0].mxu0
    %2256 = vdwg.mxu0
    %s2257 = smul.u32 4, 32
    %s2258 = smul.u32 %s2257, 4
    %s2259 = sshll.u32 %s2258, 4
    %2260 = dma.done [#allocation6], %s2259
    %v2261 = vld [vmem:[%s47] sm:$0xf]
    %v2264 = vunpack.c.l.s4 1983009808
    %v2265 = vunpack.c.0.s8 %v2264
    %v2266 = vlaneseq
    %v2267 = vshrl.u32 %v2266, 7
    %v2268 = vsub.s32 %v2265, %v2267
    %v2269 = vrot.slane %v2261, %v2268
    %v2270 = vcombine.high %v2269, %v2269
    %v2273 = vpack.c.bf16 %v2269, %v2269
    %v2274 = vpack.c.bf16 %v2270, %v2270
    %v2275 = vld [vmem:[#allocation3] sm:$0xff]
    %v2276 = vld [vmem:[#allocation3 + $0x8] sm:$0xff]
    %v2277 = vld [vmem:[#allocation3 + $0x10] sm:$0xff]
    %v2278 = vld [vmem:[#allocation3 + $0x18] sm:$0xff]
    %v2279 = vld [vmem:[#allocation3 + $0x20] sm:$0xff]
    %v2280 = vld [vmem:[#allocation3 + $0x28] sm:$0xff]
    %v2281 = vld [vmem:[#allocation3 + $0x30] sm:$0xff]
    %v2282 = vld [vmem:[#allocation3 + $0x38] sm:$0xff]
    %v2283 = vld [vmem:[#allocation3 + $0x40] sm:$0xff]
    %v2284 = vld [vmem:[#allocation3 + $0x48] sm:$0xff]
    %v2285 = vld [vmem:[#allocation3 + $0x50] sm:$0xff]
    %v2286 = vld [vmem:[#allocation3 + $0x58] sm:$0xff]
    %v2287 = vld [vmem:[#allocation3 + $0x60] sm:$0xff]
    %v2288 = vld [vmem:[#allocation3 + $0x68] sm:$0xff]
    %v2289 = vld [vmem:[#allocation3 + $0x70] sm:$0xff]
    %v2290 = vld [vmem:[#allocation3 + $0x78] sm:$0xff]
    %v2291 = vld [vmem:[#allocation3 + $0x80] sm:$0xff]
    %v2292 = vld [vmem:[#allocation3 + $0x88] sm:$0xff]
    %v2293 = vld [vmem:[#allocation3 + $0x90] sm:$0xff]
    %v2294 = vld [vmem:[#allocation3 + $0x98] sm:$0xff]
    %v2295 = vld [vmem:[#allocation3 + $0xa0] sm:$0xff]
    %v2296 = vld [vmem:[#allocation3 + $0xa8] sm:$0xff]
    %v2297 = vld [vmem:[#allocation3 + $0xb0] sm:$0xff]
    %v2298 = vld [vmem:[#allocation3 + $0xb8] sm:$0xff]
    %v2299 = vld [vmem:[#allocation3 + $0xc0] sm:$0xff]
    %v2300 = vld [vmem:[#allocation3 + $0xc8] sm:$0xff]
    %v2301 = vld [vmem:[#allocation3 + $0xd0] sm:$0xff]
    %v2302 = vld [vmem:[#allocation3 + $0xd8] sm:$0xff]
    %v2303 = vld [vmem:[#allocation3 + $0xe0] sm:$0xff]
    %v2304 = vld [vmem:[#allocation3 + $0xe8] sm:$0xff]
    %v2305 = vld [vmem:[#allocation3 + $0xf0] sm:$0xff]
    %v2306 = vld [vmem:[#allocation3 + $0xf8] sm:$0xff]
    %v2307 = vld [vmem:[#allocation3 + $0x100] sm:$0xff]
    %v2308 = vld [vmem:[#allocation3 + $0x108] sm:$0xff]
    %v2309 = vld [vmem:[#allocation3 + $0x110] sm:$0xff]
    %v2310 = vld [vmem:[#allocation3 + $0x118] sm:$0xff]
    %v2311 = vld [vmem:[#allocation3 + $0x120] sm:$0xff]
    %v2312 = vld [vmem:[#allocation3 + $0x128] sm:$0xff]
    %v2313 = vld [vmem:[#allocation3 + $0x130] sm:$0xff]
    %v2314 = vld [vmem:[#allocation3 + $0x138] sm:$0xff]
    %v2315 = vld [vmem:[#allocation3 + $0x140] sm:$0xff]
    %v2316 = vld [vmem:[#allocation3 + $0x148] sm:$0xff]
    %v2317 = vld [vmem:[#allocation3 + $0x150] sm:$0xff]
    %v2318 = vld [vmem:[#allocation3 + $0x158] sm:$0xff]
    %v2319 = vld [vmem:[#allocation3 + $0x160] sm:$0xff]
    %v2320 = vld [vmem:[#allocation3 + $0x168] sm:$0xff]
    %v2321 = vld [vmem:[#allocation3 + $0x170] sm:$0xff]
    %v2322 = vld [vmem:[#allocation3 + $0x178] sm:$0xff]
    %v2323 = vld [vmem:[#allocation3 + $0x180] sm:$0xff]
    %v2324 = vld [vmem:[#allocation3 + $0x188] sm:$0xff]
    %v2325 = vld [vmem:[#allocation3 + $0x190] sm:$0xff]
    %v2326 = vld [vmem:[#allocation3 + $0x198] sm:$0xff]
    %v2327 = vld [vmem:[#allocation3 + $0x1a0] sm:$0xff]
    %v2328 = vld [vmem:[#allocation3 + $0x1a8] sm:$0xff]
    %v2329 = vld [vmem:[#allocation3 + $0x1b0] sm:$0xff]
    %v2330 = vld [vmem:[#allocation3 + $0x1b8] sm:$0xff]
    %v2331 = vld [vmem:[#allocation3 + $0x1c0] sm:$0xff]
    %v2332 = vld [vmem:[#allocation3 + $0x1c8] sm:$0xff]
    %v2333 = vld [vmem:[#allocation3 + $0x1d0] sm:$0xff]
    %v2334 = vld [vmem:[#allocation3 + $0x1d8] sm:$0xff]
    %v2335 = vld [vmem:[#allocation3 + $0x1e0] sm:$0xff]
    %v2336 = vld [vmem:[#allocation3 + $0x1e8] sm:$0xff]
    %v2337 = vld [vmem:[#allocation3 + $0x1f0] sm:$0xff]
    %v2338 = vld [vmem:[#allocation3 + $0x1f8] sm:$0xff]
    %v2339 = vld [vmem:[%s49] sm:$0xf]
    %v2341 = vlaneseq
    %v2342 = vshrl.u32 %v2341, 7
    %v2343 = vsub.s32 0, %v2342
    %v2344 = vrot.slane %v2339, %v2343
    %v2345 = vlaneseq
    %v2346 = vshrl.u32 %v2345, 7
    %v2347 = vsub.s32 1, %v2346
    %v2348 = vrot.slane %v2339, %v2347
    %v2349 = vlaneseq
    %v2350 = vshrl.u32 %v2349, 7
    %v2351 = vsub.s32 2, %v2350
    %v2352 = vrot.slane %v2339, %v2351
    %v2353 = vlaneseq
    %v2354 = vshrl.u32 %v2353, 7
    %v2355 = vsub.s32 3, %v2354
    %v2356 = vrot.slane %v2339, %v2355
    %2361 = vmatprep.subr.bf16.mxu0 %v2276
    %2362 = vmatpush1.bf16.msra.mxu0 %v2275
    %2363 = vmatprep.subr.bf16.mxu0 %v2280
    %2364 = vmatpush1.bf16.msra.mxu0 %v2279
    %2365 = vmatprep.subr.bf16.mxu0 %v2284
    %2366 = vmatpush1.bf16.msra.mxu0 %v2283
    %2367 = vmatprep.subr.bf16.mxu0 %v2288
    %2368 = vmatpush1.bf16.msra.mxu0 %v2287
    %2369 = vmatprep.subr.bf16.mxu0 %v2292
    %2370 = vmatpush1.bf16.msra.mxu0 %v2291
    %2371 = vmatprep.subr.bf16.mxu0 %v2296
    %2372 = vmatpush1.bf16.msra.mxu0 %v2295
    %2373 = vmatprep.subr.bf16.mxu0 %v2300
    %2374 = vmatpush1.bf16.msra.mxu0 %v2299
    %2375 = vmatprep.subr.bf16.mxu0 %v2304
    %2376 = vmatpush1.bf16.msra.mxu0 %v2303
    %2377 = vmatprep.subr.bf16.mxu0 %v2308
    %2378 = vmatpush1.bf16.msra.mxu0 %v2307
    %2379 = vmatprep.subr.bf16.mxu0 %v2312
    %2380 = vmatpush1.bf16.msra.mxu0 %v2311
    %2381 = vmatprep.subr.bf16.mxu0 %v2316
    %2382 = vmatpush1.bf16.msra.mxu0 %v2315
    %2383 = vmatprep.subr.bf16.mxu0 %v2320
    %2384 = vmatpush1.bf16.msra.mxu0 %v2319
    %2385 = vmatprep.subr.bf16.mxu0 %v2324
    %2386 = vmatpush1.bf16.msra.mxu0 %v2323
    %2387 = vmatprep.subr.bf16.mxu0 %v2328
    %2388 = vmatpush1.bf16.msra.mxu0 %v2327
    %2389 = vmatprep.subr.bf16.mxu0 %v2332
    %2390 = vmatpush1.bf16.msra.mxu0 %v2331
    %2391 = vmatprep.subr.bf16.mxu0 %v2336
    %2392 = vmatpush1.bf16.msra.mxu0 %v2335
    %2393 = vmatprep.mubr.bf16.mxu0 %v2274
    %2394 = vmatmul.mubr.bf16.gmra.mrb[0].mxu0 %v2273
    %v2395 = vpop.f32.mrb[0].mxu0
    %v2396 = vadd.f32 %v2344, %v2395
    %v2397 = vpop.f32.mrb[0].mxu0
    %v2398 = vadd.f32 %v2348, %v2397
    %v2399 = vpop.f32.mrb[0].mxu0
    %v2400 = vpop.f32.mrb[0].mxu0
    %2401 = vdwg.mxu0
    %2402 = vmatprep.subr.bf16.mxu0 %v2278
    %2403 = vmatpush1.bf16.msra.mxu0 %v2277
    %2404 = vmatprep.subr.bf16.mxu0 %v2282
    %2405 = vmatpush1.bf16.msra.mxu0 %v2281
    %2406 = vmatprep.subr.bf16.mxu0 %v2286
    %2407 = vmatpush1.bf16.msra.mxu0 %v2285
    %2408 = vmatprep.subr.bf16.mxu0 %v2290
    %2409 = vmatpush1.bf16.msra.mxu0 %v2289
    %2410 = vmatprep.subr.bf16.mxu0 %v2294
    %2411 = vmatpush1.bf16.msra.mxu0 %v2293
    %2412 = vmatprep.subr.bf16.mxu0 %v2298
    %2413 = vmatpush1.bf16.msra.mxu0 %v2297
    %2414 = vmatprep.subr.bf16.mxu0 %v2302
    %2415 = vmatpush1.bf16.msra.mxu0 %v2301
    %2416 = vmatprep.subr.bf16.mxu0 %v2306
    %2417 = vmatpush1.bf16.msra.mxu0 %v2305
    %2418 = vmatprep.subr.bf16.mxu0 %v2310
    %2419 = vmatpush1.bf16.msra.mxu0 %v2309
    %2420 = vmatprep.subr.bf16.mxu0 %v2314
    %2421 = vmatpush1.bf16.msra.mxu0 %v2313
    %2422 = vmatprep.subr.bf16.mxu0 %v2318
    %2423 = vmatpush1.bf16.msra.mxu0 %v2317
    %2424 = vmatprep.subr.bf16.mxu0 %v2322
    %2425 = vmatpush1.bf16.msra.mxu0 %v2321
    %2426 = vmatprep.subr.bf16.mxu0 %v2326
    %2427 = vmatpush1.bf16.msra.mxu0 %v2325
    %2428 = vmatprep.subr.bf16.mxu0 %v2330
    %2429 = vmatpush1.bf16.msra.mxu0 %v2329
    %2430 = vmatprep.subr.bf16.mxu0 %v2334
    %2431 = vmatpush1.bf16.msra.mxu0 %v2333
    %2432 = vmatprep.subr.bf16.mxu0 %v2338
    %2433 = vmatpush1.bf16.msra.mxu0 %v2337
    %2434 = vmatprep.mubr.bf16.mxu0 %v2274
    %2435 = vmatmul.mubr.bf16.gmra.mrb[0].mxu0 %v2273
    %v2436 = vpop.f32.mrb[0].mxu0
    %v2437 = vadd.f32 %v2352, %v2436
    %v2438 = vpop.f32.mrb[0].mxu0
    %v2439 = vadd.f32 %v2356, %v2438
    %v2440 = vpop.f32.mrb[0].mxu0
    %v2441 = vpop.f32.mrb[0].mxu0
    %2442 = vdwg.mxu0
    %v2443 = vmax.f32 %v2396, 0.0
    %v2444 = vmax.f32 %v2398, 0.0
    %v2445 = vmax.f32 %v2437, 0.0
    %v2446 = vmax.f32 %v2439, 0.0
    %s2447 = smul.u32 4, 64
    %s2448 = smul.u32 %s2447, 8
    %s2449 = sshll.u32 %s2448, 4
    %2450 = dma.done %s694, %s2449
    %v2451 = vpack.c.bf16 %v2443, %v2443
    %v2452 = vpack.c.bf16 %v2444, %v2444
    %v2453 = vpack.c.bf16 %v2445, %v2445
    %v2454 = vpack.c.bf16 %v2446, %v2446
    %v2455 = vld [vmem:[#allocation4] sm:$0xff]
    %v2456 = vld [vmem:[#allocation4 + $0x8] sm:$0xff]
    %v2457 = vld [vmem:[#allocation4 + $0x10] sm:$0xff]
    %v2458 = vld [vmem:[#allocation4 + $0x18] sm:$0xff]
    %v2459 = vld [vmem:[#allocation4 + $0x20] sm:$0xff]
    %v2460 = vld [vmem:[#allocation4 + $0x28] sm:$0xff]
    %v2461 = vld [vmem:[#allocation4 + $0x30] sm:$0xff]
    %v2462 = vld [vmem:[#allocation4 + $0x38] sm:$0xff]
    %v2463 = vld [vmem:[#allocation4 + $0x40] sm:$0xff]
    %v2464 = vld [vmem:[#allocation4 + $0x48] sm:$0xff]
    %v2465 = vld [vmem:[#allocation4 + $0x50] sm:$0xff]
    %v2466 = vld [vmem:[#allocation4 + $0x58] sm:$0xff]
    %v2467 = vld [vmem:[#allocation4 + $0x60] sm:$0xff]
    %v2468 = vld [vmem:[#allocation4 + $0x68] sm:$0xff]
    %v2469 = vld [vmem:[#allocation4 + $0x70] sm:$0xff]
    %v2470 = vld [vmem:[#allocation4 + $0x78] sm:$0xff]
    %v2471 = vld [vmem:[#allocation4 + $0x80] sm:$0xff]
    %v2472 = vld [vmem:[#allocation4 + $0x88] sm:$0xff]
    %v2473 = vld [vmem:[#allocation4 + $0x90] sm:$0xff]
    %v2474 = vld [vmem:[#allocation4 + $0x98] sm:$0xff]
    %v2475 = vld [vmem:[#allocation4 + $0xa0] sm:$0xff]
    %v2476 = vld [vmem:[#allocation4 + $0xa8] sm:$0xff]
    %v2477 = vld [vmem:[#allocation4 + $0xb0] sm:$0xff]
    %v2478 = vld [vmem:[#allocation4 + $0xb8] sm:$0xff]
    %v2479 = vld [vmem:[#allocation4 + $0xc0] sm:$0xff]
    %v2480 = vld [vmem:[#allocation4 + $0xc8] sm:$0xff]
    %v2481 = vld [vmem:[#allocation4 + $0xd0] sm:$0xff]
    %v2482 = vld [vmem:[#allocation4 + $0xd8] sm:$0xff]
    %v2483 = vld [vmem:[#allocation4 + $0xe0] sm:$0xff]
    %v2484 = vld [vmem:[#allocation4 + $0xe8] sm:$0xff]
    %v2485 = vld [vmem:[#allocation4 + $0xf0] sm:$0xff]
    %v2486 = vld [vmem:[#allocation4 + $0xf8] sm:$0xff]
    %v2487 = vld [vmem:[#allocation4 + $0x100] sm:$0xff]
    %v2488 = vld [vmem:[#allocation4 + $0x108] sm:$0xff]
    %v2489 = vld [vmem:[#allocation4 + $0x110] sm:$0xff]
    %v2490 = vld [vmem:[#allocation4 + $0x118] sm:$0xff]
    %v2491 = vld [vmem:[#allocation4 + $0x120] sm:$0xff]
    %v2492 = vld [vmem:[#allocation4 + $0x128] sm:$0xff]
    %v2493 = vld [vmem:[#allocation4 + $0x130] sm:$0xff]
    %v2494 = vld [vmem:[#allocation4 + $0x138] sm:$0xff]
    %v2495 = vld [vmem:[#allocation4 + $0x140] sm:$0xff]
    %v2496 = vld [vmem:[#allocation4 + $0x148] sm:$0xff]
    %v2497 = vld [vmem:[#allocation4 + $0x150] sm:$0xff]
    %v2498 = vld [vmem:[#allocation4 + $0x158] sm:$0xff]
    %v2499 = vld [vmem:[#allocation4 + $0x160] sm:$0xff]
    %v2500 = vld [vmem:[#allocation4 + $0x168] sm:$0xff]
    %v2501 = vld [vmem:[#allocation4 + $0x170] sm:$0xff]
    %v2502 = vld [vmem:[#allocation4 + $0x178] sm:$0xff]
    %v2503 = vld [vmem:[#allocation4 + $0x180] sm:$0xff]
    %v2504 = vld [vmem:[#allocation4 + $0x188] sm:$0xff]
    %v2505 = vld [vmem:[#allocation4 + $0x190] sm:$0xff]
    %v2506 = vld [vmem:[#allocation4 + $0x198] sm:$0xff]
    %v2507 = vld [vmem:[#allocation4 + $0x1a0] sm:$0xff]
    %v2508 = vld [vmem:[#allocation4 + $0x1a8] sm:$0xff]
    %v2509 = vld [vmem:[#allocation4 + $0x1b0] sm:$0xff]
    %v2510 = vld [vmem:[#allocation4 + $0x1b8] sm:$0xff]
    %v2511 = vld [vmem:[#allocation4 + $0x1c0] sm:$0xff]
    %v2512 = vld [vmem:[#allocation4 + $0x1c8] sm:$0xff]
    %v2513 = vld [vmem:[#allocation4 + $0x1d0] sm:$0xff]
    %v2514 = vld [vmem:[#allocation4 + $0x1d8] sm:$0xff]
    %v2515 = vld [vmem:[#allocation4 + $0x1e0] sm:$0xff]
    %v2516 = vld [vmem:[#allocation4 + $0x1e8] sm:$0xff]
    %v2517 = vld [vmem:[#allocation4 + $0x1f0] sm:$0xff]
    %v2518 = vld [vmem:[#allocation4 + $0x1f8] sm:$0xff]
    %v2519 = vld [vmem:[#allocation4 + $0x200] sm:$0xff]
    %v2520 = vld [vmem:[#allocation4 + $0x208] sm:$0xff]
    %v2521 = vld [vmem:[#allocation4 + $0x210] sm:$0xff]
    %v2522 = vld [vmem:[#allocation4 + $0x218] sm:$0xff]
    %v2523 = vld [vmem:[#allocation4 + $0x220] sm:$0xff]
    %v2524 = vld [vmem:[#allocation4 + $0x228] sm:$0xff]
    %v2525 = vld [vmem:[#allocation4 + $0x230] sm:$0xff]
    %v2526 = vld [vmem:[#allocation4 + $0x238] sm:$0xff]
    %v2527 = vld [vmem:[#allocation4 + $0x240] sm:$0xff]
    %v2528 = vld [vmem:[#allocation4 + $0x248] sm:$0xff]
    %v2529 = vld [vmem:[#allocation4 + $0x250] sm:$0xff]
    %v2530 = vld [vmem:[#allocation4 + $0x258] sm:$0xff]
    %v2531 = vld [vmem:[#allocation4 + $0x260] sm:$0xff]
    %v2532 = vld [vmem:[#allocation4 + $0x268] sm:$0xff]
    %v2533 = vld [vmem:[#allocation4 + $0x270] sm:$0xff]
    %v2534 = vld [vmem:[#allocation4 + $0x278] sm:$0xff]
    %v2535 = vld [vmem:[#allocation4 + $0x280] sm:$0xff]
    %v2536 = vld [vmem:[#allocation4 + $0x288] sm:$0xff]
    %v2537 = vld [vmem:[#allocation4 + $0x290] sm:$0xff]
    %v2538 = vld [vmem:[#allocation4 + $0x298] sm:$0xff]
    %v2539 = vld [vmem:[#allocation4 + $0x2a0] sm:$0xff]
    %v2540 = vld [vmem:[#allocation4 + $0x2a8] sm:$0xff]
    %v2541 = vld [vmem:[#allocation4 + $0x2b0] sm:$0xff]
    %v2542 = vld [vmem:[#allocation4 + $0x2b8] sm:$0xff]
    %v2543 = vld [vmem:[#allocation4 + $0x2c0] sm:$0xff]
    %v2544 = vld [vmem:[#allocation4 + $0x2c8] sm:$0xff]
    %v2545 = vld [vmem:[#allocation4 + $0x2d0] sm:$0xff]
    %v2546 = vld [vmem:[#allocation4 + $0x2d8] sm:$0xff]
    %v2547 = vld [vmem:[#allocation4 + $0x2e0] sm:$0xff]
    %v2548 = vld [vmem:[#allocation4 + $0x2e8] sm:$0xff]
    %v2549 = vld [vmem:[#allocation4 + $0x2f0] sm:$0xff]
    %v2550 = vld [vmem:[#allocation4 + $0x2f8] sm:$0xff]
    %v2551 = vld [vmem:[#allocation4 + $0x300] sm:$0xff]
    %v2552 = vld [vmem:[#allocation4 + $0x308] sm:$0xff]
    %v2553 = vld [vmem:[#allocation4 + $0x310] sm:$0xff]
    %v2554 = vld [vmem:[#allocation4 + $0x318] sm:$0xff]
    %v2555 = vld [vmem:[#allocation4 + $0x320] sm:$0xff]
    %v2556 = vld [vmem:[#allocation4 + $0x328] sm:$0xff]
    %v2557 = vld [vmem:[#allocation4 + $0x330] sm:$0xff]
    %v2558 = vld [vmem:[#allocation4 + $0x338] sm:$0xff]
    %v2559 = vld [vmem:[#allocation4 + $0x340] sm:$0xff]
    %v2560 = vld [vmem:[#allocation4 + $0x348] sm:$0xff]
    %v2561 = vld [vmem:[#allocation4 + $0x350] sm:$0xff]
    %v2562 = vld [vmem:[#allocation4 + $0x358] sm:$0xff]
    %v2563 = vld [vmem:[#allocation4 + $0x360] sm:$0xff]
    %v2564 = vld [vmem:[#allocation4 + $0x368] sm:$0xff]
    %v2565 = vld [vmem:[#allocation4 + $0x370] sm:$0xff]
    %v2566 = vld [vmem:[#allocation4 + $0x378] sm:$0xff]
    %v2567 = vld [vmem:[#allocation4 + $0x380] sm:$0xff]
    %v2568 = vld [vmem:[#allocation4 + $0x388] sm:$0xff]
    %v2569 = vld [vmem:[#allocation4 + $0x390] sm:$0xff]
    %v2570 = vld [vmem:[#allocation4 + $0x398] sm:$0xff]
    %v2571 = vld [vmem:[#allocation4 + $0x3a0] sm:$0xff]
    %v2572 = vld [vmem:[#allocation4 + $0x3a8] sm:$0xff]
    %v2573 = vld [vmem:[#allocation4 + $0x3b0] sm:$0xff]
    %v2574 = vld [vmem:[#allocation4 + $0x3b8] sm:$0xff]
    %v2575 = vld [vmem:[#allocation4 + $0x3c0] sm:$0xff]
    %v2576 = vld [vmem:[#allocation4 + $0x3c8] sm:$0xff]
    %v2577 = vld [vmem:[#allocation4 + $0x3d0] sm:$0xff]
    %v2578 = vld [vmem:[#allocation4 + $0x3d8] sm:$0xff]
    %v2579 = vld [vmem:[#allocation4 + $0x3e0] sm:$0xff]
    %v2580 = vld [vmem:[#allocation4 + $0x3e8] sm:$0xff]
    %v2581 = vld [vmem:[#allocation4 + $0x3f0] sm:$0xff]
    %v2582 = vld [vmem:[#allocation4 + $0x3f8] sm:$0xff]
    %v2583 = vld [vmem:[#allocation4 + $0x400] sm:$0xff]
    %v2584 = vld [vmem:[#allocation4 + $0x408] sm:$0xff]
    %v2585 = vld [vmem:[#allocation4 + $0x410] sm:$0xff]
    %v2586 = vld [vmem:[#allocation4 + $0x418] sm:$0xff]
    %v2587 = vld [vmem:[#allocation4 + $0x420] sm:$0xff]
    %v2588 = vld [vmem:[#allocation4 + $0x428] sm:$0xff]
    %v2589 = vld [vmem:[#allocation4 + $0x430] sm:$0xff]
    %v2590 = vld [vmem:[#allocation4 + $0x438] sm:$0xff]
    %v2591 = vld [vmem:[#allocation4 + $0x440] sm:$0xff]
    %v2592 = vld [vmem:[#allocation4 + $0x448] sm:$0xff]
    %v2593 = vld [vmem:[#allocation4 + $0x450] sm:$0xff]
    %v2594 = vld [vmem:[#allocation4 + $0x458] sm:$0xff]
    %v2595 = vld [vmem:[#allocation4 + $0x460] sm:$0xff]
    %v2596 = vld [vmem:[#allocation4 + $0x468] sm:$0xff]
    %v2597 = vld [vmem:[#allocation4 + $0x470] sm:$0xff]
    %v2598 = vld [vmem:[#allocation4 + $0x478] sm:$0xff]
    %v2599 = vld [vmem:[#allocation4 + $0x480] sm:$0xff]
    %v2600 = vld [vmem:[#allocation4 + $0x488] sm:$0xff]
    %v2601 = vld [vmem:[#allocation4 + $0x490] sm:$0xff]
    %v2602 = vld [vmem:[#allocation4 + $0x498] sm:$0xff]
    %v2603 = vld [vmem:[#allocation4 + $0x4a0] sm:$0xff]
    %v2604 = vld [vmem:[#allocation4 + $0x4a8] sm:$0xff]
    %v2605 = vld [vmem:[#allocation4 + $0x4b0] sm:$0xff]
    %v2606 = vld [vmem:[#allocation4 + $0x4b8] sm:$0xff]
    %v2607 = vld [vmem:[#allocation4 + $0x4c0] sm:$0xff]
    %v2608 = vld [vmem:[#allocation4 + $0x4c8] sm:$0xff]
    %v2609 = vld [vmem:[#allocation4 + $0x4d0] sm:$0xff]
    %v2610 = vld [vmem:[#allocation4 + $0x4d8] sm:$0xff]
    %v2611 = vld [vmem:[#allocation4 + $0x4e0] sm:$0xff]
    %v2612 = vld [vmem:[#allocation4 + $0x4e8] sm:$0xff]
    %v2613 = vld [vmem:[#allocation4 + $0x4f0] sm:$0xff]
    %v2614 = vld [vmem:[#allocation4 + $0x4f8] sm:$0xff]
    %v2615 = vld [vmem:[#allocation4 + $0x500] sm:$0xff]
    %v2616 = vld [vmem:[#allocation4 + $0x508] sm:$0xff]
    %v2617 = vld [vmem:[#allocation4 + $0x510] sm:$0xff]
    %v2618 = vld [vmem:[#allocation4 + $0x518] sm:$0xff]
    %v2619 = vld [vmem:[#allocation4 + $0x520] sm:$0xff]
    %v2620 = vld [vmem:[#allocation4 + $0x528] sm:$0xff]
    %v2621 = vld [vmem:[#allocation4 + $0x530] sm:$0xff]
    %v2622 = vld [vmem:[#allocation4 + $0x538] sm:$0xff]
    %v2623 = vld [vmem:[#allocation4 + $0x540] sm:$0xff]
    %v2624 = vld [vmem:[#allocation4 + $0x548] sm:$0xff]
    %v2625 = vld [vmem:[#allocation4 + $0x550] sm:$0xff]
    %v2626 = vld [vmem:[#allocation4 + $0x558] sm:$0xff]
    %v2627 = vld [vmem:[#allocation4 + $0x560] sm:$0xff]
    %v2628 = vld [vmem:[#allocation4 + $0x568] sm:$0xff]
    %v2629 = vld [vmem:[#allocation4 + $0x570] sm:$0xff]
    %v2630 = vld [vmem:[#allocation4 + $0x578] sm:$0xff]
    %v2631 = vld [vmem:[#allocation4 + $0x580] sm:$0xff]
    %v2632 = vld [vmem:[#allocation4 + $0x588] sm:$0xff]
    %v2633 = vld [vmem:[#allocation4 + $0x590] sm:$0xff]
    %v2634 = vld [vmem:[#allocation4 + $0x598] sm:$0xff]
    %v2635 = vld [vmem:[#allocation4 + $0x5a0] sm:$0xff]
    %v2636 = vld [vmem:[#allocation4 + $0x5a8] sm:$0xff]
    %v2637 = vld [vmem:[#allocation4 + $0x5b0] sm:$0xff]
    %v2638 = vld [vmem:[#allocation4 + $0x5b8] sm:$0xff]
    %v2639 = vld [vmem:[#allocation4 + $0x5c0] sm:$0xff]
    %v2640 = vld [vmem:[#allocation4 + $0x5c8] sm:$0xff]
    %v2641 = vld [vmem:[#allocation4 + $0x5d0] sm:$0xff]
    %v2642 = vld [vmem:[#allocation4 + $0x5d8] sm:$0xff]
    %v2643 = vld [vmem:[#allocation4 + $0x5e0] sm:$0xff]
    %v2644 = vld [vmem:[#allocation4 + $0x5e8] sm:$0xff]
    %v2645 = vld [vmem:[#allocation4 + $0x5f0] sm:$0xff]
    %v2646 = vld [vmem:[#allocation4 + $0x5f8] sm:$0xff]
    %v2647 = vld [vmem:[#allocation4 + $0x600] sm:$0xff]
    %v2648 = vld [vmem:[#allocation4 + $0x608] sm:$0xff]
    %v2649 = vld [vmem:[#allocation4 + $0x610] sm:$0xff]
    %v2650 = vld [vmem:[#allocation4 + $0x618] sm:$0xff]
    %v2651 = vld [vmem:[#allocation4 + $0x620] sm:$0xff]
    %v2652 = vld [vmem:[#allocation4 + $0x628] sm:$0xff]
    %v2653 = vld [vmem:[#allocation4 + $0x630] sm:$0xff]
    %v2654 = vld [vmem:[#allocation4 + $0x638] sm:$0xff]
    %v2655 = vld [vmem:[#allocation4 + $0x640] sm:$0xff]
    %v2656 = vld [vmem:[#allocation4 + $0x648] sm:$0xff]
    %v2657 = vld [vmem:[#allocation4 + $0x650] sm:$0xff]
    %v2658 = vld [vmem:[#allocation4 + $0x658] sm:$0xff]
    %v2659 = vld [vmem:[#allocation4 + $0x660] sm:$0xff]
    %v2660 = vld [vmem:[#allocation4 + $0x668] sm:$0xff]
    %v2661 = vld [vmem:[#allocation4 + $0x670] sm:$0xff]
    %v2662 = vld [vmem:[#allocation4 + $0x678] sm:$0xff]
    %v2663 = vld [vmem:[#allocation4 + $0x680] sm:$0xff]
    %v2664 = vld [vmem:[#allocation4 + $0x688] sm:$0xff]
    %v2665 = vld [vmem:[#allocation4 + $0x690] sm:$0xff]
    %v2666 = vld [vmem:[#allocation4 + $0x698] sm:$0xff]
    %v2667 = vld [vmem:[#allocation4 + $0x6a0] sm:$0xff]
    %v2668 = vld [vmem:[#allocation4 + $0x6a8] sm:$0xff]
    %v2669 = vld [vmem:[#allocation4 + $0x6b0] sm:$0xff]
    %v2670 = vld [vmem:[#allocation4 + $0x6b8] sm:$0xff]
    %v2671 = vld [vmem:[#allocation4 + $0x6c0] sm:$0xff]
    %v2672 = vld [vmem:[#allocation4 + $0x6c8] sm:$0xff]
    %v2673 = vld [vmem:[#allocation4 + $0x6d0] sm:$0xff]
    %v2674 = vld [vmem:[#allocation4 + $0x6d8] sm:$0xff]
    %v2675 = vld [vmem:[#allocation4 + $0x6e0] sm:$0xff]
    %v2676 = vld [vmem:[#allocation4 + $0x6e8] sm:$0xff]
    %v2677 = vld [vmem:[#allocation4 + $0x6f0] sm:$0xff]
    %v2678 = vld [vmem:[#allocation4 + $0x6f8] sm:$0xff]
    %v2679 = vld [vmem:[#allocation4 + $0x700] sm:$0xff]
    %v2680 = vld [vmem:[#allocation4 + $0x708] sm:$0xff]
    %v2681 = vld [vmem:[#allocation4 + $0x710] sm:$0xff]
    %v2682 = vld [vmem:[#allocation4 + $0x718] sm:$0xff]
    %v2683 = vld [vmem:[#allocation4 + $0x720] sm:$0xff]
    %v2684 = vld [vmem:[#allocation4 + $0x728] sm:$0xff]
    %v2685 = vld [vmem:[#allocation4 + $0x730] sm:$0xff]
    %v2686 = vld [vmem:[#allocation4 + $0x738] sm:$0xff]
    %v2687 = vld [vmem:[#allocation4 + $0x740] sm:$0xff]
    %v2688 = vld [vmem:[#allocation4 + $0x748] sm:$0xff]
    %v2689 = vld [vmem:[#allocation4 + $0x750] sm:$0xff]
    %v2690 = vld [vmem:[#allocation4 + $0x758] sm:$0xff]
    %v2691 = vld [vmem:[#allocation4 + $0x760] sm:$0xff]
    %v2692 = vld [vmem:[#allocation4 + $0x768] sm:$0xff]
    %v2693 = vld [vmem:[#allocation4 + $0x770] sm:$0xff]
    %v2694 = vld [vmem:[#allocation4 + $0x778] sm:$0xff]
    %v2695 = vld [vmem:[#allocation4 + $0x780] sm:$0xff]
    %v2696 = vld [vmem:[#allocation4 + $0x788] sm:$0xff]
    %v2697 = vld [vmem:[#allocation4 + $0x790] sm:$0xff]
    %v2698 = vld [vmem:[#allocation4 + $0x798] sm:$0xff]
    %v2699 = vld [vmem:[#allocation4 + $0x7a0] sm:$0xff]
    %v2700 = vld [vmem:[#allocation4 + $0x7a8] sm:$0xff]
    %v2701 = vld [vmem:[#allocation4 + $0x7b0] sm:$0xff]
    %v2702 = vld [vmem:[#allocation4 + $0x7b8] sm:$0xff]
    %v2703 = vld [vmem:[#allocation4 + $0x7c0] sm:$0xff]
    %v2704 = vld [vmem:[#allocation4 + $0x7c8] sm:$0xff]
    %v2705 = vld [vmem:[#allocation4 + $0x7d0] sm:$0xff]
    %v2706 = vld [vmem:[#allocation4 + $0x7d8] sm:$0xff]
    %v2707 = vld [vmem:[#allocation4 + $0x7e0] sm:$0xff]
    %v2708 = vld [vmem:[#allocation4 + $0x7e8] sm:$0xff]
    %v2709 = vld [vmem:[#allocation4 + $0x7f0] sm:$0xff]
    %v2710 = vld [vmem:[#allocation4 + $0x7f8] sm:$0xff]
    %v2711 = vld [vmem:[%s51] sm:$0xff]
    %v2713 = vlaneseq
    %v2714 = vshrl.u32 %v2713, 7
    %v2715 = vsub.s32 0, %v2714
    %v2716 = vrot.slane %v2711, %v2715
    %v2717 = vlaneseq
    %v2718 = vshrl.u32 %v2717, 7
    %v2719 = vsub.s32 1, %v2718
    %v2720 = vrot.slane %v2711, %v2719
    %v2721 = vlaneseq
    %v2722 = vshrl.u32 %v2721, 7
    %v2723 = vsub.s32 2, %v2722
    %v2724 = vrot.slane %v2711, %v2723
    %v2725 = vlaneseq
    %v2726 = vshrl.u32 %v2725, 7
    %v2727 = vsub.s32 3, %v2726
    %v2728 = vrot.slane %v2711, %v2727
    %v2729 = vlaneseq
    %v2730 = vshrl.u32 %v2729, 7
    %v2731 = vsub.s32 4, %v2730
    %v2732 = vrot.slane %v2711, %v2731
    %v2733 = vlaneseq
    %v2734 = vshrl.u32 %v2733, 7
    %v2735 = vsub.s32 5, %v2734
    %v2736 = vrot.slane %v2711, %v2735
    %v2737 = vlaneseq
    %v2738 = vshrl.u32 %v2737, 7
    %v2739 = vsub.s32 6, %v2738
    %v2740 = vrot.slane %v2711, %v2739
    %v2741 = vlaneseq
    %v2742 = vshrl.u32 %v2741, 7
    %v2743 = vsub.s32 7, %v2742
    %v2744 = vrot.slane %v2711, %v2743
    %2753 = vmatprep.subr.bf16.mxu0 %v2456
    %2754 = vmatpush1.bf16.msra.mxu0 %v2455
    %2755 = vmatprep.subr.bf16.mxu0 %v2464
    %2756 = vmatpush1.bf16.msra.mxu0 %v2463
    %2757 = vmatprep.subr.bf16.mxu0 %v2472
    %2758 = vmatpush1.bf16.msra.mxu0 %v2471
    %2759 = vmatprep.subr.bf16.mxu0 %v2480
    %2760 = vmatpush1.bf16.msra.mxu0 %v2479
    %2761 = vmatprep.subr.bf16.mxu0 %v2488
    %2762 = vmatpush1.bf16.msra.mxu0 %v2487
    %2763 = vmatprep.subr.bf16.mxu0 %v2496
    %2764 = vmatpush1.bf16.msra.mxu0 %v2495
    %2765 = vmatprep.subr.bf16.mxu0 %v2504
    %2766 = vmatpush1.bf16.msra.mxu0 %v2503
    %2767 = vmatprep.subr.bf16.mxu0 %v2512
    %2768 = vmatpush1.bf16.msra.mxu0 %v2511
    %2769 = vmatprep.subr.bf16.mxu0 %v2520
    %2770 = vmatpush1.bf16.msra.mxu0 %v2519
    %2771 = vmatprep.subr.bf16.mxu0 %v2528
    %2772 = vmatpush1.bf16.msra.mxu0 %v2527
    %2773 = vmatprep.subr.bf16.mxu0 %v2536
    %2774 = vmatpush1.bf16.msra.mxu0 %v2535
    %2775 = vmatprep.subr.bf16.mxu0 %v2544
    %2776 = vmatpush1.bf16.msra.mxu0 %v2543
    %2777 = vmatprep.subr.bf16.mxu0 %v2552
    %2778 = vmatpush1.bf16.msra.mxu0 %v2551
    %2779 = vmatprep.subr.bf16.mxu0 %v2560
    %2780 = vmatpush1.bf16.msra.mxu0 %v2559
    %2781 = vmatprep.subr.bf16.mxu0 %v2568
    %2782 = vmatpush1.bf16.msra.mxu0 %v2567
    %2783 = vmatprep.subr.bf16.mxu0 %v2576
    %2784 = vmatpush1.bf16.msra.mxu0 %v2575
    %2785 = vmatprep.mubr.bf16.mxu0 %v2452
    %2786 = vmatmul.mubr.bf16.gmra.mrb[0].mxu0 %v2451
    %v2787 = vpop.f32.mrb[0].mxu0
    %v2788 = vadd.f32 %v2716, %v2787
    %v2789 = vpop.f32.mrb[0].mxu0
    %v2790 = vadd.f32 %v2720, %v2789
    %v2791 = vpop.f32.mrb[0].mxu0
    %v2792 = vpop.f32.mrb[0].mxu0
    %2793 = vdwg.mxu0
    %2794 = vmatprep.subr.bf16.mxu0 %v2584
    %2795 = vmatpush1.bf16.msra.mxu0 %v2583
    %2796 = vmatprep.subr.bf16.mxu0 %v2592
    %2797 = vmatpush1.bf16.msra.mxu0 %v2591
    %2798 = vmatprep.subr.bf16.mxu0 %v2600
    %2799 = vmatpush1.bf16.msra.mxu0 %v2599
    %2800 = vmatprep.subr.bf16.mxu0 %v2608
    %2801 = vmatpush1.bf16.msra.mxu0 %v2607
    %2802 = vmatprep.subr.bf16.mxu0 %v2616
    %2803 = vmatpush1.bf16.msra.mxu0 %v2615
    %2804 = vmatprep.subr.bf16.mxu0 %v2624
    %2805 = vmatpush1.bf16.msra.mxu0 %v2623
    %2806 = vmatprep.subr.bf16.mxu0 %v2632
    %2807 = vmatpush1.bf16.msra.mxu0 %v2631
    %2808 = vmatprep.subr.bf16.mxu0 %v2640
    %2809 = vmatpush1.bf16.msra.mxu0 %v2639
    %2810 = vmatprep.subr.bf16.mxu0 %v2648
    %2811 = vmatpush1.bf16.msra.mxu0 %v2647
    %2812 = vmatprep.subr.bf16.mxu0 %v2656
    %2813 = vmatpush1.bf16.msra.mxu0 %v2655
    %2814 = vmatprep.subr.bf16.mxu0 %v2664
    %2815 = vmatpush1.bf16.msra.mxu0 %v2663
    %2816 = vmatprep.subr.bf16.mxu0 %v2672
    %2817 = vmatpush1.bf16.msra.mxu0 %v2671
    %2818 = vmatprep.subr.bf16.mxu0 %v2680
    %2819 = vmatpush1.bf16.msra.mxu0 %v2679
    %2820 = vmatprep.subr.bf16.mxu0 %v2688
    %2821 = vmatpush1.bf16.msra.mxu0 %v2687
    %2822 = vmatprep.subr.bf16.mxu0 %v2696
    %2823 = vmatpush1.bf16.msra.mxu0 %v2695
    %2824 = vmatprep.subr.bf16.mxu0 %v2704
    %2825 = vmatpush1.bf16.msra.mxu0 %v2703
    %2826 = vmatprep.mubr.bf16.mxu0 %v2454
    %2827 = vmatmul.mubr.bf16.gmra.mrb[0].mxu0 %v2453
    %v2828 = vpop.f32.mrb[0].mxu0
    %v2829 = vadd.f32 %v2788, %v2828
    %v2830 = vpop.f32.mrb[0].mxu0
    %v2831 = vadd.f32 %v2790, %v2830
    %v2832 = vpop.f32.mrb[0].mxu0
    %v2833 = vpop.f32.mrb[0].mxu0
    %2834 = vdwg.mxu0
    %2835 = vmatprep.subr.bf16.mxu0 %v2458
    %2836 = vmatpush1.bf16.msra.mxu0 %v2457
    %2837 = vmatprep.subr.bf16.mxu0 %v2466
    %2838 = vmatpush1.bf16.msra.mxu0 %v2465
    %2839 = vmatprep.subr.bf16.mxu0 %v2474
    %2840 = vmatpush1.bf16.msra.mxu0 %v2473
    %2841 = vmatprep.subr.bf16.mxu0 %v2482
    %2842 = vmatpush1.bf16.msra.mxu0 %v2481
    %2843 = vmatprep.subr.bf16.mxu0 %v2490
    %2844 = vmatpush1.bf16.msra.mxu0 %v2489
    %2845 = vmatprep.subr.bf16.mxu0 %v2498
    %2846 = vmatpush1.bf16.msra.mxu0 %v2497
    %2847 = vmatprep.subr.bf16.mxu0 %v2506
    %2848 = vmatpush1.bf16.msra.mxu0 %v2505
    %2849 = vmatprep.subr.bf16.mxu0 %v2514
    %2850 = vmatpush1.bf16.msra.mxu0 %v2513
    %2851 = vmatprep.subr.bf16.mxu0 %v2522
    %2852 = vmatpush1.bf16.msra.mxu0 %v2521
    %2853 = vmatprep.subr.bf16.mxu0 %v2530
    %2854 = vmatpush1.bf16.msra.mxu0 %v2529
    %2855 = vmatprep.subr.bf16.mxu0 %v2538
    %2856 = vmatpush1.bf16.msra.mxu0 %v2537
    %2857 = vmatprep.subr.bf16.mxu0 %v2546
    %2858 = vmatpush1.bf16.msra.mxu0 %v2545
    %2859 = vmatprep.subr.bf16.mxu0 %v2554
    %2860 = vmatpush1.bf16.msra.mxu0 %v2553
    %2861 = vmatprep.subr.bf16.mxu0 %v2562
    %2862 = vmatpush1.bf16.msra.mxu0 %v2561
    %2863 = vmatprep.subr.bf16.mxu0 %v2570
    %2864 = vmatpush1.bf16.msra.mxu0 %v2569
    %2865 = vmatprep.subr.bf16.mxu0 %v2578
    %2866 = vmatpush1.bf16.msra.mxu0 %v2577
    %2867 = vmatprep.mubr.bf16.mxu0 %v2452
    %2868 = vmatmul.mubr.bf16.gmra.mrb[0].mxu0 %v2451
    %v2869 = vpop.f32.mrb[0].mxu0
    %v2870 = vadd.f32 %v2724, %v2869
    %v2871 = vpop.f32.mrb[0].mxu0
    %v2872 = vadd.f32 %v2728, %v2871
    %v2873 = vpop.f32.mrb[0].mxu0
    %v2874 = vpop.f32.mrb[0].mxu0
    %2875 = vdwg.mxu0
    %2876 = vmatprep.subr.bf16.mxu0 %v2586
    %2877 = vmatpush1.bf16.msra.mxu0 %v2585
    %2878 = vmatprep.subr.bf16.mxu0 %v2594
    %2879 = vmatpush1.bf16.msra.mxu0 %v2593
    %2880 = vmatprep.subr.bf16.mxu0 %v2602
    %2881 = vmatpush1.bf16.msra.mxu0 %v2601
    %2882 = vmatprep.subr.bf16.mxu0 %v2610
    %2883 = vmatpush1.bf16.msra.mxu0 %v2609
    %2884 = vmatprep.subr.bf16.mxu0 %v2618
    %2885 = vmatpush1.bf16.msra.mxu0 %v2617
    %2886 = vmatprep.subr.bf16.mxu0 %v2626
    %2887 = vmatpush1.bf16.msra.mxu0 %v2625
    %2888 = vmatprep.subr.bf16.mxu0 %v2634
    %2889 = vmatpush1.bf16.msra.mxu0 %v2633
    %2890 = vmatprep.subr.bf16.mxu0 %v2642
    %2891 = vmatpush1.bf16.msra.mxu0 %v2641
    %2892 = vmatprep.subr.bf16.mxu0 %v2650
    %2893 = vmatpush1.bf16.msra.mxu0 %v2649
    %2894 = vmatprep.subr.bf16.mxu0 %v2658
    %2895 = vmatpush1.bf16.msra.mxu0 %v2657
    %2896 = vmatprep.subr.bf16.mxu0 %v2666
    %2897 = vmatpush1.bf16.msra.mxu0 %v2665
    %2898 = vmatprep.subr.bf16.mxu0 %v2674
    %2899 = vmatpush1.bf16.msra.mxu0 %v2673
    %2900 = vmatprep.subr.bf16.mxu0 %v2682
    %2901 = vmatpush1.bf16.msra.mxu0 %v2681
    %2902 = vmatprep.subr.bf16.mxu0 %v2690
    %2903 = vmatpush1.bf16.msra.mxu0 %v2689
    %2904 = vmatprep.subr.bf16.mxu0 %v2698
    %2905 = vmatpush1.bf16.msra.mxu0 %v2697
    %2906 = vmatprep.subr.bf16.mxu0 %v2706
    %2907 = vmatpush1.bf16.msra.mxu0 %v2705
    %2908 = vmatprep.mubr.bf16.mxu0 %v2454
    %2909 = vmatmul.mubr.bf16.gmra.mrb[0].mxu0 %v2453
    %v2910 = vpop.f32.mrb[0].mxu0
    %v2911 = vadd.f32 %v2870, %v2910
    %v2912 = vpop.f32.mrb[0].mxu0
    %v2913 = vadd.f32 %v2872, %v2912
    %v2914 = vpop.f32.mrb[0].mxu0
    %v2915 = vpop.f32.mrb[0].mxu0
    %2916 = vdwg.mxu0
    %2917 = vmatprep.subr.bf16.mxu0 %v2460
    %2918 = vmatpush1.bf16.msra.mxu0 %v2459
    %2919 = vmatprep.subr.bf16.mxu0 %v2468
    %2920 = vmatpush1.bf16.msra.mxu0 %v2467
    %2921 = vmatprep.subr.bf16.mxu0 %v2476
    %2922 = vmatpush1.bf16.msra.mxu0 %v2475
    %2923 = vmatprep.subr.bf16.mxu0 %v2484
    %2924 = vmatpush1.bf16.msra.mxu0 %v2483
    %2925 = vmatprep.subr.bf16.mxu0 %v2492
    %2926 = vmatpush1.bf16.msra.mxu0 %v2491
    %2927 = vmatprep.subr.bf16.mxu0 %v2500
    %2928 = vmatpush1.bf16.msra.mxu0 %v2499
    %2929 = vmatprep.subr.bf16.mxu0 %v2508
    %2930 = vmatpush1.bf16.msra.mxu0 %v2507
    %2931 = vmatprep.subr.bf16.mxu0 %v2516
    %2932 = vmatpush1.bf16.msra.mxu0 %v2515
    %2933 = vmatprep.subr.bf16.mxu0 %v2524
    %2934 = vmatpush1.bf16.msra.mxu0 %v2523
    %2935 = vmatprep.subr.bf16.mxu0 %v2532
    %2936 = vmatpush1.bf16.msra.mxu0 %v2531
    %2937 = vmatprep.subr.bf16.mxu0 %v2540
    %2938 = vmatpush1.bf16.msra.mxu0 %v2539
    %2939 = vmatprep.subr.bf16.mxu0 %v2548
    %2940 = vmatpush1.bf16.msra.mxu0 %v2547
    %2941 = vmatprep.subr.bf16.mxu0 %v2556
    %2942 = vmatpush1.bf16.msra.mxu0 %v2555
    %2943 = vmatprep.subr.bf16.mxu0 %v2564
    %2944 = vmatpush1.bf16.msra.mxu0 %v2563
    %2945 = vmatprep.subr.bf16.mxu0 %v2572
    %2946 = vmatpush1.bf16.msra.mxu0 %v2571
    %2947 = vmatprep.subr.bf16.mxu0 %v2580
    %2948 = vmatpush1.bf16.msra.mxu0 %v2579
    %2949 = vmatprep.mubr.bf16.mxu0 %v2452
    %2950 = vmatmul.mubr.bf16.gmra.mrb[0].mxu0 %v2451
    %v2951 = vpop.f32.mrb[0].mxu0
    %v2952 = vadd.f32 %v2732, %v2951
    %v2953 = vpop.f32.mrb[0].mxu0
    %v2954 = vadd.f32 %v2736, %v2953
    %v2955 = vpop.f32.mrb[0].mxu0
    %v2956 = vpop.f32.mrb[0].mxu0
    %2957 = vdwg.mxu0
    %2958 = vmatprep.subr.bf16.mxu0 %v2588
    %2959 = vmatpush1.bf16.msra.mxu0 %v2587
    %2960 = vmatprep.subr.bf16.mxu0 %v2596
    %2961 = vmatpush1.bf16.msra.mxu0 %v2595
    %2962 = vmatprep.subr.bf16.mxu0 %v2604
    %2963 = vmatpush1.bf16.msra.mxu0 %v2603
    %2964 = vmatprep.subr.bf16.mxu0 %v2612
    %2965 = vmatpush1.bf16.msra.mxu0 %v2611
    %2966 = vmatprep.subr.bf16.mxu0 %v2620
    %2967 = vmatpush1.bf16.msra.mxu0 %v2619
    %2968 = vmatprep.subr.bf16.mxu0 %v2628
    %2969 = vmatpush1.bf16.msra.mxu0 %v2627
    %2970 = vmatprep.subr.bf16.mxu0 %v2636
    %2971 = vmatpush1.bf16.msra.mxu0 %v2635
    %2972 = vmatprep.subr.bf16.mxu0 %v2644
    %2973 = vmatpush1.bf16.msra.mxu0 %v2643
    %2974 = vmatprep.subr.bf16.mxu0 %v2652
    %2975 = vmatpush1.bf16.msra.mxu0 %v2651
    %2976 = vmatprep.subr.bf16.mxu0 %v2660
    %2977 = vmatpush1.bf16.msra.mxu0 %v2659
    %2978 = vmatprep.subr.bf16.mxu0 %v2668
    %2979 = vmatpush1.bf16.msra.mxu0 %v2667
    %2980 = vmatprep.subr.bf16.mxu0 %v2676
    %2981 = vmatpush1.bf16.msra.mxu0 %v2675
    %2982 = vmatprep.subr.bf16.mxu0 %v2684
    %2983 = vmatpush1.bf16.msra.mxu0 %v2683
    %2984 = vmatprep.subr.bf16.mxu0 %v2692
    %2985 = vmatpush1.bf16.msra.mxu0 %v2691
    %2986 = vmatprep.subr.bf16.mxu0 %v2700
    %2987 = vmatpush1.bf16.msra.mxu0 %v2699
    %2988 = vmatprep.subr.bf16.mxu0 %v2708
    %2989 = vmatpush1.bf16.msra.mxu0 %v2707
    %2990 = vmatprep.mubr.bf16.mxu0 %v2454
    %2991 = vmatmul.mubr.bf16.gmra.mrb[0].mxu0 %v2453
    %v2992 = vpop.f32.mrb[0].mxu0
    %v2993 = vadd.f32 %v2952, %v2992
    %v2994 = vpop.f32.mrb[0].mxu0
    %v2995 = vadd.f32 %v2954, %v2994
    %v2996 = vpop.f32.mrb[0].mxu0
    %v2997 = vpop.f32.mrb[0].mxu0
    %2998 = vdwg.mxu0
    %2999 = vmatprep.subr.bf16.mxu0 %v2462
    %3000 = vmatpush1.bf16.msra.mxu0 %v2461
    %3001 = vmatprep.subr.bf16.mxu0 %v2470
    %3002 = vmatpush1.bf16.msra.mxu0 %v2469
    %3003 = vmatprep.subr.bf16.mxu0 %v2478
    %3004 = vmatpush1.bf16.msra.mxu0 %v2477
    %3005 = vmatprep.subr.bf16.mxu0 %v2486
    %3006 = vmatpush1.bf16.msra.mxu0 %v2485
    %3007 = vmatprep.subr.bf16.mxu0 %v2494
    %3008 = vmatpush1.bf16.msra.mxu0 %v2493
    %3009 = vmatprep.subr.bf16.mxu0 %v2502
    %3010 = vmatpush1.bf16.msra.mxu0 %v2501
    %3011 = vmatprep.subr.bf16.mxu0 %v2510
    %3012 = vmatpush1.bf16.msra.mxu0 %v2509
    %3013 = vmatprep.subr.bf16.mxu0 %v2518
    %3014 = vmatpush1.bf16.msra.mxu0 %v2517
    %3015 = vmatprep.subr.bf16.mxu0 %v2526
    %3016 = vmatpush1.bf16.msra.mxu0 %v2525
    %3017 = vmatprep.subr.bf16.mxu0 %v2534
    %3018 = vmatpush1.bf16.msra.mxu0 %v2533
    %3019 = vmatprep.subr.bf16.mxu0 %v2542
    %3020 = vmatpush1.bf16.msra.mxu0 %v2541
    %3021 = vmatprep.subr.bf16.mxu0 %v2550
    %3022 = vmatpush1.bf16.msra.mxu0 %v2549
    %3023 = vmatprep.subr.bf16.mxu0 %v2558
    %3024 = vmatpush1.bf16.msra.mxu0 %v2557
    %3025 = vmatprep.subr.bf16.mxu0 %v2566
    %3026 = vmatpush1.bf16.msra.mxu0 %v2565
    %3027 = vmatprep.subr.bf16.mxu0 %v2574
    %3028 = vmatpush1.bf16.msra.mxu0 %v2573
    %3029 = vmatprep.subr.bf16.mxu0 %v2582
    %3030 = vmatpush1.bf16.msra.mxu0 %v2581
    %3031 = vmatprep.mubr.bf16.mxu0 %v2452
    %3032 = vmatmul.mubr.bf16.gmra.mrb[0].mxu0 %v2451
    %v3033 = vpop.f32.mrb[0].mxu0
    %v3034 = vadd.f32 %v2740, %v3033
    %v3035 = vpop.f32.mrb[0].mxu0
    %v3036 = vadd.f32 %v2744, %v3035
    %v3037 = vpop.f32.mrb[0].mxu0
    %v3038 = vpop.f32.mrb[0].mxu0
    %3039 = vdwg.mxu0
    %3040 = vmatprep.subr.bf16.mxu0 %v2590
    %3041 = vmatpush1.bf16.msra.mxu0 %v2589
    %3042 = vmatprep.subr.bf16.mxu0 %v2598
    %3043 = vmatpush1.bf16.msra.mxu0 %v2597
    %3044 = vmatprep.subr.bf16.mxu0 %v2606
    %3045 = vmatpush1.bf16.msra.mxu0 %v2605
    %3046 = vmatprep.subr.bf16.mxu0 %v2614
    %3047 = vmatpush1.bf16.msra.mxu0 %v2613
    %3048 = vmatprep.subr.bf16.mxu0 %v2622
    %3049 = vmatpush1.bf16.msra.mxu0 %v2621
    %3050 = vmatprep.subr.bf16.mxu0 %v2630
    %3051 = vmatpush1.bf16.msra.mxu0 %v2629
    %3052 = vmatprep.subr.bf16.mxu0 %v2638
    %3053 = vmatpush1.bf16.msra.mxu0 %v2637
    %3054 = vmatprep.subr.bf16.mxu0 %v2646
    %3055 = vmatpush1.bf16.msra.mxu0 %v2645
    %3056 = vmatprep.subr.bf16.mxu0 %v2654
    %3057 = vmatpush1.bf16.msra.mxu0 %v2653
    %3058 = vmatprep.subr.bf16.mxu0 %v2662
    %3059 = vmatpush1.bf16.msra.mxu0 %v2661
    %3060 = vmatprep.subr.bf16.mxu0 %v2670
    %3061 = vmatpush1.bf16.msra.mxu0 %v2669
    %3062 = vmatprep.subr.bf16.mxu0 %v2678
    %3063 = vmatpush1.bf16.msra.mxu0 %v2677
    %3064 = vmatprep.subr.bf16.mxu0 %v2686
    %3065 = vmatpush1.bf16.msra.mxu0 %v2685
    %3066 = vmatprep.subr.bf16.mxu0 %v2694
    %3067 = vmatpush1.bf16.msra.mxu0 %v2693
    %3068 = vmatprep.subr.bf16.mxu0 %v2702
    %3069 = vmatpush1.bf16.msra.mxu0 %v2701
    %3070 = vmatprep.subr.bf16.mxu0 %v2710
    %3071 = vmatpush1.bf16.msra.mxu0 %v2709
    %3072 = vmatprep.mubr.bf16.mxu0 %v2454
    %3073 = vmatmul.mubr.bf16.gmra.mrb[0].mxu0 %v2453
    %v3074 = vpop.f32.mrb[0].mxu0
    %v3075 = vadd.f32 %v3034, %v3074
    %v3076 = vpop.f32.mrb[0].mxu0
    %v3077 = vadd.f32 %v3036, %v3076
    %v3078 = vpop.f32.mrb[0].mxu0
    %v3079 = vpop.f32.mrb[0].mxu0
    %3080 = vdwg.mxu0
    %v3081 = vmax.f32 %v2829, 0.0
    %v3082 = vmax.f32 %v2831, 0.0
    %v3083 = vmax.f32 %v2911, 0.0
    %v3084 = vmax.f32 %v2913, 0.0
    %v3085 = vmax.f32 %v2993, 0.0
    %v3086 = vmax.f32 %v2995, 0.0
    %v3087 = vmax.f32 %v3075, 0.0
    %v3088 = vmax.f32 %v3077, 0.0
    %s3089 = smul.u32 4, 128
    %s3090 = smul.u32 %s3089, 2
    %s3091 = sshll.u32 %s3090, 4
    %3092 = dma.done %s730, %s3091
    %v3093 = vpack.c.bf16 %v3081, %v3081
    %v3094 = vpack.c.bf16 %v3082, %v3082
    %v3095 = vpack.c.bf16 %v3083, %v3083
    %v3096 = vpack.c.bf16 %v3084, %v3084
    %v3097 = vpack.c.bf16 %v3085, %v3085
    %v3098 = vpack.c.bf16 %v3086, %v3086
    %v3099 = vpack.c.bf16 %v3087, %v3087
    %v3100 = vpack.c.bf16 %v3088, %v3088
    %v3101 = vld [vmem:[#allocation5] sm:$0xff]
    %v3102 = vld [vmem:[#allocation5 + $0x8] sm:$0xff]
    %v3103 = vld [vmem:[#allocation5 + $0x10] sm:$0xff]
    %v3104 = vld [vmem:[#allocation5 + $0x18] sm:$0xff]
    %v3105 = vld [vmem:[#allocation5 + $0x20] sm:$0xff]
    %v3106 = vld [vmem:[#allocation5 + $0x28] sm:$0xff]
    %v3107 = vld [vmem:[#allocation5 + $0x30] sm:$0xff]
    %v3108 = vld [vmem:[#allocation5 + $0x38] sm:$0xff]
    %v3109 = vld [vmem:[#allocation5 + $0x40] sm:$0xff]
    %v3110 = vld [vmem:[#allocation5 + $0x48] sm:$0xff]
    %v3111 = vld [vmem:[#allocation5 + $0x50] sm:$0xff]
    %v3112 = vld [vmem:[#allocation5 + $0x58] sm:$0xff]
    %v3113 = vld [vmem:[#allocation5 + $0x60] sm:$0xff]
    %v3114 = vld [vmem:[#allocation5 + $0x68] sm:$0xff]
    %v3115 = vld [vmem:[#allocation5 + $0x70] sm:$0xff]
    %v3116 = vld [vmem:[#allocation5 + $0x78] sm:$0xff]
    %v3117 = vld [vmem:[#allocation5 + $0x80] sm:$0xff]
    %v3118 = vld [vmem:[#allocation5 + $0x88] sm:$0xff]
    %v3119 = vld [vmem:[#allocation5 + $0x90] sm:$0xff]
    %v3120 = vld [vmem:[#allocation5 + $0x98] sm:$0xff]
    %v3121 = vld [vmem:[#allocation5 + $0xa0] sm:$0xff]
    %v3122 = vld [vmem:[#allocation5 + $0xa8] sm:$0xff]
    %v3123 = vld [vmem:[#allocation5 + $0xb0] sm:$0xff]
    %v3124 = vld [vmem:[#allocation5 + $0xb8] sm:$0xff]
    %v3125 = vld [vmem:[#allocation5 + $0xc0] sm:$0xff]
    %v3126 = vld [vmem:[#allocation5 + $0xc8] sm:$0xff]
    %v3127 = vld [vmem:[#allocation5 + $0xd0] sm:$0xff]
    %v3128 = vld [vmem:[#allocation5 + $0xd8] sm:$0xff]
    %v3129 = vld [vmem:[#allocation5 + $0xe0] sm:$0xff]
    %v3130 = vld [vmem:[#allocation5 + $0xe8] sm:$0xff]
    %v3131 = vld [vmem:[#allocation5 + $0xf0] sm:$0xff]
    %v3132 = vld [vmem:[#allocation5 + $0xf8] sm:$0xff]
    %v3133 = vld [vmem:[#allocation5 + $0x100] sm:$0xff]
    %v3134 = vld [vmem:[#allocation5 + $0x108] sm:$0xff]
    %v3135 = vld [vmem:[#allocation5 + $0x110] sm:$0xff]
    %v3136 = vld [vmem:[#allocation5 + $0x118] sm:$0xff]
    %v3137 = vld [vmem:[#allocation5 + $0x120] sm:$0xff]
    %v3138 = vld [vmem:[#allocation5 + $0x128] sm:$0xff]
    %v3139 = vld [vmem:[#allocation5 + $0x130] sm:$0xff]
    %v3140 = vld [vmem:[#allocation5 + $0x138] sm:$0xff]
    %v3141 = vld [vmem:[#allocation5 + $0x140] sm:$0xff]
    %v3142 = vld [vmem:[#allocation5 + $0x148] sm:$0xff]
    %v3143 = vld [vmem:[#allocation5 + $0x150] sm:$0xff]
    %v3144 = vld [vmem:[#allocation5 + $0x158] sm:$0xff]
    %v3145 = vld [vmem:[#allocation5 + $0x160] sm:$0xff]
    %v3146 = vld [vmem:[#allocation5 + $0x168] sm:$0xff]
    %v3147 = vld [vmem:[#allocation5 + $0x170] sm:$0xff]
    %v3148 = vld [vmem:[#allocation5 + $0x178] sm:$0xff]
    %v3149 = vld [vmem:[#allocation5 + $0x180] sm:$0xff]
    %v3150 = vld [vmem:[#allocation5 + $0x188] sm:$0xff]
    %v3151 = vld [vmem:[#allocation5 + $0x190] sm:$0xff]
    %v3152 = vld [vmem:[#allocation5 + $0x198] sm:$0xff]
    %v3153 = vld [vmem:[#allocation5 + $0x1a0] sm:$0xff]
    %v3154 = vld [vmem:[#allocation5 + $0x1a8] sm:$0xff]
    %v3155 = vld [vmem:[#allocation5 + $0x1b0] sm:$0xff]
    %v3156 = vld [vmem:[#allocation5 + $0x1b8] sm:$0xff]
    %v3157 = vld [vmem:[#allocation5 + $0x1c0] sm:$0xff]
    %v3158 = vld [vmem:[#allocation5 + $0x1c8] sm:$0xff]
    %v3159 = vld [vmem:[#allocation5 + $0x1d0] sm:$0xff]
    %v3160 = vld [vmem:[#allocation5 + $0x1d8] sm:$0xff]
    %v3161 = vld [vmem:[#allocation5 + $0x1e0] sm:$0xff]
    %v3162 = vld [vmem:[#allocation5 + $0x1e8] sm:$0xff]
    %v3163 = vld [vmem:[#allocation5 + $0x1f0] sm:$0xff]
    %v3164 = vld [vmem:[#allocation5 + $0x1f8] sm:$0xff]
    %v3165 = vld [vmem:[#allocation5 + $0x200] sm:$0xff]
    %v3166 = vld [vmem:[#allocation5 + $0x208] sm:$0xff]
    %v3167 = vld [vmem:[#allocation5 + $0x210] sm:$0xff]
    %v3168 = vld [vmem:[#allocation5 + $0x218] sm:$0xff]
    %v3169 = vld [vmem:[#allocation5 + $0x220] sm:$0xff]
    %v3170 = vld [vmem:[#allocation5 + $0x228] sm:$0xff]
    %v3171 = vld [vmem:[#allocation5 + $0x230] sm:$0xff]
    %v3172 = vld [vmem:[#allocation5 + $0x238] sm:$0xff]
    %v3173 = vld [vmem:[#allocation5 + $0x240] sm:$0xff]
    %v3174 = vld [vmem:[#allocation5 + $0x248] sm:$0xff]
    %v3175 = vld [vmem:[#allocation5 + $0x250] sm:$0xff]
    %v3176 = vld [vmem:[#allocation5 + $0x258] sm:$0xff]
    %v3177 = vld [vmem:[#allocation5 + $0x260] sm:$0xff]
    %v3178 = vld [vmem:[#allocation5 + $0x268] sm:$0xff]
    %v3179 = vld [vmem:[#allocation5 + $0x270] sm:$0xff]
    %v3180 = vld [vmem:[#allocation5 + $0x278] sm:$0xff]
    %v3181 = vld [vmem:[#allocation5 + $0x280] sm:$0xff]
    %v3182 = vld [vmem:[#allocation5 + $0x288] sm:$0xff]
    %v3183 = vld [vmem:[#allocation5 + $0x290] sm:$0xff]
    %v3184 = vld [vmem:[#allocation5 + $0x298] sm:$0xff]
    %v3185 = vld [vmem:[#allocation5 + $0x2a0] sm:$0xff]
    %v3186 = vld [vmem:[#allocation5 + $0x2a8] sm:$0xff]
    %v3187 = vld [vmem:[#allocation5 + $0x2b0] sm:$0xff]
    %v3188 = vld [vmem:[#allocation5 + $0x2b8] sm:$0xff]
    %v3189 = vld [vmem:[#allocation5 + $0x2c0] sm:$0xff]
    %v3190 = vld [vmem:[#allocation5 + $0x2c8] sm:$0xff]
    %v3191 = vld [vmem:[#allocation5 + $0x2d0] sm:$0xff]
    %v3192 = vld [vmem:[#allocation5 + $0x2d8] sm:$0xff]
    %v3193 = vld [vmem:[#allocation5 + $0x2e0] sm:$0xff]
    %v3194 = vld [vmem:[#allocation5 + $0x2e8] sm:$0xff]
    %v3195 = vld [vmem:[#allocation5 + $0x2f0] sm:$0xff]
    %v3196 = vld [vmem:[#allocation5 + $0x2f8] sm:$0xff]
    %v3197 = vld [vmem:[#allocation5 + $0x300] sm:$0xff]
    %v3198 = vld [vmem:[#allocation5 + $0x308] sm:$0xff]
    %v3199 = vld [vmem:[#allocation5 + $0x310] sm:$0xff]
    %v3200 = vld [vmem:[#allocation5 + $0x318] sm:$0xff]
    %v3201 = vld [vmem:[#allocation5 + $0x320] sm:$0xff]
    %v3202 = vld [vmem:[#allocation5 + $0x328] sm:$0xff]
    %v3203 = vld [vmem:[#allocation5 + $0x330] sm:$0xff]
    %v3204 = vld [vmem:[#allocation5 + $0x338] sm:$0xff]
    %v3205 = vld [vmem:[#allocation5 + $0x340] sm:$0xff]
    %v3206 = vld [vmem:[#allocation5 + $0x348] sm:$0xff]
    %v3207 = vld [vmem:[#allocation5 + $0x350] sm:$0xff]
    %v3208 = vld [vmem:[#allocation5 + $0x358] sm:$0xff]
    %v3209 = vld [vmem:[#allocation5 + $0x360] sm:$0xff]
    %v3210 = vld [vmem:[#allocation5 + $0x368] sm:$0xff]
    %v3211 = vld [vmem:[#allocation5 + $0x370] sm:$0xff]
    %v3212 = vld [vmem:[#allocation5 + $0x378] sm:$0xff]
    %v3213 = vld [vmem:[#allocation5 + $0x380] sm:$0xff]
    %v3214 = vld [vmem:[#allocation5 + $0x388] sm:$0xff]
    %v3215 = vld [vmem:[#allocation5 + $0x390] sm:$0xff]
    %v3216 = vld [vmem:[#allocation5 + $0x398] sm:$0xff]
    %v3217 = vld [vmem:[#allocation5 + $0x3a0] sm:$0xff]
    %v3218 = vld [vmem:[#allocation5 + $0x3a8] sm:$0xff]
    %v3219 = vld [vmem:[#allocation5 + $0x3b0] sm:$0xff]
    %v3220 = vld [vmem:[#allocation5 + $0x3b8] sm:$0xff]
    %v3221 = vld [vmem:[#allocation5 + $0x3c0] sm:$0xff]
    %v3222 = vld [vmem:[#allocation5 + $0x3c8] sm:$0xff]
    %v3223 = vld [vmem:[#allocation5 + $0x3d0] sm:$0xff]
    %v3224 = vld [vmem:[#allocation5 + $0x3d8] sm:$0xff]
    %v3225 = vld [vmem:[#allocation5 + $0x3e0] sm:$0xff]
    %v3226 = vld [vmem:[#allocation5 + $0x3e8] sm:$0xff]
    %v3227 = vld [vmem:[#allocation5 + $0x3f0] sm:$0xff]
    %v3228 = vld [vmem:[#allocation5 + $0x3f8] sm:$0xff]
    %v3229 = vld [vmem:[%s53] sm:$0x3]
    %v3231 = vlaneseq
    %v3232 = vshrl.u32 %v3231, 7
    %v3233 = vsub.s32 0, %v3232
    %v3234 = vrot.slane %v3229, %v3233
    %v3235 = vlaneseq
    %v3236 = vshrl.u32 %v3235, 7
    %v3237 = vsub.s32 1, %v3236
    %v3238 = vrot.slane %v3229, %v3237
    %3241 = vmatprep.subr.bf16.mxu0 %v3102
    %3242 = vmatpush1.bf16.msra.mxu0 %v3101
    %3243 = vmatprep.subr.bf16.mxu0 %v3104
    %3244 = vmatpush1.bf16.msra.mxu0 %v3103
    %3245 = vmatprep.subr.bf16.mxu0 %v3106
    %3246 = vmatpush1.bf16.msra.mxu0 %v3105
    %3247 = vmatprep.subr.bf16.mxu0 %v3108
    %3248 = vmatpush1.bf16.msra.mxu0 %v3107
    %3249 = vmatprep.subr.bf16.mxu0 %v3110
    %3250 = vmatpush1.bf16.msra.mxu0 %v3109
    %3251 = vmatprep.subr.bf16.mxu0 %v3112
    %3252 = vmatpush1.bf16.msra.mxu0 %v3111
    %3253 = vmatprep.subr.bf16.mxu0 %v3114
    %3254 = vmatpush1.bf16.msra.mxu0 %v3113
    %3255 = vmatprep.subr.bf16.mxu0 %v3116
    %3256 = vmatpush1.bf16.msra.mxu0 %v3115
    %3257 = vmatprep.subr.bf16.mxu0 %v3118
    %3258 = vmatpush1.bf16.msra.mxu0 %v3117
    %3259 = vmatprep.subr.bf16.mxu0 %v3120
    %3260 = vmatpush1.bf16.msra.mxu0 %v3119
    %3261 = vmatprep.subr.bf16.mxu0 %v3122
    %3262 = vmatpush1.bf16.msra.mxu0 %v3121
    %3263 = vmatprep.subr.bf16.mxu0 %v3124
    %3264 = vmatpush1.bf16.msra.mxu0 %v3123
    %3265 = vmatprep.subr.bf16.mxu0 %v3126
    %3266 = vmatpush1.bf16.msra.mxu0 %v3125
    %3267 = vmatprep.subr.bf16.mxu0 %v3128
    %3268 = vmatpush1.bf16.msra.mxu0 %v3127
    %3269 = vmatprep.subr.bf16.mxu0 %v3130
    %3270 = vmatpush1.bf16.msra.mxu0 %v3129
    %3271 = vmatprep.subr.bf16.mxu0 %v3132
    %3272 = vmatpush1.bf16.msra.mxu0 %v3131
    %3273 = vmatprep.mubr.bf16.mxu0 %v3094
    %3274 = vmatmul.mubr.bf16.gmra.mrb[0].mxu0 %v3093
    %v3275 = vpop.f32.mrb[0].mxu0
    %v3276 = vadd.f32 %v3234, %v3275
    %v3277 = vpop.f32.mrb[0].mxu0
    %v3278 = vadd.f32 %v3238, %v3277
    %v3279 = vpop.f32.mrb[0].mxu0
    %v3280 = vpop.f32.mrb[0].mxu0
    %3281 = vdwg.mxu0
    %3282 = vmatprep.subr.bf16.mxu0 %v3134
    %3283 = vmatpush1.bf16.msra.mxu0 %v3133
    %3284 = vmatprep.subr.bf16.mxu0 %v3136
    %3285 = vmatpush1.bf16.msra.mxu0 %v3135
    %3286 = vmatprep.subr.bf16.mxu0 %v3138
    %3287 = vmatpush1.bf16.msra.mxu0 %v3137
    %3288 = vmatprep.subr.bf16.mxu0 %v3140
    %3289 = vmatpush1.bf16.msra.mxu0 %v3139
    %3290 = vmatprep.subr.bf16.mxu0 %v3142
    %3291 = vmatpush1.bf16.msra.mxu0 %v3141
    %3292 = vmatprep.subr.bf16.mxu0 %v3144
    %3293 = vmatpush1.bf16.msra.mxu0 %v3143
    %3294 = vmatprep.subr.bf16.mxu0 %v3146
    %3295 = vmatpush1.bf16.msra.mxu0 %v3145
    %3296 = vmatprep.subr.bf16.mxu0 %v3148
    %3297 = vmatpush1.bf16.msra.mxu0 %v3147
    %3298 = vmatprep.subr.bf16.mxu0 %v3150
    %3299 = vmatpush1.bf16.msra.mxu0 %v3149
    %3300 = vmatprep.subr.bf16.mxu0 %v3152
    %3301 = vmatpush1.bf16.msra.mxu0 %v3151
    %3302 = vmatprep.subr.bf16.mxu0 %v3154
    %3303 = vmatpush1.bf16.msra.mxu0 %v3153
    %3304 = vmatprep.subr.bf16.mxu0 %v3156
    %3305 = vmatpush1.bf16.msra.mxu0 %v3155
    %3306 = vmatprep.subr.bf16.mxu0 %v3158
    %3307 = vmatpush1.bf16.msra.mxu0 %v3157
    %3308 = vmatprep.subr.bf16.mxu0 %v3160
    %3309 = vmatpush1.bf16.msra.mxu0 %v3159
    %3310 = vmatprep.subr.bf16.mxu0 %v3162
    %3311 = vmatpush1.bf16.msra.mxu0 %v3161
    %3312 = vmatprep.subr.bf16.mxu0 %v3164
    %3313 = vmatpush1.bf16.msra.mxu0 %v3163
    %3314 = vmatprep.mubr.bf16.mxu0 %v3096
    %3315 = vmatmul.mubr.bf16.gmra.mrb[0].mxu0 %v3095
    %v3316 = vpop.f32.mrb[0].mxu0
    %v3317 = vadd.f32 %v3276, %v3316
    %v3318 = vpop.f32.mrb[0].mxu0
    %v3319 = vadd.f32 %v3278, %v3318
    %v3320 = vpop.f32.mrb[0].mxu0
    %v3321 = vpop.f32.mrb[0].mxu0
    %3322 = vdwg.mxu0
    %3323 = vmatprep.subr.bf16.mxu0 %v3166
    %3324 = vmatpush1.bf16.msra.mxu0 %v3165
    %3325 = vmatprep.subr.bf16.mxu0 %v3168
    %3326 = vmatpush1.bf16.msra.mxu0 %v3167
    %3327 = vmatprep.subr.bf16.mxu0 %v3170
    %3328 = vmatpush1.bf16.msra.mxu0 %v3169
    %3329 = vmatprep.subr.bf16.mxu0 %v3172
    %3330 = vmatpush1.bf16.msra.mxu0 %v3171
    %3331 = vmatprep.subr.bf16.mxu0 %v3174
    %3332 = vmatpush1.bf16.msra.mxu0 %v3173
    %3333 = vmatprep.subr.bf16.mxu0 %v3176
    %3334 = vmatpush1.bf16.msra.mxu0 %v3175
    %3335 = vmatprep.subr.bf16.mxu0 %v3178
    %3336 = vmatpush1.bf16.msra.mxu0 %v3177
    %3337 = vmatprep.subr.bf16.mxu0 %v3180
    %3338 = vmatpush1.bf16.msra.mxu0 %v3179
    %3339 = vmatprep.subr.bf16.mxu0 %v3182
    %3340 = vmatpush1.bf16.msra.mxu0 %v3181
    %3341 = vmatprep.subr.bf16.mxu0 %v3184
    %3342 = vmatpush1.bf16.msra.mxu0 %v3183
    %3343 = vmatprep.subr.bf16.mxu0 %v3186
    %3344 = vmatpush1.bf16.msra.mxu0 %v3185
    %3345 = vmatprep.subr.bf16.mxu0 %v3188
    %3346 = vmatpush1.bf16.msra.mxu0 %v3187
    %3347 = vmatprep.subr.bf16.mxu0 %v3190
    %3348 = vmatpush1.bf16.msra.mxu0 %v3189
    %3349 = vmatprep.subr.bf16.mxu0 %v3192
    %3350 = vmatpush1.bf16.msra.mxu0 %v3191
    %3351 = vmatprep.subr.bf16.mxu0 %v3194
    %3352 = vmatpush1.bf16.msra.mxu0 %v3193
    %3353 = vmatprep.subr.bf16.mxu0 %v3196
    %3354 = vmatpush1.bf16.msra.mxu0 %v3195
    %3355 = vmatprep.mubr.bf16.mxu0 %v3098
    %3356 = vmatmul.mubr.bf16.gmra.mrb[0].mxu0 %v3097
    %v3357 = vpop.f32.mrb[0].mxu0
    %v3358 = vadd.f32 %v3317, %v3357
    %v3359 = vpop.f32.mrb[0].mxu0
    %v3360 = vadd.f32 %v3319, %v3359
    %v3361 = vpop.f32.mrb[0].mxu0
    %v3362 = vpop.f32.mrb[0].mxu0
    %3363 = vdwg.mxu0
    %3364 = vmatprep.subr.bf16.mxu0 %v3198
    %3365 = vmatpush1.bf16.msra.mxu0 %v3197
    %3366 = vmatprep.subr.bf16.mxu0 %v3200
    %3367 = vmatpush1.bf16.msra.mxu0 %v3199
    %3368 = vmatprep.subr.bf16.mxu0 %v3202
    %3369 = vmatpush1.bf16.msra.mxu0 %v3201
    %3370 = vmatprep.subr.bf16.mxu0 %v3204
    %3371 = vmatpush1.bf16.msra.mxu0 %v3203
    %3372 = vmatprep.subr.bf16.mxu0 %v3206
    %3373 = vmatpush1.bf16.msra.mxu0 %v3205
    %3374 = vmatprep.subr.bf16.mxu0 %v3208
    %3375 = vmatpush1.bf16.msra.mxu0 %v3207
    %3376 = vmatprep.subr.bf16.mxu0 %v3210
    %3377 = vmatpush1.bf16.msra.mxu0 %v3209
    %3378 = vmatprep.subr.bf16.mxu0 %v3212
    %3379 = vmatpush1.bf16.msra.mxu0 %v3211
    %3380 = vmatprep.subr.bf16.mxu0 %v3214
    %3381 = vmatpush1.bf16.msra.mxu0 %v3213
    %3382 = vmatprep.subr.bf16.mxu0 %v3216
    %3383 = vmatpush1.bf16.msra.mxu0 %v3215
    %3384 = vmatprep.subr.bf16.mxu0 %v3218
    %3385 = vmatpush1.bf16.msra.mxu0 %v3217
    %3386 = vmatprep.subr.bf16.mxu0 %v3220
    %3387 = vmatpush1.bf16.msra.mxu0 %v3219
    %3388 = vmatprep.subr.bf16.mxu0 %v3222
    %3389 = vmatpush1.bf16.msra.mxu0 %v3221
    %3390 = vmatprep.subr.bf16.mxu0 %v3224
    %3391 = vmatpush1.bf16.msra.mxu0 %v3223
    %3392 = vmatprep.subr.bf16.mxu0 %v3226
    %3393 = vmatpush1.bf16.msra.mxu0 %v3225
    %3394 = vmatprep.subr.bf16.mxu0 %v3228
    %3395 = vmatpush1.bf16.msra.mxu0 %v3227
    %3396 = vmatprep.mubr.bf16.mxu0 %v3100
    %3397 = vmatmul.mubr.bf16.gmra.mrb[0].mxu0 %v3099
    %v3398 = vpop.f32.mrb[0].mxu0
    %v3399 = vadd.f32 %v3358, %v3398
    %v3400 = vpop.f32.mrb[0].mxu0
    %v3401 = vadd.f32 %v3360, %v3400
    %v3402 = vpop.f32.mrb[0].mxu0
    %v3403 = vpop.f32.mrb[0].mxu0
    %3404 = vdwg.mxu0
    %v3405 = vld [vmem:[%s55] sm:$0xf]
    %v3406 = vld [vmem:[%s57] sm:$0xff]
    %v3407 = vld [vmem:[%s57 + $0x8] sm:$0xff]
    %v3408 = vld [vmem:[%s57 + $0x10] sm:$0xff]
    %v3409 = vld [vmem:[%s57 + $0x18] sm:$0xff]
    %v3410 = vld [vmem:[%s57 + $0x20] sm:$0xff]
    %v3411 = vld [vmem:[%s57 + $0x28] sm:$0xff]
    %v3412 = vld [vmem:[%s57 + $0x30] sm:$0xff]
    %v3413 = vld [vmem:[%s57 + $0x38] sm:$0xff]
    %v3414 = vld [vmem:[%s57 + $0x40] sm:$0xff]
    %v3415 = vld [vmem:[%s57 + $0x48] sm:$0xff]
    %v3416 = vld [vmem:[%s57 + $0x50] sm:$0xff]
    %v3417 = vld [vmem:[%s57 + $0x58] sm:$0xff]
    %v3418 = vld [vmem:[%s57 + $0x60] sm:$0xff]
    %v3419 = vld [vmem:[%s57 + $0x68] sm:$0xff]
    %v3420 = vld [vmem:[%s57 + $0x70] sm:$0xff]
    %v3421 = vld [vmem:[%s57 + $0x78] sm:$0xff]
    %v3422 = vld [vmem:[%s57 + $0x80] sm:$0xff]
    %v3423 = vld [vmem:[%s57 + $0x88] sm:$0xff]
    %v3424 = vld [vmem:[%s57 + $0x90] sm:$0xff]
    %v3425 = vld [vmem:[%s57 + $0x98] sm:$0xff]
    %v3426 = vld [vmem:[%s57 + $0xa0] sm:$0xff]
    %v3427 = vld [vmem:[%s57 + $0xa8] sm:$0xff]
    %v3428 = vld [vmem:[%s57 + $0xb0] sm:$0xff]
    %v3429 = vld [vmem:[%s57 + $0xb8] sm:$0xff]
    %v3430 = vld [vmem:[%s57 + $0xc0] sm:$0xff]
    %v3431 = vld [vmem:[%s57 + $0xc8] sm:$0xff]
    %v3432 = vld [vmem:[%s57 + $0xd0] sm:$0xff]
    %v3433 = vld [vmem:[%s57 + $0xd8] sm:$0xff]
    %v3434 = vld [vmem:[%s57 + $0xe0] sm:$0xff]
    %v3435 = vld [vmem:[%s57 + $0xe8] sm:$0xff]
    %v3436 = vld [vmem:[%s57 + $0xf0] sm:$0xff]
    %v3437 = vld [vmem:[%s57 + $0xf8] sm:$0xff]
    %3438 = vmatprep.subr.mxu0 0.0
    %3439 = vmatpush1.msra.mxu0 %v3406
    %3440 = vmatprep.subr.mxu0 0.0
    %3441 = vmatpush1.msra.mxu0 %v3407
    %3442 = vmatprep.subr.mxu0 0.0
    %3443 = vmatpush1.msra.mxu0 %v3408
    %3444 = vmatprep.subr.mxu0 0.0
    %3445 = vmatpush1.msra.mxu0 %v3409
    %3446 = vmatprep.subr.mxu0 0.0
    %3447 = vmatpush1.msra.mxu0 %v3410
    %3448 = vmatprep.subr.mxu0 0.0
    %3449 = vmatpush1.msra.mxu0 %v3411
    %3450 = vmatprep.subr.mxu0 0.0
    %3451 = vmatpush1.msra.mxu0 %v3412
    %3452 = vmatprep.subr.mxu0 0.0
    %3453 = vmatpush1.msra.mxu0 %v3413
    %3454 = vmatprep.subr.mxu0 0.0
    %3455 = vmatpush1.msra.mxu0 %v3414
    %3456 = vmatprep.subr.mxu0 0.0
    %3457 = vmatpush1.msra.mxu0 %v3415
    %3458 = vmatprep.subr.mxu0 0.0
    %3459 = vmatpush1.msra.mxu0 %v3416
    %3460 = vmatprep.subr.mxu0 0.0
    %3461 = vmatpush1.msra.mxu0 %v3417
    %3462 = vmatprep.subr.mxu0 0.0
    %3463 = vmatpush1.msra.mxu0 %v3418
    %3464 = vmatprep.subr.mxu0 0.0
    %3465 = vmatpush1.msra.mxu0 %v3419
    %3466 = vmatprep.subr.mxu0 0.0
    %3467 = vmatpush1.msra.mxu0 %v3420
    %3468 = vmatprep.subr.mxu0 0.0
    %3469 = vmatpush1.msra.mxu0 %v3421
    %3470 = vmatprep.subr.mxu0 0.0
    %3471 = vmatpush1.msra.mxu0 %v3422
    %3472 = vmatprep.subr.mxu0 0.0
    %3473 = vmatpush1.msra.mxu0 %v3423
    %3474 = vmatprep.subr.mxu0 0.0
    %3475 = vmatpush1.msra.mxu0 %v3424
    %3476 = vmatprep.subr.mxu0 0.0
    %3477 = vmatpush1.msra.mxu0 %v3425
    %3478 = vmatprep.subr.mxu0 0.0
    %3479 = vmatpush1.msra.mxu0 %v3426
    %3480 = vmatprep.subr.mxu0 0.0
    %3481 = vmatpush1.msra.mxu0 %v3427
    %3482 = vmatprep.subr.mxu0 0.0
    %3483 = vmatpush1.msra.mxu0 %v3428
    %3484 = vmatprep.subr.mxu0 0.0
    %3485 = vmatpush1.msra.mxu0 %v3429
    %3486 = vmatprep.subr.mxu0 0.0
    %3487 = vmatpush1.msra.mxu0 %v3430
    %3488 = vmatprep.subr.mxu0 0.0
    %3489 = vmatpush1.msra.mxu0 %v3431
    %3490 = vmatprep.subr.mxu0 0.0
    %3491 = vmatpush1.msra.mxu0 %v3432
    %3492 = vmatprep.subr.mxu0 0.0
    %3493 = vmatpush1.msra.mxu0 %v3433
    %3494 = vmatprep.subr.mxu0 0.0
    %3495 = vmatpush1.msra.mxu0 %v3434
    %3496 = vmatprep.subr.mxu0 0.0
    %3497 = vmatpush1.msra.mxu0 %v3435
    %3498 = vmatprep.subr.mxu0 0.0
    %3499 = vmatpush1.msra.mxu0 %v3436
    %3500 = vmatprep.subr.mxu0 0.0
    %3501 = vmatpush1.msra.mxu0 %v3437
    %3502 = vmatprep.mubr.f32.mxu0 %v3401
    %3503 = vmatmul.mubr.f32.gmra.mrb[0].mxu0 %v3399
    %v3504 = vpop.f32.mrb[0].mxu0
    %v3505 = vadd.f32 0.0, %v3504
    %v3506 = vpop.f32.mrb[0].mxu0
    %3507 = vdwg.mxu0
    %vm3508 = vcmask 31744
    %v3510 = vsel %vm3508, %v2254, 0
    %v3513 = vsel %vm1522, %v3405, 0
    %3515 = vmatprep.subr.mxu0 0.0
    %3516 = vmatpush1.msra.mxu0 %v3513
    %3517 = vmatprep.subr.mxu0 0.0
    %3518 = vmatpush1.msra.mxu0 0.0
    %3519 = vmatprep.subr.mxu0 0.0
    %3520 = vmatpush1.msra.mxu0 0.0
    %3521 = vmatprep.subr.mxu0 0.0
    %3522 = vmatpush1.msra.mxu0 0.0
    %3523 = vmatprep.subr.mxu0 0.0
    %3524 = vmatpush1.msra.mxu0 0.0
    %3525 = vmatprep.subr.mxu0 0.0
    %3526 = vmatpush1.msra.mxu0 0.0
    %3527 = vmatprep.subr.mxu0 0.0
    %3528 = vmatpush1.msra.mxu0 0.0
    %3529 = vmatprep.subr.mxu0 0.0
    %3530 = vmatpush1.msra.mxu0 0.0
    %3531 = vmatprep.subr.mxu0 0.0
    %3532 = vmatpush1.msra.mxu0 0.0
    %3533 = vmatprep.subr.mxu0 0.0
    %3534 = vmatpush1.msra.mxu0 0.0
    %3535 = vmatprep.subr.mxu0 0.0
    %3536 = vmatpush1.msra.mxu0 0.0
    %3537 = vmatprep.subr.mxu0 0.0
    %3538 = vmatpush1.msra.mxu0 0.0
    %3539 = vmatprep.subr.mxu0 0.0
    %3540 = vmatpush1.msra.mxu0 0.0
    %3541 = vmatprep.subr.mxu0 0.0
    %3542 = vmatpush1.msra.mxu0 0.0
    %3543 = vmatprep.subr.mxu0 0.0
    %3544 = vmatpush1.msra.mxu0 0.0
    %3545 = vmatprep.subr.mxu0 0.0
    %3546 = vmatpush1.msra.mxu0 0.0
    %3547 = vmatprep.subr.mxu0 0.0
    %3548 = vmatpush1.msra.mxu0 0.0
    %3549 = vmatprep.subr.mxu0 0.0
    %3550 = vmatpush1.msra.mxu0 0.0
    %3551 = vmatprep.subr.mxu0 0.0
    %3552 = vmatpush1.msra.mxu0 0.0
    %3553 = vmatprep.subr.mxu0 0.0
    %3554 = vmatpush1.msra.mxu0 0.0
    %3555 = vmatprep.subr.mxu0 0.0
    %3556 = vmatpush1.msra.mxu0 0.0
    %3557 = vmatprep.subr.mxu0 0.0
    %3558 = vmatpush1.msra.mxu0 0.0
    %3559 = vmatprep.subr.mxu0 0.0
    %3560 = vmatpush1.msra.mxu0 0.0
    %3561 = vmatprep.subr.mxu0 0.0
    %3562 = vmatpush1.msra.mxu0 0.0
    %3563 = vmatprep.subr.mxu0 0.0
    %3564 = vmatpush1.msra.mxu0 0.0
    %3565 = vmatprep.subr.mxu0 0.0
    %3566 = vmatpush1.msra.mxu0 0.0
    %3567 = vmatprep.subr.mxu0 0.0
    %3568 = vmatpush1.msra.mxu0 0.0
    %3569 = vmatprep.subr.mxu0 0.0
    %3570 = vmatpush1.msra.mxu0 0.0
    %3571 = vmatprep.subr.mxu0 0.0
    %3572 = vmatpush1.msra.mxu0 0.0
    %3573 = vmatprep.subr.mxu0 0.0
    %3574 = vmatpush1.msra.mxu0 0.0
    %3575 = vmatprep.subr.mxu0 0.0
    %3576 = vmatpush1.msra.mxu0 0.0
    %3577 = vmatprep.subr.mxu0 0.0
    %3578 = vmatpush1.msra.mxu0 0.0
    %3579 = vmatprep.mubr.f32.mxu0 0.0
    %3580 = vmatmul.mubr.f32.gmra.mrb[0].mxu0 %v3510
    %v3581 = vpop.f32.mrb[0].mxu0
    %v3582 = vadd.f32 %v3505, %v3581
    %v3583 = vpop.f32.mrb[0].mxu0
    %3584 = vdwg.mxu0
    %v3585 = vld [vmem:[#allocation7] sm:$0x1]
    %v3587 = vlaneseq
    %v3588 = vshrl.u32 %v3587, 7
    %v3589 = vsub.s32 0, %v3588
    %v3590 = vrot.slane %v3585, %v3589
    %v3592 = vadd.f32 %v3582, %v3590
    %vm3593 = vcmask 1024
    %3594 = vst.msk [vmem:[%s67] sm:$0x3] %vm3593, %v3592
    // Predicated region
    $region159: #{tpu_custom_call.1} parent=1 // pred_check
      _
    $region160: #{tpu_custom_call.1} parent=1 // pred_check_branch
      %3596 = sbr.rel (0) target = $region162
    $region161: #{tpu_custom_call.1} parent=1 // pred_region
      _
    $region162: #{tpu_custom_call.1} parent=1 // pred_fallthru
      _
    // Predicated region
    $region163: #{tpu_custom_call.1} parent=1 // pred_check
      _
    $region164: #{tpu_custom_call.1} parent=1 // pred_check_branch
      %3598 = sbr.rel (0) target = $region166
    $region165: #{tpu_custom_call.1} parent=1 // pred_region
      _
    $region166: #{tpu_custom_call.1} parent=1 // pred_fallthru
      _
  %3599 = vsyncmov [#allocation6]
  %s3600 = vpop.sfrf %3599
  %p3601 = scmp.eq.s32.totalorder %s3600, 0
  %p3602 = pneg %p3601
  %3604 = shalt.err (%p3602)
  %s3605 = scalar_lea.sflag [#allocation6], 1
  %3606 = vsyncmov %s3605
  %s3607 = vpop.sfrf %3606
  %p3608 = scmp.eq.s32.totalorder %s3607, 0
  %p3609 = pneg %p3608
  %3611 = shalt.err (%p3609)
  %s3612 = scalar_lea.sflag [#allocation6], 2
  %3613 = vsyncmov %s3612
  %s3614 = vpop.sfrf %3613
  %p3615 = scmp.eq.s32.totalorder %s3614, 0
  %p3616 = pneg %p3615
  %3618 = shalt.err (%p3616)

</llo_original>
